<compile_context>
chip_gen: v5e
topology: v5e:2x2
jax: 0.10.0
libtpu: 0.0.40
codegen_flags: <defaults>
</compile_context>

<pallas_src>
import jax
import jax.numpy as jnp
from jax import lax
from jax.experimental import pallas as pl
from jax.experimental.pallas import tpu as pltpu


def _round_up(n, m):
    return (n + m - 1) // m * m


# --------------------------------------------------------------------------
# Fused Pallas kernel: (conv3x3 + BN + ReLU) x 2 for one image per grid step.
# --------------------------------------------------------------------------
def _double_conv_kernel(p_ref, w1_ref, s1_ref, b1_ref, w2_ref, s2_ref, b2_ref,
                        o_ref, y1_ref):
    # p_ref : (H, W, 9*Cin)        bf16 im2col patches of the input image
    # w1_ref: (9*Cin, Cmid_p)      bf16 conv1 weights, K order (dy, dx, cin)
    # s1/b1 : (1, 1, Cmid_p)       f32 folded BN1 scale / shift
    # w2_ref: (9, Cmid_p, Cout_p)  bf16 conv2 weights, one (dy, dx) tap per row
    # s2/b2 : (1, 1, Cout_p)       f32 folded BN2 scale / shift
    # o_ref : (H, W, Cout_store)   f32 output (unpadded channels if Cout small)
    # y1_ref: (H+2, W+2, Cmid_p)   bf16 VMEM scratch: layer-1 output + 1-px
    #                              zero ring (= layer-2's SAME zero padding)
    H, W, Cout_store = o_ref.shape
    Hp2, Wp2, Cmid_p = y1_ref.shape
    Cout_p = w2_ref.shape[-1]

    # Zero only the four ring strips, every step (cheap, and correct even when
    # the batch grid axis is sharded across TensorCores).  The interior is
    # fully overwritten below.
    y1_ref[0:1, :, :] = jnp.zeros((1, Wp2, Cmid_p), y1_ref.dtype)
    y1_ref[Hp2 - 1:Hp2, :, :] = jnp.zeros((1, Wp2, Cmid_p), y1_ref.dtype)
    y1_ref[:, 0:1, :] = jnp.zeros((Hp2, 1, Cmid_p), y1_ref.dtype)
    y1_ref[:, Wp2 - 1:Wp2, :] = jnp.zeros((Hp2, 1, Cmid_p), y1_ref.dtype)

    # ---- layer 1: 3x3 conv as ONE im2col matmul (K = 9*Cin) + BN + ReLU,
    # computed only on the true HxW interior.
    y1 = lax.dot_general(p_ref[...], w1_ref[...],
                         dimension_numbers=(((2,), (0,)), ((), ())),
                         preferred_element_type=jnp.float32)
    y1 = jnp.maximum(y1 * s1_ref[...] + b1_ref[...], 0.0)
    y1_ref[1:H + 1, 1:W + 1, :] = y1.astype(y1_ref.dtype)    # stays in VMEM

    # ---- layer 2: 3x3 conv as 9 MXU matmuls with K = Cmid_p each, reading
    # shifted windows straight off the zero-ring scratch (no slab concat).
    acc2 = jnp.zeros((H, W, Cout_p), jnp.float32)
    for dy in range(3):
        for dx in range(3):
            acc2 += lax.dot_general(
                y1_ref[dy:dy + H, dx:dx + W, :], w2_ref[dy * 3 + dx],
                dimension_numbers=(((2,), (0,)), ((), ())),
                preferred_element_type=jnp.float32)
    out = jnp.maximum(acc2 * s2_ref[...] + b2_ref[...], 0.0)
    o_ref[...] = out[..., :Cout_store].astype(o_ref.dtype)


def _double_conv_pallas(x_nhwc, w1, scale1, shift1, w2, scale2, shift2):
    """x_nhwc: (B,H,W,Cin) f32; w1: (3,3,Cin,Cmid); w2: (3,3,Cmid,Cout)."""
    B, H, W, Cin = x_nhwc.shape
    Cmid = w1.shape[-1]
    Cout = w2.shape[-1]
    Cmid_p = _round_up(Cmid, 128)
    Cout_p = _round_up(Cout, 128)
    # Lane-dense padded store for production channel counts; unpadded store for
    # tiny Cout so we don't write (128/Cout)x the needed HBM bytes + re-slice.
    Cout_store = Cout_p if Cout >= 64 else Cout

    # Single bf16 cast + 1-px pad, then im2col for layer 1 (K order dy,dx,cin).
    # For the small Cin this module sees, the 9x blow-up is negligible and it
    # keeps the kernel free of unaligned lane concatenations.
    x_pad = jnp.pad(x_nhwc.astype(jnp.bfloat16), ((0, 0), (1, 1), (1, 1), (0, 0)))
    patches = jnp.concatenate(
        [x_pad[:, dy:dy + H, dx:dx + W, :]
         for dy in range(3) for dx in range(3)], axis=-1)     # (B,H,W,9*Cin)

    # Conv1 weights folded to (9*Cin, Cmid_p) to match the patch K order.
    w1f = jnp.pad(w1, ((0, 0), (0, 0), (0, 0), (0, Cmid_p - Cmid)))
    w1f = w1f.reshape(9 * Cin, Cmid_p).astype(jnp.bfloat16)
    s1p = jnp.pad(scale1, (0, Cmid_p - Cmid)).reshape(1, 1, Cmid_p).astype(jnp.float32)
    b1p = jnp.pad(shift1, (0, Cmid_p - Cmid)).reshape(1, 1, Cmid_p).astype(jnp.float32)

    # Conv2 weights: pad both channel dims, one (dy,dx) tap per leading row.
    w2f = jnp.pad(w2, ((0, 0), (0, 0), (0, Cmid_p - Cmid), (0, Cout_p - Cout)))
    w2f = w2f.reshape(9, Cmid_p, Cout_p).astype(jnp.bfloat16)
    s2p = jnp.pad(scale2, (0, Cout_p - Cout)).reshape(1, 1, Cout_p).astype(jnp.float32)
    b2p = jnp.pad(shift2, (0, Cout_p - Cout)).reshape(1, 1, Cout_p).astype(jnp.float32)

    flops = 2 * B * H * W * 9 * (Cin * Cmid_p + Cmid_p * Cout_p)
    bytes_accessed = (patches.size * 2 + w1f.size * 2 + w2f.size * 2
                      + (s1p.size + b1p.size + s2p.size + b2p.size) * 4
                      + B * H * W * Cout_store * 4)

    # Explicit VMEM budget: double-buffered blocks + scratch + temporaries.
    vmem_need = (
        2 * H * W * 9 * Cin * 2                              # input block x2
        + 2 * (w1f.size + w2f.size) * 2                      # weights x2
        + 2 * (s1p.size + b1p.size + s2p.size + b2p.size) * 4
        + 2 * H * W * Cout_store * 4                         # output block x2
        + (H + 2) * (W + 2) * Cmid_p * 2                     # y1 scratch
        + 2 * H * W * Cmid_p * 4                             # layer-1 temps
        + 2 * H * W * Cout_p * 4)                            # layer-2 acc + epi
    vmem_limit = int(min(max(2 * vmem_need + (8 << 20), 16 << 20), 64 << 20))

    out = pl.pallas_call(
        _double_conv_kernel,
        out_shape=jax.ShapeDtypeStruct((B, H, W, Cout_store), jnp.float32),
        grid_spec=pltpu.PrefetchScalarGridSpec(
            num_scalar_prefetch=0,
            grid=(B,),
            in_specs=[
                pl.BlockSpec((pl.Squeezed(), H, W, 9 * Cin),
                             lambda b: (b, 0, 0, 0)),
                pl.BlockSpec((9 * Cin, Cmid_p), lambda b: (0, 0)),
                pl.BlockSpec((1, 1, Cmid_p), lambda b: (0, 0, 0)),
                pl.BlockSpec((1, 1, Cmid_p), lambda b: (0, 0, 0)),
                pl.BlockSpec((9, Cmid_p, Cout_p), lambda b: (0, 0, 0)),
                pl.BlockSpec((1, 1, Cout_p), lambda b: (0, 0, 0)),
                pl.BlockSpec((1, 1, Cout_p), lambda b: (0, 0, 0)),
            ],
            out_specs=pl.BlockSpec((pl.Squeezed(), H, W, Cout_store),
                                   lambda b: (b, 0, 0, 0)),
            scratch_shapes=[pltpu.VMEM((H + 2, W + 2, Cmid_p), jnp.bfloat16)],
        ),
        compiler_params=pltpu.CompilerParams(
            dimension_semantics=("parallel",),
            vmem_limit_bytes=vmem_limit),
        cost_estimate=pl.CostEstimate(
            flops=flops, transcendentals=0, bytes_accessed=bytes_accessed),
    )(patches, w1f, s1p, b1p, w2f, s2p, b2p)

    if Cout_store != Cout:
        out = out[..., :Cout]
    return out


# --------------------------------------------------------------------------
# double_conv parameters (deterministic, in-script) with folded eval-mode BN.
# --------------------------------------------------------------------------
def make_double_conv_params(key, in_ch, out_ch, eps=1e-5):
    ks = jax.random.split(key, 6)

    def conv_params(kw, kb, cin, cout):
        fan_in = cin * 9
        bound = 1.0 / jnp.sqrt(fan_in)
        w = jax.random.uniform(kw, (3, 3, cin, cout), jnp.float32,
                               -bound, bound)                 # HWIO
        b = jax.random.uniform(kb, (cout,), jnp.float32, -bound, bound)
        return w, b

    def bn_params(k, c):
        kg, kb, km, kv = jax.random.split(k, 4)
        gamma = 1.0 + 0.1 * jax.random.normal(kg, (c,), jnp.float32)
        beta = 0.1 * jax.random.normal(kb, (c,), jnp.float32)
        mean = 0.1 * jax.random.normal(km, (c,), jnp.float32)
        var = jnp.abs(1.0 + 0.1 * jax.random.normal(kv, (c,), jnp.float32))
        return gamma, beta, mean, var

    w1, b1 = conv_params(ks[0], ks[1], in_ch, out_ch)
    g1, be1, m1, v1 = bn_params(ks[2], out_ch)
    w2, b2 = conv_params(ks[3], ks[4], out_ch, out_ch)
    g2, be2, m2, v2 = bn_params(ks[5], out_ch)

    def fold(b, gamma, beta, mean, var):
        scale = gamma / jnp.sqrt(var + eps)
        shift = (b - mean) * scale + beta
        return scale, shift

    s1, sh1 = fold(b1, g1, be1, m1, v1)
    s2, sh2 = fold(b2, g2, be2, m2, v2)
    return dict(w1=w1, scale1=s1, shift1=sh1,
                w2=w2, scale2=s2, shift2=sh2,
                raw=dict(b1=b1, g1=g1, be1=be1, m1=m1, v1=v1,
                         b2=b2, g2=g2, be2=be2, m2=m2, v2=v2, eps=eps))


@jax.jit
def double_conv_forward(x_nchw, w1, scale1, shift1, w2, scale2, shift2):
    """PyTorch-compatible forward: NCHW f32 in, NCHW f32 out.

    The NCHW<->NHWC transposes sit at the module boundary only; in a full
    network keep everything NHWC (bf16) and drop them entirely."""
    x = jnp.transpose(x_nchw, (0, 2, 3, 1))                   # NCHW -> NHWC
    y = _double_conv_pallas(x, w1, scale1, shift1, w2, scale2, shift2)
    return jnp.transpose(y, (0, 3, 1, 2))                     # NHWC -> NCHW


# --------------------------------------------------------------------------
# Pure-JAX reference (f32) for correctness checking.
# --------------------------------------------------------------------------
def ref_double_conv(x_nchw, p):
    r, eps = p["raw"], p["raw"]["eps"]
    x = jnp.transpose(x_nchw, (0, 2, 3, 1))

    def block(x, w, b, g, be, m, v):
        y = lax.conv_general_dilated(
            x, w, (1, 1), "SAME",
            dimension_numbers=("NHWC", "HWIO", "NHWC")) + b
        y = (y - m) / jnp.sqrt(v + eps) * g + be
        return jnp.maximum(y, 0.0)

    y = block(x, p["w1"], r["b1"], r["g1"], r["be1"], r["m1"], r["v1"])
    y = block(y, p["w2"], r["b2"], r["g2"], r["be2"], r["m2"], r["v2"])
    return jnp.transpose(y, (0, 3, 1, 2))


if __name__ == "__main__":
    key = jax.random.PRNGKey(0)
    k_x, k_p = jax.random.split(key)

    B, IN_CH, OUT_CH, H, W = 2, 4, 8, 16, 16
    x = jax.random.normal(k_x, (B, IN_CH, H, W), jnp.float32)   # NCHW like PyTorch
    params = make_double_conv_params(k_p, IN_CH, OUT_CH)

    out = double_conv_forward(
        x, params["w1"], params["scale1"], params["shift1"],
        params["w2"], params["scale2"], params["shift2"])
    out = jax.block_until_ready(out)

    ref = jax.block_until_ready(ref_double_conv(x, params))
    assert out.shape == (B, OUT_CH, H, W), out.shape
    # bf16 MXU operands (f32 accumulation) => looser tolerance than pure f32.
    assert jnp.allclose(out, ref, rtol=3e-2, atol=3e-2), \
        float(jnp.max(jnp.abs(out - ref)))

    print("KERNEL_OK")
</pallas_src>

<mosaic_0001>
module attributes {stable_mosaic.version = 11 : i64} {
  func.func @_double_conv_kernel(%arg0: i32, %arg1: memref<1x16x16x36xbf16, #tpu.memory_space<vmem>>, %arg2: memref<36x128xbf16, #tpu.memory_space<vmem>>, %arg3: memref<1x1x128xf32, #tpu.memory_space<vmem>>, %arg4: memref<1x1x128xf32, #tpu.memory_space<vmem>>, %arg5: memref<9x128x128xbf16, #tpu.memory_space<vmem>>, %arg6: memref<1x1x128xf32, #tpu.memory_space<vmem>>, %arg7: memref<1x1x128xf32, #tpu.memory_space<vmem>>, %arg8: memref<1x16x16x8xf32, #tpu.memory_space<vmem>>, %arg9: memref<18x18x128xbf16, #tpu.memory_space<vmem>>) attributes {dimension_semantics = [#tpu.dimension_semantics<parallel>], iteration_bounds = array<i64: 2>, scalar_prefetch = 0 : i64, scratch_operands = 1 : i64, tpu.core_type = #tpu.core_type<tc>, window_params = [{transform_indices = @transform_0, window_bounds = array<i64: 1, 16, 16, 36>}, {pipeline_mode = #tpu.pipeline_mode<synchronous>, transform_indices = @transform_1, window_bounds = array<i64: 36, 128>}, {pipeline_mode = #tpu.pipeline_mode<synchronous>, transform_indices = @transform_2, window_bounds = array<i64: 1, 1, 128>}, {pipeline_mode = #tpu.pipeline_mode<synchronous>, transform_indices = @transform_3, window_bounds = array<i64: 1, 1, 128>}, {pipeline_mode = #tpu.pipeline_mode<synchronous>, transform_indices = @transform_4, window_bounds = array<i64: 9, 128, 128>}, {pipeline_mode = #tpu.pipeline_mode<synchronous>, transform_indices = @transform_5, window_bounds = array<i64: 1, 1, 128>}, {pipeline_mode = #tpu.pipeline_mode<synchronous>, transform_indices = @transform_6, window_bounds = array<i64: 1, 1, 128>}, {transform_indices = @transform_7, window_bounds = array<i64: 1, 16, 16, 8>}]} {
    %cst = arith.constant 0.000000e+00 : bf16
    %0 = vector.broadcast %cst : bf16 to vector<1x18x128xbf16>
    %c0 = arith.constant 0 : index
    %c0_0 = arith.constant 0 : index
    %c0_1 = arith.constant 0 : index
    %1 = vector.load %arg9[%c0, %c0_0, %c0_1] : memref<18x18x128xbf16, #tpu.memory_space<vmem>>, vector<1x18x128xbf16>
    tpu.vector_store %arg9[%c0, %c0_0, %c0_1], %0 {strides = array<i32>} : memref<18x18x128xbf16, #tpu.memory_space<vmem>>, vector<1x18x128xbf16>,
    %cst_2 = arith.constant 0.000000e+00 : bf16
    %2 = vector.broadcast %cst_2 : bf16 to vector<1x18x128xbf16>
    %c17 = arith.constant 17 : index
    %c0_3 = arith.constant 0 : index
    %c0_4 = arith.constant 0 : index
    %3 = vector.load %arg9[%c17, %c0_3, %c0_4] : memref<18x18x128xbf16, #tpu.memory_space<vmem>>, vector<1x18x128xbf16>
    tpu.vector_store %arg9[%c17, %c0_3, %c0_4], %2 {strides = array<i32>} : memref<18x18x128xbf16, #tpu.memory_space<vmem>>, vector<1x18x128xbf16>,
    %cst_5 = arith.constant 0.000000e+00 : bf16
    %4 = vector.broadcast %cst_5 : bf16 to vector<18x1x128xbf16>
    %c0_6 = arith.constant 0 : index
    %c0_7 = arith.constant 0 : index
    %c0_8 = arith.constant 0 : index
    %5 = vector.load %arg9[%c0_6, %c0_7, %c0_8] : memref<18x18x128xbf16, #tpu.memory_space<vmem>>, vector<18x1x128xbf16>
    tpu.vector_store %arg9[%c0_6, %c0_7, %c0_8], %4 {strides = array<i32>} : memref<18x18x128xbf16, #tpu.memory_space<vmem>>, vector<18x1x128xbf16>,
    %cst_9 = arith.constant 0.000000e+00 : bf16
    %6 = vector.broadcast %cst_9 : bf16 to vector<18x1x128xbf16>
    %c0_10 = arith.constant 0 : index
    %c17_11 = arith.constant 17 : index
    %c0_12 = arith.constant 0 : index
    %7 = vector.load %arg9[%c0_10, %c17_11, %c0_12] : memref<18x18x128xbf16, #tpu.memory_space<vmem>>, vector<18x1x128xbf16>
    tpu.vector_store %arg9[%c0_10, %c17_11, %c0_12], %6 {strides = array<i32>} : memref<18x18x128xbf16, #tpu.memory_space<vmem>>, vector<18x1x128xbf16>,
    %c0_13 = arith.constant 0 : index
    %c0_14 = arith.constant 0 : index
    %c0_15 = arith.constant 0 : index
    %c0_16 = arith.constant 0 : index
    %8 = vector.load %arg1[%c0_13, %c0_14, %c0_15, %c0_16] : memref<1x16x16x36xbf16, #tpu.memory_space<vmem>>, vector<1x16x16x36xbf16>
    %9 = vector.shape_cast %8 : vector<1x16x16x36xbf16> to vector<16x16x36xbf16>
    %c0_17 = arith.constant 0 : index
    %c0_18 = arith.constant 0 : index
    %10 = vector.load %arg2[%c0_17, %c0_18] : memref<36x128xbf16, #tpu.memory_space<vmem>>, vector<36x128xbf16>
    %cst_19 = arith.constant dense<0.000000e+00> : vector<16x16x128xf32>
    %11 = tpu.matmul %9, %10, %cst_19 {dimension_numbers = #tpu.dot_dimension_numbers<[2], [0], [0, 1], [1], [0, 0, 0, 1, 1, 1], [], []>} : vector<16x16x36xbf16>, vector<36x128xbf16>, vector<16x16x128xf32> -> vector<16x16x128xf32>
    %c0_20 = arith.constant 0 : index
    %c0_21 = arith.constant 0 : index
    %c0_22 = arith.constant 0 : index
    %12 = vector.load %arg3[%c0_20, %c0_21, %c0_22] : memref<1x1x128xf32, #tpu.memory_space<vmem>>, vector<1x1x128xf32>
    %13 = vector.broadcast %12 : vector<1x1x128xf32> to vector<16x16x128xf32>
    %14 = arith.mulf %11, %13 : vector<16x16x128xf32>
    %c0_23 = arith.constant 0 : index
    %c0_24 = arith.constant 0 : index
    %c0_25 = arith.constant 0 : index
    %15 = vector.load %arg4[%c0_23, %c0_24, %c0_25] : memref<1x1x128xf32, #tpu.memory_space<vmem>>, vector<1x1x128xf32>
    %16 = vector.broadcast %15 : vector<1x1x128xf32> to vector<16x16x128xf32>
    %17 = arith.addf %14, %16 : vector<16x16x128xf32>
    %cst_26 = arith.constant 0.000000e+00 : f32
    %18 = vector.broadcast %cst_26 : f32 to vector<16x16x128xf32>
    %19 = arith.maximumf %17, %18 : vector<16x16x128xf32>
    %20 = arith.truncf %19 : vector<16x16x128xf32> to vector<16x16x128xbf16>
    %c1 = arith.constant 1 : index
    %c1_27 = arith.constant 1 : index
    %c0_28 = arith.constant 0 : index
    %21 = vector.load %arg9[%c1, %c1_27, %c0_28] : memref<18x18x128xbf16, #tpu.memory_space<vmem>>, vector<16x16x128xbf16>
    tpu.vector_store %arg9[%c1, %c1_27, %c0_28], %20 {strides = array<i32>} : memref<18x18x128xbf16, #tpu.memory_space<vmem>>, vector<16x16x128xbf16>,
    %cst_29 = arith.constant 0.000000e+00 : f32
    %22 = vector.broadcast %cst_29 : f32 to vector<16x16x128xf32>
    %c0_30 = arith.constant 0 : index
    %c0_31 = arith.constant 0 : index
    %c0_32 = arith.constant 0 : index
    %23 = vector.load %arg9[%c0_30, %c0_31, %c0_32] : memref<18x18x128xbf16, #tpu.memory_space<vmem>>, vector<16x16x128xbf16>
    %c0_33 = arith.constant 0 : index
    %c0_34 = arith.constant 0 : index
    %c0_35 = arith.constant 0 : index
    %24 = vector.load %arg5[%c0_33, %c0_34, %c0_35] : memref<9x128x128xbf16, #tpu.memory_space<vmem>>, vector<1x128x128xbf16>
    %25 = vector.shape_cast %24 : vector<1x128x128xbf16> to vector<128x128xbf16>
    %cst_36 = arith.constant dense<0.000000e+00> : vector<16x16x128xf32>
    %26 = tpu.matmul %23, %25, %cst_36 {dimension_numbers = #tpu.dot_dimension_numbers<[2], [0], [0, 1], [1], [0, 0, 0, 1, 1, 1], [], []>} : vector<16x16x128xbf16>, vector<128x128xbf16>, vector<16x16x128xf32> -> vector<16x16x128xf32>
    %27 = arith.addf %22, %26 : vector<16x16x128xf32>
    %c0_37 = arith.constant 0 : index
    %c1_38 = arith.constant 1 : index
    %c0_39 = arith.constant 0 : index
    %28 = vector.load %arg9[%c0_37, %c1_38, %c0_39] : memref<18x18x128xbf16, #tpu.memory_space<vmem>>, vector<16x16x128xbf16>
    %c1_40 = arith.constant 1 : index
    %c0_41 = arith.constant 0 : index
    %c0_42 = arith.constant 0 : index
    %29 = vector.load %arg5[%c1_40, %c0_41, %c0_42] : memref<9x128x128xbf16, #tpu.memory_space<vmem>>, vector<1x128x128xbf16>
    %30 = vector.shape_cast %29 : vector<1x128x128xbf16> to vector<128x128xbf16>
    %cst_43 = arith.constant dense<0.000000e+00> : vector<16x16x128xf32>
    %31 = tpu.matmul %28, %30, %cst_43 {dimension_numbers = #tpu.dot_dimension_numbers<[2], [0], [0, 1], [1], [0, 0, 0, 1, 1, 1], [], []>} : vector<16x16x128xbf16>, vector<128x128xbf16>, vector<16x16x128xf32> -> vector<16x16x128xf32>
    %32 = arith.addf %27, %31 : vector<16x16x128xf32>
    %c0_44 = arith.constant 0 : index
    %c2 = arith.constant 2 : index
    %c0_45 = arith.constant 0 : index
    %33 = vector.load %arg9[%c0_44, %c2, %c0_45] : memref<18x18x128xbf16, #tpu.memory_space<vmem>>, vector<16x16x128xbf16>
    %c2_46 = arith.constant 2 : index
    %c0_47 = arith.constant 0 : index
    %c0_48 = arith.constant 0 : index
    %34 = vector.load %arg5[%c2_46, %c0_47, %c0_48] : memref<9x128x128xbf16, #tpu.memory_space<vmem>>, vector<1x128x128xbf16>
    %35 = vector.shape_cast %34 : vector<1x128x128xbf16> to vector<128x128xbf16>
    %cst_49 = arith.constant dense<0.000000e+00> : vector<16x16x128xf32>
    %36 = tpu.matmul %33, %35, %cst_49 {dimension_numbers = #tpu.dot_dimension_numbers<[2], [0], [0, 1], [1], [0, 0, 0, 1, 1, 1], [], []>} : vector<16x16x128xbf16>, vector<128x128xbf16>, vector<16x16x128xf32> -> vector<16x16x128xf32>
    %37 = arith.addf %32, %36 : vector<16x16x128xf32>
    %c1_50 = arith.constant 1 : index
    %c0_51 = arith.constant 0 : index
    %c0_52 = arith.constant 0 : index
    %38 = vector.load %arg9[%c1_50, %c0_51, %c0_52] : memref<18x18x128xbf16, #tpu.memory_space<vmem>>, vector<16x16x128xbf16>
    %c3 = arith.constant 3 : index
    %c0_53 = arith.constant 0 : index
    %c0_54 = arith.constant 0 : index
    %39 = vector.load %arg5[%c3, %c0_53, %c0_54] : memref<9x128x128xbf16, #tpu.memory_space<vmem>>, vector<1x128x128xbf16>
    %40 = vector.shape_cast %39 : vector<1x128x128xbf16> to vector<128x128xbf16>
    %cst_55 = arith.constant dense<0.000000e+00> : vector<16x16x128xf32>
    %41 = tpu.matmul %38, %40, %cst_55 {dimension_numbers = #tpu.dot_dimension_numbers<[2], [0], [0, 1], [1], [0, 0, 0, 1, 1, 1], [], []>} : vector<16x16x128xbf16>, vector<128x128xbf16>, vector<16x16x128xf32> -> vector<16x16x128xf32>
    %42 = arith.addf %37, %41 : vector<16x16x128xf32>
    %c1_56 = arith.constant 1 : index
    %c1_57 = arith.constant 1 : index
    %c0_58 = arith.constant 0 : index
    %43 = vector.load %arg9[%c1_56, %c1_57, %c0_58] : memref<18x18x128xbf16, #tpu.memory_space<vmem>>, vector<16x16x128xbf16>
    %c4 = arith.constant 4 : index
    %c0_59 = arith.constant 0 : index
    %c0_60 = arith.constant 0 : index
    %44 = vector.load %arg5[%c4, %c0_59, %c0_60] : memref<9x128x128xbf16, #tpu.memory_space<vmem>>, vector<1x128x128xbf16>
    %45 = vector.shape_cast %44 : vector<1x128x128xbf16> to vector<128x128xbf16>
    %cst_61 = arith.constant dense<0.000000e+00> : vector<16x16x128xf32>
    %46 = tpu.matmul %43, %45, %cst_61 {dimension_numbers = #tpu.dot_dimension_numbers<[2], [0], [0, 1], [1], [0, 0, 0, 1, 1, 1], [], []>} : vector<16x16x128xbf16>, vector<128x128xbf16>, vector<16x16x128xf32> -> vector<16x16x128xf32>
    %47 = arith.addf %42, %46 : vector<16x16x128xf32>
    %c1_62 = arith.constant 1 : index
    %c2_63 = arith.constant 2 : index
    %c0_64 = arith.constant 0 : index
    %48 = vector.load %arg9[%c1_62, %c2_63, %c0_64] : memref<18x18x128xbf16, #tpu.memory_space<vmem>>, vector<16x16x128xbf16>
    %c5 = arith.constant 5 : index
    %c0_65 = arith.constant 0 : index
    %c0_66 = arith.constant 0 : index
    %49 = vector.load %arg5[%c5, %c0_65, %c0_66] : memref<9x128x128xbf16, #tpu.memory_space<vmem>>, vector<1x128x128xbf16>
    %50 = vector.shape_cast %49 : vector<1x128x128xbf16> to vector<128x128xbf16>
    %cst_67 = arith.constant dense<0.000000e+00> : vector<16x16x128xf32>
    %51 = tpu.matmul %48, %50, %cst_67 {dimension_numbers = #tpu.dot_dimension_numbers<[2], [0], [0, 1], [1], [0, 0, 0, 1, 1, 1], [], []>} : vector<16x16x128xbf16>, vector<128x128xbf16>, vector<16x16x128xf32> -> vector<16x16x128xf32>
    %52 = arith.addf %47, %51 : vector<16x16x128xf32>
    %c2_68 = arith.constant 2 : index
    %c0_69 = arith.constant 0 : index
    %c0_70 = arith.constant 0 : index
    %53 = vector.load %arg9[%c2_68, %c0_69, %c0_70] : memref<18x18x128xbf16, #tpu.memory_space<vmem>>, vector<16x16x128xbf16>
    %c6 = arith.constant 6 : index
    %c0_71 = arith.constant 0 : index
    %c0_72 = arith.constant 0 : index
    %54 = vector.load %arg5[%c6, %c0_71, %c0_72] : memref<9x128x128xbf16, #tpu.memory_space<vmem>>, vector<1x128x128xbf16>
    %55 = vector.shape_cast %54 : vector<1x128x128xbf16> to vector<128x128xbf16>
    %cst_73 = arith.constant dense<0.000000e+00> : vector<16x16x128xf32>
    %56 = tpu.matmul %53, %55, %cst_73 {dimension_numbers = #tpu.dot_dimension_numbers<[2], [0], [0, 1], [1], [0, 0, 0, 1, 1, 1], [], []>} : vector<16x16x128xbf16>, vector<128x128xbf16>, vector<16x16x128xf32> -> vector<16x16x128xf32>
    %57 = arith.addf %52, %56 : vector<16x16x128xf32>
    %c2_74 = arith.constant 2 : index
    %c1_75 = arith.constant 1 : index
    %c0_76 = arith.constant 0 : index
    %58 = vector.load %arg9[%c2_74, %c1_75, %c0_76] : memref<18x18x128xbf16, #tpu.memory_space<vmem>>, vector<16x16x128xbf16>
    %c7 = arith.constant 7 : index
    %c0_77 = arith.constant 0 : index
    %c0_78 = arith.constant 0 : index
    %59 = vector.load %arg5[%c7, %c0_77, %c0_78] : memref<9x128x128xbf16, #tpu.memory_space<vmem>>, vector<1x128x128xbf16>
    %60 = vector.shape_cast %59 : vector<1x128x128xbf16> to vector<128x128xbf16>
    %cst_79 = arith.constant dense<0.000000e+00> : vector<16x16x128xf32>
    %61 = tpu.matmul %58, %60, %cst_79 {dimension_numbers = #tpu.dot_dimension_numbers<[2], [0], [0, 1], [1], [0, 0, 0, 1, 1, 1], [], []>} : vector<16x16x128xbf16>, vector<128x128xbf16>, vector<16x16x128xf32> -> vector<16x16x128xf32>
    %62 = arith.addf %57, %61 : vector<16x16x128xf32>
    %c2_80 = arith.constant 2 : index
    %c2_81 = arith.constant 2 : index
    %c0_82 = arith.constant 0 : index
    %63 = vector.load %arg9[%c2_80, %c2_81, %c0_82] : memref<18x18x128xbf16, #tpu.memory_space<vmem>>, vector<16x16x128xbf16>
    %c8 = arith.constant 8 : index
    %c0_83 = arith.constant 0 : index
    %c0_84 = arith.constant 0 : index
    %64 = vector.load %arg5[%c8, %c0_83, %c0_84] : memref<9x128x128xbf16, #tpu.memory_space<vmem>>, vector<1x128x128xbf16>
    %65 = vector.shape_cast %64 : vector<1x128x128xbf16> to vector<128x128xbf16>
    %cst_85 = arith.constant dense<0.000000e+00> : vector<16x16x128xf32>
    %66 = tpu.matmul %63, %65, %cst_85 {dimension_numbers = #tpu.dot_dimension_numbers<[2], [0], [0, 1], [1], [0, 0, 0, 1, 1, 1], [], []>} : vector<16x16x128xbf16>, vector<128x128xbf16>, vector<16x16x128xf32> -> vector<16x16x128xf32>
    %67 = arith.addf %62, %66 : vector<16x16x128xf32>
    %c0_86 = arith.constant 0 : index
    %c0_87 = arith.constant 0 : index
    %c0_88 = arith.constant 0 : index
    %68 = vector.load %arg6[%c0_86, %c0_87, %c0_88] : memref<1x1x128xf32, #tpu.memory_space<vmem>>, vector<1x1x128xf32>
    %69 = vector.broadcast %68 : vector<1x1x128xf32> to vector<16x16x128xf32>
    %70 = arith.mulf %67, %69 : vector<16x16x128xf32>
    %c0_89 = arith.constant 0 : index
    %c0_90 = arith.constant 0 : index
    %c0_91 = arith.constant 0 : index
    %71 = vector.load %arg7[%c0_89, %c0_90, %c0_91] : memref<1x1x128xf32, #tpu.memory_space<vmem>>, vector<1x1x128xf32>
    %72 = vector.broadcast %71 : vector<1x1x128xf32> to vector<16x16x128xf32>
    %73 = arith.addf %70, %72 : vector<16x16x128xf32>
    %cst_92 = arith.constant 0.000000e+00 : f32
    %74 = vector.broadcast %cst_92 : f32 to vector<16x16x128xf32>
    %75 = arith.maximumf %73, %74 : vector<16x16x128xf32>
    %76 = vector.extract_strided_slice %75 {offsets = [0, 0, 0], sizes = [16, 16, 8], strides = [1, 1, 1]} : vector<16x16x128xf32> to vector<16x16x8xf32>
    %c0_93 = arith.constant 0 : index
    %c0_94 = arith.constant 0 : index
    %c0_95 = arith.constant 0 : index
    %c0_96 = arith.constant 0 : index
    %77 = vector.load %arg8[%c0_93, %c0_94, %c0_95, %c0_96] : memref<1x16x16x8xf32, #tpu.memory_space<vmem>>, vector<1x16x16x8xf32>
    %78 = vector.shape_cast %77 : vector<1x16x16x8xf32> to vector<16x16x8xf32>
    %79 = vector.shape_cast %76 : vector<16x16x8xf32> to vector<1x16x16x8xf32>
    tpu.vector_store %arg8[%c0_93, %c0_94, %c0_95, %c0_96], %79 {strides = array<i32>} : memref<1x16x16x8xf32, #tpu.memory_space<vmem>>, vector<1x16x16x8xf32>,
    return
  }
  func.func @transform_0(%arg0: i32) -> (i32, i32, i32, i32) {
    %c0_i32 = arith.constant 0 : i32
    %c0_i32_0 = arith.constant 0 : i32
    %c0_i32_1 = arith.constant 0 : i32
    %c0_i32_2 = arith.constant 0 : i32
    return %arg0, %c0_i32, %c0_i32_0, %c0_i32_1 : i32, i32, i32, i32
  }
  func.func @transform_1(%arg0: i32) -> (i32, i32) {
    %c0_i32 = arith.constant 0 : i32
    %c0_i32_0 = arith.constant 0 : i32
    %c0_i32_1 = arith.constant 0 : i32
    return %c0_i32, %c0_i32_0 : i32, i32
  }
  func.func @transform_2(%arg0: i32) -> (i32, i32, i32) {
    %c0_i32 = arith.constant 0 : i32
    %c0_i32_0 = arith.constant 0 : i32
    %c0_i32_1 = arith.constant 0 : i32
    %c0_i32_2 = arith.constant 0 : i32
    return %c0_i32, %c0_i32_0, %c0_i32_1 : i32, i32, i32
  }
  func.func @transform_3(%arg0: i32) -> (i32, i32, i32) {
    %c0_i32 = arith.constant 0 : i32
    %c0_i32_0 = arith.constant 0 : i32
    %c0_i32_1 = arith.constant 0 : i32
    %c0_i32_2 = arith.constant 0 : i32
    return %c0_i32, %c0_i32_0, %c0_i32_1 : i32, i32, i32
  }
  func.func @transform_4(%arg0: i32) -> (i32, i32, i32) {
    %c0_i32 = arith.constant 0 : i32
    %c0_i32_0 = arith.constant 0 : i32
    %c0_i32_1 = arith.constant 0 : i32
    %c0_i32_2 = arith.constant 0 : i32
    return %c0_i32, %c0_i32_0, %c0_i32_1 : i32, i32, i32
  }
  func.func @transform_5(%arg0: i32) -> (i32, i32, i32) {
    %c0_i32 = arith.constant 0 : i32
    %c0_i32_0 = arith.constant 0 : i32
    %c0_i32_1 = arith.constant 0 : i32
    %c0_i32_2 = arith.constant 0 : i32
    return %c0_i32, %c0_i32_0, %c0_i32_1 : i32, i32, i32
  }
  func.func @transform_6(%arg0: i32) -> (i32, i32, i32) {
    %c0_i32 = arith.constant 0 : i32
    %c0_i32_0 = arith.constant 0 : i32
    %c0_i32_1 = arith.constant 0 : i32
    %c0_i32_2 = arith.constant 0 : i32
    return %c0_i32, %c0_i32_0, %c0_i32_1 : i32, i32, i32
  }
  func.func @transform_7(%arg0: i32) -> (i32, i32, i32, i32) {
    %c0_i32 = arith.constant 0 : i32
    %c0_i32_0 = arith.constant 0 : i32
    %c0_i32_1 = arith.constant 0 : i32
    %c0_i32_2 = arith.constant 0 : i32
    return %arg0, %c0_i32, %c0_i32_0, %c0_i32_1 : i32, i32, i32, i32
  }
}

</mosaic_0001>

<llo_original>
// kernel: double_conv_forward.1
$region0: #{double_conv_forward.1}
  #allocation0 [shape = 'u32[]', space=smem, size = 0x4, offset = 0x4, fixed_abs, tag = 'smem constant byte address 0x4 - core index']
  #allocation1 [shape = 'u32[72,128]{1,0:T(1,128)}', space=vmem, size = 0x9000, scoped, tag = 'internal scratch']
  #allocation2 [shape = 'bf16[18,18,128]{2,1,0:T(8,128)(2,1)}', space=vmem, size = 0x1b000, scoped, tag = 'scratch operand']
  %s0 = inlined_call_operand.vmem [shape: bf16[2,16,16,36], index: 0, kind: input, shape index: {}]
  %s1 = inlined_call_operand.vmem [shape: bf16[36,128], index: 1, kind: input, shape index: {}]
  %s2 = inlined_call_operand.vmem [shape: f32[1,1,128], index: 2, kind: input, shape index: {}]
  %s3 = inlined_call_operand.vmem [shape: f32[1,1,128], index: 3, kind: input, shape index: {}]
  %s4 = inlined_call_operand.vmem [shape: bf16[9,128,128], index: 4, kind: input, shape index: {}]
  %s5 = inlined_call_operand.vmem [shape: f32[1,1,128], index: 5, kind: input, shape index: {}]
  %s6 = inlined_call_operand.vmem [shape: f32[1,1,128], index: 6, kind: input, shape index: {}]
  %s7 = inlined_call_operand.vmem [shape: f32[2,16,16,8], index: 7, kind: output, shape index: {}]
  %s8 = sld [smem:[#allocation0]]
  $region61: #{double_conv_forward.1} parent=0
    _
  %s10 = ssub.s32 1, %s8
  %s11 = scalar_select 0, %s10, %s8
  loop: start=0, step=1, limit=4
  $region2: #{double_conv_forward.1} parent=0 // loop_pre_header
    _
  $region3: #{double_conv_forward.1} parent=0 // loop_header
    %s13 = sphi 0, %s17
    %p14 = scmp.ge.s32.totalorder %s13, 4
    %s23 = sphi 0, %s25
    %s26 = sphi 0, %s23
    %s27 = sphi 0, %s26
    %s43 = sphi 0, %s27
    %s47 = sphi 0, %s47
    %s49 = sphi 0, %s47
    %s50 = sphi 0, %s49
    %s64 = sphi 0, %s50
    %s68 = sphi 0, %s68
    %s70 = sphi 0, %s68
    %s71 = sphi 0, %s70
    %s85 = sphi 0, %s71
    %s89 = sphi 0, %s89
    %s91 = sphi 0, %s89
    %s92 = sphi 0, %s91
    %s106 = sphi 0, %s92
    %s110 = sphi 0, %s110
    %s112 = sphi 0, %s110
    %s113 = sphi 0, %s112
    %s127 = sphi 0, %s113
    %s131 = sphi 0, %s131
    %s133 = sphi 0, %s131
    %s134 = sphi 0, %s133
    %s148 = sphi 0, %s134
    %s152 = sphi 0, %s152
    %s154 = sphi 0, %s152
    %s155 = sphi 0, %s154
    %s169 = sphi 0, %s155
    %s175 = sphi 0, %s177
    %s178 = sphi 0, %s175
    %s179 = sphi 0, %s178
    %s195 = sphi 0, %s179
  $region4: #{double_conv_forward.1} parent=0 // loop_header_branch
    %16 = sbr.rel (%p14) target = $region8
  $region5: #{double_conv_forward.1} parent=0 // loop_body
    %s18 = ssub.s32 %s13, 1
    %s19 = ssub.s32 %s13, 2
    %s20 = sadd.s32 %s13, 1
    %s21 = ssub.s32 %s13, %s20
    %p22 = scmp.eq.s32.totalorder %s21, 0
    %s24 = sadd.s32 %s23, 1
    %s25 = scalar_select %p22, %s23, %s24
    %p28 = pneg %p22
    %p29 = scmp.eq.s32.totalorder %s13, 1
    %p30 = por %p28, %p29
    %p31 = scmp.ne.s32.totalorder %s23, %s26
    %p32 = scmp.eq.s32.totalorder %s13, 0
    %p33 = por %p31, %p32
    %p34 = scmp.ne.s32.totalorder %s23, %s26
    %p35 = scmp.eq.s32.totalorder %s18, 1
    %p36 = por %p34, %p35
    %p37 = scmp.ne.s32.totalorder %s26, %s27
    %p38 = scmp.eq.s32.totalorder %s18, 0
    %p39 = por %p37, %p38
    %p40 = scmp.ne.s32.totalorder %s26, %s27
    %p41 = scmp.eq.s32.totalorder %s19, 1
    %p42 = por %p40, %p41
    %p44 = scmp.ne.s32.totalorder %s27, %s43
    %p45 = scmp.eq.s32.totalorder %s19, 0
    %p46 = por %p44, %p45
    %s48 = sadd.s32 %s47, 1
    %p51 = scmp.eq.s32.totalorder %s13, 1
    %p52 = scmp.ne.s32.totalorder %s47, %s49
    %p53 = scmp.eq.s32.totalorder %s13, 0
    %p54 = por %p52, %p53
    %p55 = scmp.ne.s32.totalorder %s47, %s49
    %p56 = scmp.eq.s32.totalorder %s18, 1
    %p57 = por %p55, %p56
    %p58 = scmp.ne.s32.totalorder %s49, %s50
    %p59 = scmp.eq.s32.totalorder %s18, 0
    %p60 = por %p58, %p59
    %p61 = scmp.ne.s32.totalorder %s49, %s50
    %p62 = scmp.eq.s32.totalorder %s19, 1
    %p63 = por %p61, %p62
    %p65 = scmp.ne.s32.totalorder %s50, %s64
    %p66 = scmp.eq.s32.totalorder %s19, 0
    %p67 = por %p65, %p66
    %s69 = sadd.s32 %s68, 1
    %p72 = scmp.eq.s32.totalorder %s13, 1
    %p73 = scmp.ne.s32.totalorder %s68, %s70
    %p74 = scmp.eq.s32.totalorder %s13, 0
    %p75 = por %p73, %p74
    %p76 = scmp.ne.s32.totalorder %s68, %s70
    %p77 = scmp.eq.s32.totalorder %s18, 1
    %p78 = por %p76, %p77
    %p79 = scmp.ne.s32.totalorder %s70, %s71
    %p80 = scmp.eq.s32.totalorder %s18, 0
    %p81 = por %p79, %p80
    %p82 = scmp.ne.s32.totalorder %s70, %s71
    %p83 = scmp.eq.s32.totalorder %s19, 1
    %p84 = por %p82, %p83
    %p86 = scmp.ne.s32.totalorder %s71, %s85
    %p87 = scmp.eq.s32.totalorder %s19, 0
    %p88 = por %p86, %p87
    %s90 = sadd.s32 %s89, 1
    %p93 = scmp.eq.s32.totalorder %s13, 1
    %p94 = scmp.ne.s32.totalorder %s89, %s91
    %p95 = scmp.eq.s32.totalorder %s13, 0
    %p96 = por %p94, %p95
    %p97 = scmp.ne.s32.totalorder %s89, %s91
    %p98 = scmp.eq.s32.totalorder %s18, 1
    %p99 = por %p97, %p98
    %p100 = scmp.ne.s32.totalorder %s91, %s92
    %p101 = scmp.eq.s32.totalorder %s18, 0
    %p102 = por %p100, %p101
    %p103 = scmp.ne.s32.totalorder %s91, %s92
    %p104 = scmp.eq.s32.totalorder %s19, 1
    %p105 = por %p103, %p104
    %p107 = scmp.ne.s32.totalorder %s92, %s106
    %p108 = scmp.eq.s32.totalorder %s19, 0
    %p109 = por %p107, %p108
    %s111 = sadd.s32 %s110, 1
    %p114 = scmp.eq.s32.totalorder %s13, 1
    %p115 = scmp.ne.s32.totalorder %s110, %s112
    %p116 = scmp.eq.s32.totalorder %s13, 0
    %p117 = por %p115, %p116
    %p118 = scmp.ne.s32.totalorder %s110, %s112
    %p119 = scmp.eq.s32.totalorder %s18, 1
    %p120 = por %p118, %p119
    %p121 = scmp.ne.s32.totalorder %s112, %s113
    %p122 = scmp.eq.s32.totalorder %s18, 0
    %p123 = por %p121, %p122
    %p124 = scmp.ne.s32.totalorder %s112, %s113
    %p125 = scmp.eq.s32.totalorder %s19, 1
    %p126 = por %p124, %p125
    %p128 = scmp.ne.s32.totalorder %s113, %s127
    %p129 = scmp.eq.s32.totalorder %s19, 0
    %p130 = por %p128, %p129
    %s132 = sadd.s32 %s131, 1
    %p135 = scmp.eq.s32.totalorder %s13, 1
    %p136 = scmp.ne.s32.totalorder %s131, %s133
    %p137 = scmp.eq.s32.totalorder %s13, 0
    %p138 = por %p136, %p137
    %p139 = scmp.ne.s32.totalorder %s131, %s133
    %p140 = scmp.eq.s32.totalorder %s18, 1
    %p141 = por %p139, %p140
    %p142 = scmp.ne.s32.totalorder %s133, %s134
    %p143 = scmp.eq.s32.totalorder %s18, 0
    %p144 = por %p142, %p143
    %p145 = scmp.ne.s32.totalorder %s133, %s134
    %p146 = scmp.eq.s32.totalorder %s19, 1
    %p147 = por %p145, %p146
    %p149 = scmp.ne.s32.totalorder %s134, %s148
    %p150 = scmp.eq.s32.totalorder %s19, 0
    %p151 = por %p149, %p150
    %s153 = sadd.s32 %s152, 1
    %p156 = scmp.eq.s32.totalorder %s13, 1
    %p157 = scmp.ne.s32.totalorder %s152, %s154
    %p158 = scmp.eq.s32.totalorder %s13, 0
    %p159 = por %p157, %p158
    %p160 = scmp.ne.s32.totalorder %s152, %s154
    %p161 = scmp.eq.s32.totalorder %s18, 1
    %p162 = por %p160, %p161
    %p163 = scmp.ne.s32.totalorder %s154, %s155
    %p164 = scmp.eq.s32.totalorder %s18, 0
    %p165 = por %p163, %p164
    %p166 = scmp.ne.s32.totalorder %s154, %s155
    %p167 = scmp.eq.s32.totalorder %s19, 1
    %p168 = por %p166, %p167
    %p170 = scmp.ne.s32.totalorder %s155, %s169
    %p171 = scmp.eq.s32.totalorder %s19, 0
    %p172 = por %p170, %p171
    %s173 = ssub.s32 %s13, %s20
    %p174 = scmp.eq.s32.totalorder %s173, 0
    %s176 = sadd.s32 %s175, 1
    %s177 = scalar_select %p174, %s175, %s176
    %p180 = pneg %p174
    %p181 = scmp.eq.s32.totalorder %s13, 1
    %p182 = por %p180, %p181
    %p183 = scmp.ne.s32.totalorder %s175, %s178
    %p184 = scmp.eq.s32.totalorder %s13, 0
    %p185 = por %p183, %p184
    %p186 = scmp.ne.s32.totalorder %s175, %s178
    %p187 = scmp.eq.s32.totalorder %s18, 1
    %p188 = por %p186, %p187
    %p189 = scmp.ne.s32.totalorder %s178, %s179
    %p190 = scmp.eq.s32.totalorder %s18, 0
    %p191 = por %p189, %p190
    %p192 = scmp.ne.s32.totalorder %s178, %s179
    %p193 = scmp.eq.s32.totalorder %s19, 1
    %p194 = por %p192, %p193
    %p196 = scmp.ne.s32.totalorder %s179, %s195
    %p197 = scmp.eq.s32.totalorder %s19, 0
    %p198 = por %p196, %p197
    %p199 = scmp.le.s32.totalorder 1, %s13
    %p200 = scmp.lt.s32.totalorder %s13, 3
    %p201 = pnand %p199, %p200
    %p202 = pneg %p201
    // Predicated region
    $region9: #{double_conv_forward.1} parent=5 // pred_check
      _
    $region10: #{double_conv_forward.1} parent=5 // pred_check_branch
      %204 = sbr.rel (%p201) target = $region12
    $region11: #{double_conv_forward.1} parent=5 // pred_region
      %s205 = ssub.s32 %s13, 1
      // Predicated region
      $region13: #{double_conv_forward.1} parent=11 // pred_check
        %p206 = pneg %p60
      $region14: #{double_conv_forward.1} parent=11 // pred_check_branch
        %208 = sbr.rel (%p206) target = $region16
      $region15: #{double_conv_forward.1} parent=11 // pred_region
        _
      $region16: #{double_conv_forward.1} parent=11 // pred_fallthru
        _
      // Predicated region
      $region17: #{double_conv_forward.1} parent=11 // pred_check
        %p209 = pneg %p81
      $region18: #{double_conv_forward.1} parent=11 // pred_check_branch
        %211 = sbr.rel (%p209) target = $region20
      $region19: #{double_conv_forward.1} parent=11 // pred_region
        _
      $region20: #{double_conv_forward.1} parent=11 // pred_fallthru
        _
      // Predicated region
      $region21: #{double_conv_forward.1} parent=11 // pred_check
        %p212 = pneg %p102
      $region22: #{double_conv_forward.1} parent=11 // pred_check_branch
        %214 = sbr.rel (%p212) target = $region24
      $region23: #{double_conv_forward.1} parent=11 // pred_region
        _
      $region24: #{double_conv_forward.1} parent=11 // pred_fallthru
        _
      // Predicated region
      $region25: #{double_conv_forward.1} parent=11 // pred_check
        %p215 = pneg %p123
      $region26: #{double_conv_forward.1} parent=11 // pred_check_branch
        %217 = sbr.rel (%p215) target = $region28
      $region27: #{double_conv_forward.1} parent=11 // pred_region
        _
      $region28: #{double_conv_forward.1} parent=11 // pred_fallthru
        _
      // Predicated region
      $region29: #{double_conv_forward.1} parent=11 // pred_check
        %p218 = pneg %p144
      $region30: #{double_conv_forward.1} parent=11 // pred_check_branch
        %220 = sbr.rel (%p218) target = $region32
      $region31: #{double_conv_forward.1} parent=11 // pred_region
        _
      $region32: #{double_conv_forward.1} parent=11 // pred_fallthru
        _
      // Predicated region
      $region33: #{double_conv_forward.1} parent=11 // pred_check
        %p221 = pneg %p165
      $region34: #{double_conv_forward.1} parent=11 // pred_check_branch
        %223 = sbr.rel (%p221) target = $region36
      $region35: #{double_conv_forward.1} parent=11 // pred_region
        _
      $region36: #{double_conv_forward.1} parent=11 // pred_fallthru
        _
    $region12: #{double_conv_forward.1} parent=5 // pred_fallthru
      _
    %p224 = scmp.lt.s32.totalorder %s13, 2
    // Predicated region
    $region37: #{double_conv_forward.1} parent=5 // pred_check
      %p225 = pneg %p224
    $region38: #{double_conv_forward.1} parent=5 // pred_check_branch
      %227 = sbr.rel (%p225) target = $region40
    $region39: #{double_conv_forward.1} parent=5 // pred_region
      // Predicated region
      $region41: #{double_conv_forward.1} parent=39 // pred_check
        %p228 = pneg %p33
      $region42: #{double_conv_forward.1} parent=39 // pred_check_branch
        %230 = sbr.rel (%p228) target = $region44
      $region43: #{double_conv_forward.1} parent=39 // pred_region
        %p231 = scmp.lt.s32.totalorder %s13, 1
        %s232 = scalar_select %p231, %s13, 1
        %s233 = smul.addr %s232, 32
        %s234 = smul.addr %s233, 4
        %s235 = scalar_lea.vmem %s0, %s234
      $region44: #{double_conv_forward.1} parent=39 // pred_fallthru
        _
    $region40: #{double_conv_forward.1} parent=5 // pred_fallthru
      _
    %p236 = scmp.le.s32.totalorder 1, %s13
    %p237 = scmp.lt.s32.totalorder %s13, 3
    %p238 = pnand %p236, %p237
    %p239 = pneg %p238
    // Predicated region
    $region45: #{double_conv_forward.1} parent=5 // pred_check
      _
    $region46: #{double_conv_forward.1} parent=5 // pred_check_branch
      %241 = sbr.rel (%p238) target = $region48
    $region47: #{double_conv_forward.1} parent=5 // pred_region
      %s242 = ssub.s32 %s13, 1
      %p243 = scmp.lt.s32.totalorder %s18, 1
      %s244 = scalar_select %p243, %s18, 1
      %s245 = smul.addr %s244, 32
      %s246 = smul.addr %s245, 4
      %s247 = scalar_lea.vmem %s0, %s246
      %p248 = pneg %p39
      %p249 = pneg %p36
      %p250 = pneg %p60
      %p251 = pneg %p57
      %p252 = pneg %p81
      %p253 = pneg %p78
      %p254 = pneg %p102
      %p255 = pneg %p99
      %p256 = pneg %p123
      %p257 = pneg %p120
      %p258 = pneg %p144
      %p259 = pneg %p141
      %p260 = pneg %p165
      %p261 = pneg %p162
      %p262 = pneg %p191
      %p263 = pneg %p188
      %p264 = scmp.lt.s32.totalorder %s18, 1
      %s265 = scalar_select %p264, %s18, 1
      %s266 = smul.addr %s265, 32
      %s267 = smul.addr %s266, 8
      %s268 = scalar_lea.vmem %s7, %s267
      %p269 = scmp.lt.s32.totalorder %s18, 1
      %s270 = scalar_select %p269, %s18, 1
      %s271 = smul.addr %s270, 32
      %s272 = smul.addr %s271, 4
      %s273 = scalar_lea.vmem %s0, %s272
      %p274 = scmp.lt.s32.totalorder %s18, 1
      %s275 = scalar_select %p274, %s18, 1
      %s276 = smul.addr %s275, 32
      %s277 = smul.addr %s276, 8
      %s278 = scalar_lea.vmem %s7, %s277
      %280 = vst [vmem:[#allocation2] sm:$0xf] 0
      %281 = vst [vmem:[#allocation2 + $0x4] sm:$0xf] 0
      %282 = vst [vmem:[#allocation2 + $0x8] sm:$0x1] 0
      %s283 = scalar_lea.vmem [#allocation2], 204
      %284 = vst [vmem:[%s283] sm:$0xf] 0
      %285 = vst [vmem:[%s283 + $0x4] sm:$0xf] 0
      %286 = vst [vmem:[%s283 + $0x8] sm:$0x1] 0
      %vm287 = vcmask 1040384
      %vm288 = vsmask.f32 256
      %vm289 = vmand %vm287, %vm288
      %v290 = vld [vmem:[#allocation2] sm:$0x1]
      %v291 = vsel %vm289, 0, %v290
      %292 = vst [vmem:[#allocation2] sm:$0x1] %v291
      %v293 = vld [vmem:[#allocation2 + $0xc] sm:$0x1]
      %v294 = vsel %vm289, 0, %v293
      %295 = vst [vmem:[#allocation2 + $0xc] sm:$0x1] %v294
      %v296 = vld [vmem:[#allocation2 + $0x18] sm:$0x1]
      %v297 = vsel %vm289, 0, %v296
      %298 = vst [vmem:[#allocation2 + $0x18] sm:$0x1] %v297
      %v299 = vld [vmem:[#allocation2 + $0x24] sm:$0x1]
      %v300 = vsel %vm289, 0, %v299
      %301 = vst [vmem:[#allocation2 + $0x24] sm:$0x1] %v300
      %v302 = vld [vmem:[#allocation2 + $0x30] sm:$0x1]
      %v303 = vsel %vm289, 0, %v302
      %304 = vst [vmem:[#allocation2 + $0x30] sm:$0x1] %v303
      %v305 = vld [vmem:[#allocation2 + $0x3c] sm:$0x1]
      %v306 = vsel %vm289, 0, %v305
      %307 = vst [vmem:[#allocation2 + $0x3c] sm:$0x1] %v306
      %v308 = vld [vmem:[#allocation2 + $0x48] sm:$0x1]
      %v309 = vsel %vm289, 0, %v308
      %310 = vst [vmem:[#allocation2 + $0x48] sm:$0x1] %v309
      %v311 = vld [vmem:[#allocation2 + $0x54] sm:$0x1]
      %v312 = vsel %vm289, 0, %v311
      %313 = vst [vmem:[#allocation2 + $0x54] sm:$0x1] %v312
      %v314 = vld [vmem:[#allocation2 + $0x60] sm:$0x1]
      %v315 = vsel %vm289, 0, %v314
      %316 = vst [vmem:[#allocation2 + $0x60] sm:$0x1] %v315
      %v317 = vld [vmem:[#allocation2 + $0x6c] sm:$0x1]
      %v318 = vsel %vm289, 0, %v317
      %319 = vst [vmem:[#allocation2 + $0x6c] sm:$0x1] %v318
      %v320 = vld [vmem:[#allocation2 + $0x78] sm:$0x1]
      %v321 = vsel %vm289, 0, %v320
      %322 = vst [vmem:[#allocation2 + $0x78] sm:$0x1] %v321
      %v323 = vld [vmem:[#allocation2 + $0x84] sm:$0x1]
      %v324 = vsel %vm289, 0, %v323
      %325 = vst [vmem:[#allocation2 + $0x84] sm:$0x1] %v324
      %v326 = vld [vmem:[#allocation2 + $0x90] sm:$0x1]
      %v327 = vsel %vm289, 0, %v326
      %328 = vst [vmem:[#allocation2 + $0x90] sm:$0x1] %v327
      %v329 = vld [vmem:[#allocation2 + $0x9c] sm:$0x1]
      %v330 = vsel %vm289, 0, %v329
      %331 = vst [vmem:[#allocation2 + $0x9c] sm:$0x1] %v330
      %v332 = vld [vmem:[#allocation2 + $0xa8] sm:$0x1]
      %v333 = vsel %vm289, 0, %v332
      %334 = vst [vmem:[#allocation2 + $0xa8] sm:$0x1] %v333
      %v335 = vld [vmem:[#allocation2 + $0xb4] sm:$0x1]
      %v336 = vsel %vm289, 0, %v335
      %337 = vst [vmem:[#allocation2 + $0xb4] sm:$0x1] %v336
      %v338 = vld [vmem:[#allocation2 + $0xc0] sm:$0x1]
      %v339 = vsel %vm289, 0, %v338
      %340 = vst [vmem:[#allocation2 + $0xc0] sm:$0x1] %v339
      %v341 = vld [vmem:[#allocation2 + $0xcc] sm:$0x1]
      %v342 = vsel %vm289, 0, %v341
      %343 = vst [vmem:[#allocation2 + $0xcc] sm:$0x1] %v342
      %vm344 = vsmask.f32 7938
      %vm345 = vmand %vm287, %vm344
      %v346 = vld [vmem:[#allocation2 + $0x8] sm:$0x1]
      %v347 = vsel %vm345, 0, %v346
      %348 = vst [vmem:[#allocation2 + $0x8] sm:$0x1] %v347
      %v349 = vld [vmem:[#allocation2 + $0x14] sm:$0x1]
      %v350 = vsel %vm345, 0, %v349
      %351 = vst [vmem:[#allocation2 + $0x14] sm:$0x1] %v350
      %v352 = vld [vmem:[#allocation2 + $0x20] sm:$0x1]
      %v353 = vsel %vm345, 0, %v352
      %354 = vst [vmem:[#allocation2 + $0x20] sm:$0x1] %v353
      %v355 = vld [vmem:[#allocation2 + $0x2c] sm:$0x1]
      %v356 = vsel %vm345, 0, %v355
      %357 = vst [vmem:[#allocation2 + $0x2c] sm:$0x1] %v356
      %v358 = vld [vmem:[#allocation2 + $0x38] sm:$0x1]
      %v359 = vsel %vm345, 0, %v358
      %360 = vst [vmem:[#allocation2 + $0x38] sm:$0x1] %v359
      %v361 = vld [vmem:[#allocation2 + $0x44] sm:$0x1]
      %v362 = vsel %vm345, 0, %v361
      %363 = vst [vmem:[#allocation2 + $0x44] sm:$0x1] %v362
      %v364 = vld [vmem:[#allocation2 + $0x50] sm:$0x1]
      %v365 = vsel %vm345, 0, %v364
      %366 = vst [vmem:[#allocation2 + $0x50] sm:$0x1] %v365
      %v367 = vld [vmem:[#allocation2 + $0x5c] sm:$0x1]
      %v368 = vsel %vm345, 0, %v367
      %369 = vst [vmem:[#allocation2 + $0x5c] sm:$0x1] %v368
      %v370 = vld [vmem:[#allocation2 + $0x68] sm:$0x1]
      %v371 = vsel %vm345, 0, %v370
      %372 = vst [vmem:[#allocation2 + $0x68] sm:$0x1] %v371
      %v373 = vld [vmem:[#allocation2 + $0x74] sm:$0x1]
      %v374 = vsel %vm345, 0, %v373
      %375 = vst [vmem:[#allocation2 + $0x74] sm:$0x1] %v374
      %v376 = vld [vmem:[#allocation2 + $0x80] sm:$0x1]
      %v377 = vsel %vm345, 0, %v376
      %378 = vst [vmem:[#allocation2 + $0x80] sm:$0x1] %v377
      %v379 = vld [vmem:[#allocation2 + $0x8c] sm:$0x1]
      %v380 = vsel %vm345, 0, %v379
      %381 = vst [vmem:[#allocation2 + $0x8c] sm:$0x1] %v380
      %v382 = vld [vmem:[#allocation2 + $0x98] sm:$0x1]
      %v383 = vsel %vm345, 0, %v382
      %384 = vst [vmem:[#allocation2 + $0x98] sm:$0x1] %v383
      %v385 = vld [vmem:[#allocation2 + $0xa4] sm:$0x1]
      %v386 = vsel %vm345, 0, %v385
      %387 = vst [vmem:[#allocation2 + $0xa4] sm:$0x1] %v386
      %v388 = vld [vmem:[#allocation2 + $0xb0] sm:$0x1]
      %v389 = vsel %vm345, 0, %v388
      %390 = vst [vmem:[#allocation2 + $0xb0] sm:$0x1] %v389
      %v391 = vld [vmem:[#allocation2 + $0xbc] sm:$0x1]
      %v392 = vsel %vm345, 0, %v391
      %393 = vst [vmem:[#allocation2 + $0xbc] sm:$0x1] %v392
      %v394 = vld [vmem:[#allocation2 + $0xc8] sm:$0x1]
      %v395 = vsel %vm345, 0, %v394
      %396 = vst [vmem:[#allocation2 + $0xc8] sm:$0x1] %v395
      %v397 = vld [vmem:[#allocation2 + $0xd4] sm:$0x1]
      %v398 = vsel %vm345, 0, %v397
      %399 = vst [vmem:[#allocation2 + $0xd4] sm:$0x1] %v398
      %v400 = vld [vmem:[%s273] sm:$0xf]
      %v401 = vld [vmem:[%s273 + $0x4] sm:$0xf]
      %v402 = vld [vmem:[%s273 + $0x8] sm:$0xf]
      %v403 = vld [vmem:[%s273 + $0xc] sm:$0xf]
      %v404 = vld [vmem:[%s273 + $0x10] sm:$0xf]
      %v405 = vld [vmem:[%s273 + $0x14] sm:$0xf]
      %v406 = vld [vmem:[%s273 + $0x18] sm:$0xf]
      %v407 = vld [vmem:[%s273 + $0x1c] sm:$0xf]
      %v408 = vld [vmem:[%s273 + $0x20] sm:$0xf]
      %v409 = vld [vmem:[%s273 + $0x24] sm:$0xf]
      %v410 = vld [vmem:[%s273 + $0x28] sm:$0xf]
      %v411 = vld [vmem:[%s273 + $0x2c] sm:$0xf]
      %v412 = vld [vmem:[%s273 + $0x30] sm:$0xf]
      %v413 = vld [vmem:[%s273 + $0x34] sm:$0xf]
      %v414 = vld [vmem:[%s273 + $0x38] sm:$0xf]
      %v415 = vld [vmem:[%s273 + $0x3c] sm:$0xf]
      %v416 = vld [vmem:[%s273 + $0x40] sm:$0xf]
      %v417 = vld [vmem:[%s273 + $0x44] sm:$0xf]
      %v418 = vld [vmem:[%s273 + $0x48] sm:$0xf]
      %v419 = vld [vmem:[%s273 + $0x4c] sm:$0xf]
      %v420 = vld [vmem:[%s273 + $0x50] sm:$0xf]
      %v421 = vld [vmem:[%s273 + $0x54] sm:$0xf]
      %v422 = vld [vmem:[%s273 + $0x58] sm:$0xf]
      %v423 = vld [vmem:[%s273 + $0x5c] sm:$0xf]
      %v424 = vld [vmem:[%s273 + $0x60] sm:$0xf]
      %v425 = vld [vmem:[%s273 + $0x64] sm:$0xf]
      %v426 = vld [vmem:[%s273 + $0x68] sm:$0xf]
      %v427 = vld [vmem:[%s273 + $0x6c] sm:$0xf]
      %v428 = vld [vmem:[%s273 + $0x70] sm:$0xf]
      %v429 = vld [vmem:[%s273 + $0x74] sm:$0xf]
      %v430 = vld [vmem:[%s273 + $0x78] sm:$0xf]
      %v431 = vld [vmem:[%s273 + $0x7c] sm:$0xf]
      %v432 = vld [vmem:[%s1] sm:$0xf]
      %v433 = vld [vmem:[%s1 + $0x4] sm:$0xf]
      %v434 = vld [vmem:[%s1 + $0x8] sm:$0xf]
      %v435 = vld [vmem:[%s1 + $0xc] sm:$0xf]
      %v436 = vld [vmem:[%s1 + $0x10] sm:$0x3]
      %v469 = vunpack.c.l.b16 %v400
      %v470 = vunpack.c.l.b16 %v401
      %v471 = vunpack.c.l.b16 %v402
      %v472 = vunpack.c.l.b16 %v403
      %v473 = vunpack.c.l.b16 %v404
      %v474 = vunpack.c.l.b16 %v405
      %v475 = vunpack.c.l.b16 %v406
      %v476 = vunpack.c.l.b16 %v407
      %v477 = vunpack.c.l.b16 %v408
      %v478 = vunpack.c.l.b16 %v409
      %v479 = vunpack.c.l.b16 %v410
      %v480 = vunpack.c.l.b16 %v411
      %v481 = vunpack.c.l.b16 %v412
      %v482 = vunpack.c.l.b16 %v413
      %v483 = vunpack.c.l.b16 %v414
      %v484 = vunpack.c.l.b16 %v415
      %v485 = vunpack.c.l.b16 %v416
      %v486 = vunpack.c.l.b16 %v417
      %v487 = vunpack.c.l.b16 %v418
      %v488 = vunpack.c.l.b16 %v419
      %v489 = vunpack.c.l.b16 %v420
      %v490 = vunpack.c.l.b16 %v421
      %v491 = vunpack.c.l.b16 %v422
      %v492 = vunpack.c.l.b16 %v423
      %v493 = vunpack.c.l.b16 %v424
      %v494 = vunpack.c.l.b16 %v425
      %v495 = vunpack.c.l.b16 %v426
      %v496 = vunpack.c.l.b16 %v427
      %v497 = vunpack.c.l.b16 %v428
      %v498 = vunpack.c.l.b16 %v429
      %v499 = vunpack.c.l.b16 %v430
      %v500 = vunpack.c.l.b16 %v431
      %v501 = vpack.c.b16 %v470, %v469
      %v502 = vpack.c.b16 %v472, %v471
      %v503 = vpack.c.b16 %v474, %v473
      %v504 = vpack.c.b16 %v476, %v475
      %v505 = vpack.c.b16 %v478, %v477
      %v506 = vpack.c.b16 %v480, %v479
      %v507 = vpack.c.b16 %v482, %v481
      %v508 = vpack.c.b16 %v484, %v483
      %v509 = vpack.c.b16 %v486, %v485
      %v510 = vpack.c.b16 %v488, %v487
      %v511 = vpack.c.b16 %v490, %v489
      %v512 = vpack.c.b16 %v492, %v491
      %v513 = vpack.c.b16 %v494, %v493
      %v514 = vpack.c.b16 %v496, %v495
      %v515 = vpack.c.b16 %v498, %v497
      %v516 = vpack.c.b16 %v500, %v499
      %v522 = vunpack.c.l.b16 %v432
      %v523 = vunpack.c.l.b16 %v433
      %v524 = vunpack.c.l.b16 %v434
      %v525 = vunpack.c.l.b16 %v435
      %v526 = vunpack.c.l.b16 %v436
      %v527 = vpack.c.b16 %v523, %v522
      %v528 = vpack.c.b16 %v525, %v524
      %v529 = vpack.c.b16 %v526, %v526
      %vm532 = vcmask 293888
      %v534 = vsel %vm532, %v501, 0
      %v537 = vsel %vm532, %v502, 0
      %v540 = vsel %vm532, %v503, 0
      %v543 = vsel %vm532, %v504, 0
      %v546 = vsel %vm532, %v505, 0
      %v549 = vsel %vm532, %v506, 0
      %v552 = vsel %vm532, %v507, 0
      %v555 = vsel %vm532, %v508, 0
      %v558 = vsel %vm532, %v509, 0
      %v561 = vsel %vm532, %v510, 0
      %v564 = vsel %vm532, %v511, 0
      %v567 = vsel %vm532, %v512, 0
      %v570 = vsel %vm532, %v513, 0
      %v573 = vsel %vm532, %v514, 0
      %v576 = vsel %vm532, %v515, 0
      %v579 = vsel %vm532, %v516, 0
      %vm581 = vcmask 1041408
      %v583 = vsel %vm581, %v529, 0
      %585 = vmatpush.bf16.msra.mxu0 0
      %586 = vmatpush.bf16.msra.mxu0 0
      %587 = vmatpush.bf16.msra.mxu0 0
      %588 = vmatpush.bf16.msra.mxu0 0
      %589 = vmatpush.bf16.msra.mxu0 0
      %590 = vmatpush.bf16.msra.mxu0 %v583
      %591 = vmatpush.bf16.msra.mxu0 %v528
      %592 = vmatpush.bf16.msra.mxu0 %v527
      %593 = vmatmul.bf16.gmra.mxu0 %v534
      %v594 = vpop.f32.mrf.mxu0
      %v595 = vadd.f32 0.0, %v594
      %v596 = vpop.f32.mrf.mxu0
      %v597 = vadd.f32 0.0, %v596
      %598 = vmatmul.bf16.gmra.mxu0 %v537
      %v599 = vpop.f32.mrf.mxu0
      %v600 = vadd.f32 0.0, %v599
      %v601 = vpop.f32.mrf.mxu0
      %v602 = vadd.f32 0.0, %v601
      %603 = vmatmul.bf16.gmra.mxu0 %v540
      %v604 = vpop.f32.mrf.mxu0
      %v605 = vadd.f32 0.0, %v604
      %v606 = vpop.f32.mrf.mxu0
      %v607 = vadd.f32 0.0, %v606
      %608 = vmatmul.bf16.gmra.mxu0 %v543
      %v609 = vpop.f32.mrf.mxu0
      %v610 = vadd.f32 0.0, %v609
      %v611 = vpop.f32.mrf.mxu0
      %v612 = vadd.f32 0.0, %v611
      %613 = vmatmul.bf16.gmra.mxu0 %v546
      %v614 = vpop.f32.mrf.mxu0
      %v615 = vadd.f32 0.0, %v614
      %v616 = vpop.f32.mrf.mxu0
      %v617 = vadd.f32 0.0, %v616
      %618 = vmatmul.bf16.gmra.mxu0 %v549
      %v619 = vpop.f32.mrf.mxu0
      %v620 = vadd.f32 0.0, %v619
      %v621 = vpop.f32.mrf.mxu0
      %v622 = vadd.f32 0.0, %v621
      %623 = vmatmul.bf16.gmra.mxu0 %v552
      %v624 = vpop.f32.mrf.mxu0
      %v625 = vadd.f32 0.0, %v624
      %v626 = vpop.f32.mrf.mxu0
      %v627 = vadd.f32 0.0, %v626
      %628 = vmatmul.bf16.gmra.mxu0 %v555
      %v629 = vpop.f32.mrf.mxu0
      %v630 = vadd.f32 0.0, %v629
      %v631 = vpop.f32.mrf.mxu0
      %v632 = vadd.f32 0.0, %v631
      %633 = vmatmul.bf16.gmra.mxu0 %v558
      %v634 = vpop.f32.mrf.mxu0
      %v635 = vadd.f32 0.0, %v634
      %v636 = vpop.f32.mrf.mxu0
      %v637 = vadd.f32 0.0, %v636
      %638 = vmatmul.bf16.gmra.mxu0 %v561
      %v639 = vpop.f32.mrf.mxu0
      %v640 = vadd.f32 0.0, %v639
      %v641 = vpop.f32.mrf.mxu0
      %v642 = vadd.f32 0.0, %v641
      %643 = vmatmul.bf16.gmra.mxu0 %v564
      %v644 = vpop.f32.mrf.mxu0
      %v645 = vadd.f32 0.0, %v644
      %v646 = vpop.f32.mrf.mxu0
      %v647 = vadd.f32 0.0, %v646
      %648 = vmatmul.bf16.gmra.mxu0 %v567
      %v649 = vpop.f32.mrf.mxu0
      %v650 = vadd.f32 0.0, %v649
      %v651 = vpop.f32.mrf.mxu0
      %v652 = vadd.f32 0.0, %v651
      %653 = vmatmul.bf16.gmra.mxu0 %v570
      %v654 = vpop.f32.mrf.mxu0
      %v655 = vadd.f32 0.0, %v654
      %v656 = vpop.f32.mrf.mxu0
      %v657 = vadd.f32 0.0, %v656
      %658 = vmatmul.bf16.gmra.mxu0 %v573
      %v659 = vpop.f32.mrf.mxu0
      %v660 = vadd.f32 0.0, %v659
      %v661 = vpop.f32.mrf.mxu0
      %v662 = vadd.f32 0.0, %v661
      %663 = vmatmul.bf16.gmra.mxu0 %v576
      %v664 = vpop.f32.mrf.mxu0
      %v665 = vadd.f32 0.0, %v664
      %v666 = vpop.f32.mrf.mxu0
      %v667 = vadd.f32 0.0, %v666
      %668 = vmatmul.bf16.gmra.mxu0 %v579
      %v669 = vpop.f32.mrf.mxu0
      %v670 = vadd.f32 0.0, %v669
      %v671 = vpop.f32.mrf.mxu0
      %v672 = vadd.f32 0.0, %v671
      %673 = vdwg.mxu0
      %v674 = vld [vmem:[%s2] sm:$0x1]
      %v676 = vperm.slane %v674, 0
      %v678 = vmul.f32 %v595, %v676
      %v679 = vmul.f32 %v597, %v676
      %v680 = vmul.f32 %v600, %v676
      %v681 = vmul.f32 %v602, %v676
      %v682 = vmul.f32 %v605, %v676
      %v683 = vmul.f32 %v607, %v676
      %v684 = vmul.f32 %v610, %v676
      %v685 = vmul.f32 %v612, %v676
      %v686 = vmul.f32 %v615, %v676
      %v687 = vmul.f32 %v617, %v676
      %v688 = vmul.f32 %v620, %v676
      %v689 = vmul.f32 %v622, %v676
      %v690 = vmul.f32 %v625, %v676
      %v691 = vmul.f32 %v627, %v676
      %v692 = vmul.f32 %v630, %v676
      %v693 = vmul.f32 %v632, %v676
      %v694 = vmul.f32 %v635, %v676
      %v695 = vmul.f32 %v637, %v676
      %v696 = vmul.f32 %v640, %v676
      %v697 = vmul.f32 %v642, %v676
      %v698 = vmul.f32 %v645, %v676
      %v699 = vmul.f32 %v647, %v676
      %v700 = vmul.f32 %v650, %v676
      %v701 = vmul.f32 %v652, %v676
      %v702 = vmul.f32 %v655, %v676
      %v703 = vmul.f32 %v657, %v676
      %v704 = vmul.f32 %v660, %v676
      %v705 = vmul.f32 %v662, %v676
      %v706 = vmul.f32 %v665, %v676
      %v707 = vmul.f32 %v667, %v676
      %v708 = vmul.f32 %v670, %v676
      %v709 = vmul.f32 %v672, %v676
      %v710 = vld [vmem:[%s3] sm:$0x1]
      %v712 = vperm.slane %v710, 0
      %v714 = vadd.f32 %v678, %v712
      %v715 = vadd.f32 %v679, %v712
      %v716 = vadd.f32 %v680, %v712
      %v717 = vadd.f32 %v681, %v712
      %v718 = vadd.f32 %v682, %v712
      %v719 = vadd.f32 %v683, %v712
      %v720 = vadd.f32 %v684, %v712
      %v721 = vadd.f32 %v685, %v712
      %v722 = vadd.f32 %v686, %v712
      %v723 = vadd.f32 %v687, %v712
      %v724 = vadd.f32 %v688, %v712
      %v725 = vadd.f32 %v689, %v712
      %v726 = vadd.f32 %v690, %v712
      %v727 = vadd.f32 %v691, %v712
      %v728 = vadd.f32 %v692, %v712
      %v729 = vadd.f32 %v693, %v712
      %v730 = vadd.f32 %v694, %v712
      %v731 = vadd.f32 %v695, %v712
      %v732 = vadd.f32 %v696, %v712
      %v733 = vadd.f32 %v697, %v712
      %v734 = vadd.f32 %v698, %v712
      %v735 = vadd.f32 %v699, %v712
      %v736 = vadd.f32 %v700, %v712
      %v737 = vadd.f32 %v701, %v712
      %v738 = vadd.f32 %v702, %v712
      %v739 = vadd.f32 %v703, %v712
      %v740 = vadd.f32 %v704, %v712
      %v741 = vadd.f32 %v705, %v712
      %v742 = vadd.f32 %v706, %v712
      %v743 = vadd.f32 %v707, %v712
      %v744 = vadd.f32 %v708, %v712
      %v745 = vadd.f32 %v709, %v712
      %v746 = vmax.f32 %v714, 0.0
      %v747 = vmax.f32 %v715, 0.0
      %v748 = vmax.f32 %v716, 0.0
      %v749 = vmax.f32 %v717, 0.0
      %v750 = vmax.f32 %v718, 0.0
      %v751 = vmax.f32 %v719, 0.0
      %v752 = vmax.f32 %v720, 0.0
      %v753 = vmax.f32 %v721, 0.0
      %v754 = vmax.f32 %v722, 0.0
      %v755 = vmax.f32 %v723, 0.0
      %v756 = vmax.f32 %v724, 0.0
      %v757 = vmax.f32 %v725, 0.0
      %v758 = vmax.f32 %v726, 0.0
      %v759 = vmax.f32 %v727, 0.0
      %v760 = vmax.f32 %v728, 0.0
      %v761 = vmax.f32 %v729, 0.0
      %v762 = vmax.f32 %v730, 0.0
      %v763 = vmax.f32 %v731, 0.0
      %v764 = vmax.f32 %v732, 0.0
      %v765 = vmax.f32 %v733, 0.0
      %v766 = vmax.f32 %v734, 0.0
      %v767 = vmax.f32 %v735, 0.0
      %v768 = vmax.f32 %v736, 0.0
      %v769 = vmax.f32 %v737, 0.0
      %v770 = vmax.f32 %v738, 0.0
      %v771 = vmax.f32 %v739, 0.0
      %v772 = vmax.f32 %v740, 0.0
      %v773 = vmax.f32 %v741, 0.0
      %v774 = vmax.f32 %v742, 0.0
      %v775 = vmax.f32 %v743, 0.0
      %v776 = vmax.f32 %v744, 0.0
      %v777 = vmax.f32 %v745, 0.0
      %v778 = vpack.c.bf16 %v746, %v746
      %v779 = vpack.c.bf16 %v747, %v747
      %v780 = vpack.c.bf16 %v748, %v748
      %v781 = vpack.c.bf16 %v749, %v749
      %v782 = vpack.c.bf16 %v750, %v750
      %v783 = vpack.c.bf16 %v751, %v751
      %v784 = vpack.c.bf16 %v752, %v752
      %v785 = vpack.c.bf16 %v753, %v753
      %v786 = vpack.c.bf16 %v754, %v754
      %v787 = vpack.c.bf16 %v755, %v755
      %v788 = vpack.c.bf16 %v756, %v756
      %v789 = vpack.c.bf16 %v757, %v757
      %v790 = vpack.c.bf16 %v758, %v758
      %v791 = vpack.c.bf16 %v759, %v759
      %v792 = vpack.c.bf16 %v760, %v760
      %v793 = vpack.c.bf16 %v761, %v761
      %v794 = vpack.c.bf16 %v762, %v762
      %v795 = vpack.c.bf16 %v763, %v763
      %v796 = vpack.c.bf16 %v764, %v764
      %v797 = vpack.c.bf16 %v765, %v765
      %v798 = vpack.c.bf16 %v766, %v766
      %v799 = vpack.c.bf16 %v767, %v767
      %v800 = vpack.c.bf16 %v768, %v768
      %v801 = vpack.c.bf16 %v769, %v769
      %v802 = vpack.c.bf16 %v770, %v770
      %v803 = vpack.c.bf16 %v771, %v771
      %v804 = vpack.c.bf16 %v772, %v772
      %v805 = vpack.c.bf16 %v773, %v773
      %v806 = vpack.c.bf16 %v774, %v774
      %v807 = vpack.c.bf16 %v775, %v775
      %v808 = vpack.c.bf16 %v776, %v776
      %v809 = vpack.c.bf16 %v777, %v777
      %vm810 = vsmask.f32 4368
      %vm811 = vmor %vm288, %vm810
      %v813 = vshrl.u32 %v778, 16
      %v815 = vrot.slane %v813, 7
      %v816 = vshll.u32 %v778, 16
      %v818 = vor.u32 %v815, %v816
      %v819 = vrot.slane %v815, 4
      %v821 = vshrl.u32 %v779, 16
      %v823 = vrot.slane %v821, 7
      %v824 = vshll.u32 %v779, 16
      %v826 = vor.u32 %v823, %v824
      %v827 = vsel %vm811, %v819, %v826
      %v828 = vrot.slane %v823, 4
      %v830 = vshrl.u32 %v780, 16
      %v832 = vrot.slane %v830, 7
      %v833 = vshll.u32 %v780, 16
      %v835 = vor.u32 %v832, %v833
      %v836 = vrot.slane %v832, 4
      %v838 = vshrl.u32 %v781, 16
      %v840 = vrot.slane %v838, 7
      %v841 = vshll.u32 %v781, 16
      %v843 = vor.u32 %v840, %v841
      %v844 = vsel %vm811, %v836, %v843
      %v845 = vrot.slane %v840, 4
      %v847 = vshrl.u32 %v782, 16
      %v849 = vrot.slane %v847, 7
      %v850 = vshll.u32 %v782, 16
      %v852 = vor.u32 %v849, %v850
      %v853 = vrot.slane %v849, 4
      %v855 = vshrl.u32 %v783, 16
      %v857 = vrot.slane %v855, 7
      %v858 = vshll.u32 %v783, 16
      %v860 = vor.u32 %v857, %v858
      %v861 = vsel %vm811, %v853, %v860
      %v862 = vrot.slane %v857, 4
      %v864 = vshrl.u32 %v784, 16
      %v866 = vrot.slane %v864, 7
      %v867 = vshll.u32 %v784, 16
      %v869 = vor.u32 %v866, %v867
      %v870 = vrot.slane %v866, 4
      %v872 = vshrl.u32 %v785, 16
      %v874 = vrot.slane %v872, 7
      %v875 = vshll.u32 %v785, 16
      %v877 = vor.u32 %v874, %v875
      %v878 = vsel %vm811, %v870, %v877
      %v879 = vrot.slane %v874, 4
      %v881 = vshrl.u32 %v786, 16
      %v883 = vrot.slane %v881, 7
      %v884 = vshll.u32 %v786, 16
      %v886 = vor.u32 %v883, %v884
      %v887 = vrot.slane %v883, 4
      %v889 = vshrl.u32 %v787, 16
      %v891 = vrot.slane %v889, 7
      %v892 = vshll.u32 %v787, 16
      %v894 = vor.u32 %v891, %v892
      %v895 = vsel %vm811, %v887, %v894
      %v896 = vrot.slane %v891, 4
      %v898 = vshrl.u32 %v788, 16
      %v900 = vrot.slane %v898, 7
      %v901 = vshll.u32 %v788, 16
      %v903 = vor.u32 %v900, %v901
      %v904 = vrot.slane %v900, 4
      %v906 = vshrl.u32 %v789, 16
      %v908 = vrot.slane %v906, 7
      %v909 = vshll.u32 %v789, 16
      %v911 = vor.u32 %v908, %v909
      %v912 = vsel %vm811, %v904, %v911
      %v913 = vrot.slane %v908, 4
      %v915 = vshrl.u32 %v790, 16
      %v917 = vrot.slane %v915, 7
      %v918 = vshll.u32 %v790, 16
      %v920 = vor.u32 %v917, %v918
      %v921 = vrot.slane %v917, 4
      %v923 = vshrl.u32 %v791, 16
      %v925 = vrot.slane %v923, 7
      %v926 = vshll.u32 %v791, 16
      %v928 = vor.u32 %v925, %v926
      %v929 = vsel %vm811, %v921, %v928
      %v930 = vrot.slane %v925, 4
      %v932 = vshrl.u32 %v792, 16
      %v934 = vrot.slane %v932, 7
      %v935 = vshll.u32 %v792, 16
      %v937 = vor.u32 %v934, %v935
      %v938 = vrot.slane %v934, 4
      %v940 = vshrl.u32 %v793, 16
      %v942 = vrot.slane %v940, 7
      %v943 = vshll.u32 %v793, 16
      %v945 = vor.u32 %v942, %v943
      %v946 = vsel %vm811, %v938, %v945
      %v947 = vrot.slane %v942, 4
      %v949 = vshrl.u32 %v794, 16
      %v951 = vrot.slane %v949, 7
      %v952 = vshll.u32 %v794, 16
      %v954 = vor.u32 %v951, %v952
      %v955 = vrot.slane %v951, 4
      %v957 = vshrl.u32 %v795, 16
      %v959 = vrot.slane %v957, 7
      %v960 = vshll.u32 %v795, 16
      %v962 = vor.u32 %v959, %v960
      %v963 = vsel %vm811, %v955, %v962
      %v964 = vrot.slane %v959, 4
      %v966 = vshrl.u32 %v796, 16
      %v968 = vrot.slane %v966, 7
      %v969 = vshll.u32 %v796, 16
      %v971 = vor.u32 %v968, %v969
      %v972 = vrot.slane %v968, 4
      %v974 = vshrl.u32 %v797, 16
      %v976 = vrot.slane %v974, 7
      %v977 = vshll.u32 %v797, 16
      %v979 = vor.u32 %v976, %v977
      %v980 = vsel %vm811, %v972, %v979
      %v981 = vrot.slane %v976, 4
      %v983 = vshrl.u32 %v798, 16
      %v985 = vrot.slane %v983, 7
      %v986 = vshll.u32 %v798, 16
      %v988 = vor.u32 %v985, %v986
      %v989 = vrot.slane %v985, 4
      %v991 = vshrl.u32 %v799, 16
      %v993 = vrot.slane %v991, 7
      %v994 = vshll.u32 %v799, 16
      %v996 = vor.u32 %v993, %v994
      %v997 = vsel %vm811, %v989, %v996
      %v998 = vrot.slane %v993, 4
      %v1000 = vshrl.u32 %v800, 16
      %v1002 = vrot.slane %v1000, 7
      %v1003 = vshll.u32 %v800, 16
      %v1005 = vor.u32 %v1002, %v1003
      %v1006 = vrot.slane %v1002, 4
      %v1008 = vshrl.u32 %v801, 16
      %v1010 = vrot.slane %v1008, 7
      %v1011 = vshll.u32 %v801, 16
      %v1013 = vor.u32 %v1010, %v1011
      %v1014 = vsel %vm811, %v1006, %v1013
      %v1015 = vrot.slane %v1010, 4
      %v1017 = vshrl.u32 %v802, 16
      %v1019 = vrot.slane %v1017, 7
      %v1020 = vshll.u32 %v802, 16
      %v1022 = vor.u32 %v1019, %v1020
      %v1023 = vrot.slane %v1019, 4
      %v1025 = vshrl.u32 %v803, 16
      %v1027 = vrot.slane %v1025, 7
      %v1028 = vshll.u32 %v803, 16
      %v1030 = vor.u32 %v1027, %v1028
      %v1031 = vsel %vm811, %v1023, %v1030
      %v1032 = vrot.slane %v1027, 4
      %v1034 = vshrl.u32 %v804, 16
      %v1036 = vrot.slane %v1034, 7
      %v1037 = vshll.u32 %v804, 16
      %v1039 = vor.u32 %v1036, %v1037
      %v1040 = vrot.slane %v1036, 4
      %v1042 = vshrl.u32 %v805, 16
      %v1044 = vrot.slane %v1042, 7
      %v1045 = vshll.u32 %v805, 16
      %v1047 = vor.u32 %v1044, %v1045
      %v1048 = vsel %vm811, %v1040, %v1047
      %v1049 = vrot.slane %v1044, 4
      %v1051 = vshrl.u32 %v806, 16
      %v1053 = vrot.slane %v1051, 7
      %v1054 = vshll.u32 %v806, 16
      %v1056 = vor.u32 %v1053, %v1054
      %v1057 = vrot.slane %v1053, 4
      %v1059 = vshrl.u32 %v807, 16
      %v1061 = vrot.slane %v1059, 7
      %v1062 = vshll.u32 %v807, 16
      %v1064 = vor.u32 %v1061, %v1062
      %v1065 = vsel %vm811, %v1057, %v1064
      %v1066 = vrot.slane %v1061, 4
      %v1068 = vshrl.u32 %v808, 16
      %v1070 = vrot.slane %v1068, 7
      %v1071 = vshll.u32 %v808, 16
      %v1073 = vor.u32 %v1070, %v1071
      %v1074 = vrot.slane %v1070, 4
      %v1076 = vshrl.u32 %v809, 16
      %v1078 = vrot.slane %v1076, 7
      %v1079 = vshll.u32 %v809, 16
      %v1081 = vor.u32 %v1078, %v1079
      %v1082 = vsel %vm811, %v1074, %v1081
      %v1083 = vrot.slane %v1078, 4
      %s1132 = scalar_lea.vmem [#allocation2], 12
      %vm1133 = vcmask 1043456
      %vm1134 = vmand %vm1133, %vm344
      %v1135 = vld [vmem:[%s1132] sm:$0xf]
      %v1136 = vsel %vm1134, %v818, %v1135
      %1137 = vst [vmem:[%s1132] sm:$0xf] %v1136
      %1138 = vst [vmem:[%s1132 + $0x4] sm:$0xf] %v827
      %v1139 = vld [vmem:[%s1132 + $0x8] sm:$0x1]
      %v1140 = vsel %vm289, %v828, %v1139
      %1141 = vst [vmem:[%s1132 + $0x8] sm:$0x1] %v1140
      %v1142 = vld [vmem:[%s1132 + $0xc] sm:$0xf]
      %v1143 = vsel %vm1134, %v835, %v1142
      %1144 = vst [vmem:[%s1132 + $0xc] sm:$0xf] %v1143
      %1145 = vst [vmem:[%s1132 + $0x10] sm:$0xf] %v844
      %v1146 = vld [vmem:[%s1132 + $0x14] sm:$0x1]
      %v1147 = vsel %vm289, %v845, %v1146
      %1148 = vst [vmem:[%s1132 + $0x14] sm:$0x1] %v1147
      %v1149 = vld [vmem:[%s1132 + $0x18] sm:$0xf]
      %v1150 = vsel %vm1134, %v852, %v1149
      %1151 = vst [vmem:[%s1132 + $0x18] sm:$0xf] %v1150
      %1152 = vst [vmem:[%s1132 + $0x1c] sm:$0xf] %v861
      %v1153 = vld [vmem:[%s1132 + $0x20] sm:$0x1]
      %v1154 = vsel %vm289, %v862, %v1153
      %1155 = vst [vmem:[%s1132 + $0x20] sm:$0x1] %v1154
      %v1156 = vld [vmem:[%s1132 + $0x24] sm:$0xf]
      %v1157 = vsel %vm1134, %v869, %v1156
      %1158 = vst [vmem:[%s1132 + $0x24] sm:$0xf] %v1157
      %1159 = vst [vmem:[%s1132 + $0x28] sm:$0xf] %v878
      %v1160 = vld [vmem:[%s1132 + $0x2c] sm:$0x1]
      %v1161 = vsel %vm289, %v879, %v1160
      %1162 = vst [vmem:[%s1132 + $0x2c] sm:$0x1] %v1161
      %v1163 = vld [vmem:[%s1132 + $0x30] sm:$0xf]
      %v1164 = vsel %vm1134, %v886, %v1163
      %1165 = vst [vmem:[%s1132 + $0x30] sm:$0xf] %v1164
      %1166 = vst [vmem:[%s1132 + $0x34] sm:$0xf] %v895
      %v1167 = vld [vmem:[%s1132 + $0x38] sm:$0x1]
      %v1168 = vsel %vm289, %v896, %v1167
      %1169 = vst [vmem:[%s1132 + $0x38] sm:$0x1] %v1168
      %v1170 = vld [vmem:[%s1132 + $0x3c] sm:$0xf]
      %v1171 = vsel %vm1134, %v903, %v1170
      %1172 = vst [vmem:[%s1132 + $0x3c] sm:$0xf] %v1171
      %1173 = vst [vmem:[%s1132 + $0x40] sm:$0xf] %v912
      %v1174 = vld [vmem:[%s1132 + $0x44] sm:$0x1]
      %v1175 = vsel %vm289, %v913, %v1174
      %1176 = vst [vmem:[%s1132 + $0x44] sm:$0x1] %v1175
      %v1177 = vld [vmem:[%s1132 + $0x48] sm:$0xf]
      %v1178 = vsel %vm1134, %v920, %v1177
      %1179 = vst [vmem:[%s1132 + $0x48] sm:$0xf] %v1178
      %1180 = vst [vmem:[%s1132 + $0x4c] sm:$0xf] %v929
      %v1181 = vld [vmem:[%s1132 + $0x50] sm:$0x1]
      %v1182 = vsel %vm289, %v930, %v1181
      %1183 = vst [vmem:[%s1132 + $0x50] sm:$0x1] %v1182
      %v1184 = vld [vmem:[%s1132 + $0x54] sm:$0xf]
      %v1185 = vsel %vm1134, %v937, %v1184
      %1186 = vst [vmem:[%s1132 + $0x54] sm:$0xf] %v1185
      %1187 = vst [vmem:[%s1132 + $0x58] sm:$0xf] %v946
      %v1188 = vld [vmem:[%s1132 + $0x5c] sm:$0x1]
      %v1189 = vsel %vm289, %v947, %v1188
      %1190 = vst [vmem:[%s1132 + $0x5c] sm:$0x1] %v1189
      %v1191 = vld [vmem:[%s1132 + $0x60] sm:$0xf]
      %v1192 = vsel %vm1134, %v954, %v1191
      %1193 = vst [vmem:[%s1132 + $0x60] sm:$0xf] %v1192
      %1194 = vst [vmem:[%s1132 + $0x64] sm:$0xf] %v963
      %v1195 = vld [vmem:[%s1132 + $0x68] sm:$0x1]
      %v1196 = vsel %vm289, %v964, %v1195
      %1197 = vst [vmem:[%s1132 + $0x68] sm:$0x1] %v1196
      %v1198 = vld [vmem:[%s1132 + $0x6c] sm:$0xf]
      %v1199 = vsel %vm1134, %v971, %v1198
      %1200 = vst [vmem:[%s1132 + $0x6c] sm:$0xf] %v1199
      %1201 = vst [vmem:[%s1132 + $0x70] sm:$0xf] %v980
      %v1202 = vld [vmem:[%s1132 + $0x74] sm:$0x1]
      %v1203 = vsel %vm289, %v981, %v1202
      %1204 = vst [vmem:[%s1132 + $0x74] sm:$0x1] %v1203
      %v1205 = vld [vmem:[%s1132 + $0x78] sm:$0xf]
      %v1206 = vsel %vm1134, %v988, %v1205
      %1207 = vst [vmem:[%s1132 + $0x78] sm:$0xf] %v1206
      %1208 = vst [vmem:[%s1132 + $0x7c] sm:$0xf] %v997
      %v1209 = vld [vmem:[%s1132 + $0x80] sm:$0x1]
      %v1210 = vsel %vm289, %v998, %v1209
      %1211 = vst [vmem:[%s1132 + $0x80] sm:$0x1] %v1210
      %v1212 = vld [vmem:[%s1132 + $0x84] sm:$0xf]
      %v1213 = vsel %vm1134, %v1005, %v1212
      %1214 = vst [vmem:[%s1132 + $0x84] sm:$0xf] %v1213
      %1215 = vst [vmem:[%s1132 + $0x88] sm:$0xf] %v1014
      %v1216 = vld [vmem:[%s1132 + $0x8c] sm:$0x1]
      %v1217 = vsel %vm289, %v1015, %v1216
      %1218 = vst [vmem:[%s1132 + $0x8c] sm:$0x1] %v1217
      %v1219 = vld [vmem:[%s1132 + $0x90] sm:$0xf]
      %v1220 = vsel %vm1134, %v1022, %v1219
      %1221 = vst [vmem:[%s1132 + $0x90] sm:$0xf] %v1220
      %1222 = vst [vmem:[%s1132 + $0x94] sm:$0xf] %v1031
      %v1223 = vld [vmem:[%s1132 + $0x98] sm:$0x1]
      %v1224 = vsel %vm289, %v1032, %v1223
      %1225 = vst [vmem:[%s1132 + $0x98] sm:$0x1] %v1224
      %v1226 = vld [vmem:[%s1132 + $0x9c] sm:$0xf]
      %v1227 = vsel %vm1134, %v1039, %v1226
      %1228 = vst [vmem:[%s1132 + $0x9c] sm:$0xf] %v1227
      %1229 = vst [vmem:[%s1132 + $0xa0] sm:$0xf] %v1048
      %v1230 = vld [vmem:[%s1132 + $0xa4] sm:$0x1]
      %v1231 = vsel %vm289, %v1049, %v1230
      %1232 = vst [vmem:[%s1132 + $0xa4] sm:$0x1] %v1231
      %v1233 = vld [vmem:[%s1132 + $0xa8] sm:$0xf]
      %v1234 = vsel %vm1134, %v1056, %v1233
      %1235 = vst [vmem:[%s1132 + $0xa8] sm:$0xf] %v1234
      %1236 = vst [vmem:[%s1132 + $0xac] sm:$0xf] %v1065
      %v1237 = vld [vmem:[%s1132 + $0xb0] sm:$0x1]
      %v1238 = vsel %vm289, %v1066, %v1237
      %1239 = vst [vmem:[%s1132 + $0xb0] sm:$0x1] %v1238
      %v1240 = vld [vmem:[%s1132 + $0xb4] sm:$0xf]
      %v1241 = vsel %vm1134, %v1073, %v1240
      %1242 = vst [vmem:[%s1132 + $0xb4] sm:$0xf] %v1241
      %1243 = vst [vmem:[%s1132 + $0xb8] sm:$0xf] %v1082
      %v1244 = vld [vmem:[%s1132 + $0xbc] sm:$0x1]
      %v1245 = vsel %vm289, %v1083, %v1244
      %1246 = vst [vmem:[%s1132 + $0xbc] sm:$0x1] %v1245
      %v1247 = vld [vmem:[#allocation2] sm:$0xf]
      %v1248 = vld [vmem:[#allocation2 + $0x4] sm:$0xf]
      %v1249 = vld [vmem:[#allocation2 + $0xc] sm:$0xf]
      %v1250 = vld [vmem:[#allocation2 + $0x10] sm:$0xf]
      %v1251 = vld [vmem:[#allocation2 + $0x18] sm:$0xf]
      %v1252 = vld [vmem:[#allocation2 + $0x1c] sm:$0xf]
      %v1253 = vld [vmem:[#allocation2 + $0x24] sm:$0xf]
      %v1254 = vld [vmem:[#allocation2 + $0x28] sm:$0xf]
      %v1255 = vld [vmem:[#allocation2 + $0x30] sm:$0xf]
      %v1256 = vld [vmem:[#allocation2 + $0x34] sm:$0xf]
      %v1257 = vld [vmem:[#allocation2 + $0x3c] sm:$0xf]
      %v1258 = vld [vmem:[#allocation2 + $0x40] sm:$0xf]
      %v1259 = vld [vmem:[#allocation2 + $0x48] sm:$0xf]
      %v1260 = vld [vmem:[#allocation2 + $0x4c] sm:$0xf]
      %v1261 = vld [vmem:[#allocation2 + $0x54] sm:$0xf]
      %v1262 = vld [vmem:[#allocation2 + $0x58] sm:$0xf]
      %v1263 = vld [vmem:[#allocation2 + $0x60] sm:$0xf]
      %v1264 = vld [vmem:[#allocation2 + $0x64] sm:$0xf]
      %v1265 = vld [vmem:[#allocation2 + $0x6c] sm:$0xf]
      %v1266 = vld [vmem:[#allocation2 + $0x70] sm:$0xf]
      %v1267 = vld [vmem:[#allocation2 + $0x78] sm:$0xf]
      %v1268 = vld [vmem:[#allocation2 + $0x7c] sm:$0xf]
      %v1269 = vld [vmem:[#allocation2 + $0x84] sm:$0xf]
      %v1270 = vld [vmem:[#allocation2 + $0x88] sm:$0xf]
      %v1271 = vld [vmem:[#allocation2 + $0x90] sm:$0xf]
      %v1272 = vld [vmem:[#allocation2 + $0x94] sm:$0xf]
      %v1273 = vld [vmem:[#allocation2 + $0x9c] sm:$0xf]
      %v1274 = vld [vmem:[#allocation2 + $0xa0] sm:$0xf]
      %v1275 = vld [vmem:[#allocation2 + $0xa8] sm:$0xf]
      %v1276 = vld [vmem:[#allocation2 + $0xac] sm:$0xf]
      %v1277 = vld [vmem:[#allocation2 + $0xb4] sm:$0xf]
      %v1278 = vld [vmem:[#allocation2 + $0xb8] sm:$0xf]
      %v1279 = vld [vmem:[%s4] sm:$0xf]
      %v1280 = vld [vmem:[%s4 + $0x4] sm:$0xf]
      %v1281 = vld [vmem:[%s4 + $0x8] sm:$0xf]
      %v1282 = vld [vmem:[%s4 + $0xc] sm:$0xf]
      %v1283 = vld [vmem:[%s4 + $0x10] sm:$0xf]
      %v1284 = vld [vmem:[%s4 + $0x14] sm:$0xf]
      %v1285 = vld [vmem:[%s4 + $0x18] sm:$0xf]
      %v1286 = vld [vmem:[%s4 + $0x1c] sm:$0xf]
      %v1287 = vld [vmem:[%s4 + $0x20] sm:$0xf]
      %v1288 = vld [vmem:[%s4 + $0x24] sm:$0xf]
      %v1289 = vld [vmem:[%s4 + $0x28] sm:$0xf]
      %v1290 = vld [vmem:[%s4 + $0x2c] sm:$0xf]
      %v1291 = vld [vmem:[%s4 + $0x30] sm:$0xf]
      %v1292 = vld [vmem:[%s4 + $0x34] sm:$0xf]
      %v1293 = vld [vmem:[%s4 + $0x38] sm:$0xf]
      %v1294 = vld [vmem:[%s4 + $0x3c] sm:$0xf]
      %v1295 = vld [vmem:[#allocation2 + $0x8] sm:$0x1]
      %v1296 = vld [vmem:[#allocation2 + $0x14] sm:$0x1]
      %v1297 = vld [vmem:[#allocation2 + $0x20] sm:$0x1]
      %v1298 = vld [vmem:[#allocation2 + $0x2c] sm:$0x1]
      %v1299 = vld [vmem:[#allocation2 + $0x38] sm:$0x1]
      %v1300 = vld [vmem:[#allocation2 + $0x44] sm:$0x1]
      %v1301 = vld [vmem:[#allocation2 + $0x50] sm:$0x1]
      %v1302 = vld [vmem:[#allocation2 + $0x5c] sm:$0x1]
      %v1303 = vld [vmem:[#allocation2 + $0x68] sm:$0x1]
      %v1304 = vld [vmem:[#allocation2 + $0x74] sm:$0x1]
      %v1305 = vld [vmem:[#allocation2 + $0x80] sm:$0x1]
      %v1306 = vld [vmem:[#allocation2 + $0x8c] sm:$0x1]
      %v1307 = vld [vmem:[#allocation2 + $0x98] sm:$0x1]
      %v1308 = vld [vmem:[#allocation2 + $0xa4] sm:$0x1]
      %v1309 = vld [vmem:[#allocation2 + $0xb0] sm:$0x1]
      %v1310 = vld [vmem:[#allocation2 + $0xbc] sm:$0x1]
      %s1311 = scalar_lea.vmem %s4, 64
      %v1312 = vld [vmem:[%s1311] sm:$0xf]
      %v1313 = vld [vmem:[%s1311 + $0x4] sm:$0xf]
      %v1314 = vld [vmem:[%s1311 + $0x8] sm:$0xf]
      %v1315 = vld [vmem:[%s1311 + $0xc] sm:$0xf]
      %v1316 = vld [vmem:[%s1311 + $0x10] sm:$0xf]
      %v1317 = vld [vmem:[%s1311 + $0x14] sm:$0xf]
      %v1318 = vld [vmem:[%s1311 + $0x18] sm:$0xf]
      %v1319 = vld [vmem:[%s1311 + $0x1c] sm:$0xf]
      %v1320 = vld [vmem:[%s1311 + $0x20] sm:$0xf]
      %v1321 = vld [vmem:[%s1311 + $0x24] sm:$0xf]
      %v1322 = vld [vmem:[%s1311 + $0x28] sm:$0xf]
      %v1323 = vld [vmem:[%s1311 + $0x2c] sm:$0xf]
      %v1324 = vld [vmem:[%s1311 + $0x30] sm:$0xf]
      %v1325 = vld [vmem:[%s1311 + $0x34] sm:$0xf]
      %v1326 = vld [vmem:[%s1311 + $0x38] sm:$0xf]
      %v1327 = vld [vmem:[%s1311 + $0x3c] sm:$0xf]
      %vm1328 = vsmask.f32 3328
      %vm1329 = vsmask.f32 7440
      %vm1330 = vmor %vm1328, %vm1329
      %v1332 = vshrl.u32 %v1247, 16
      %v1334 = vrot.slane %v1332, 4
      %v1335 = vshll.u32 %v1247, 16
      %v1337 = vrot.slane %v1335, 5
      %v1338 = vor.u32 %v1334, %v1337
      %v1339 = vrot.slane %v1338, 4
      %v1341 = vshll.u32 %v1248, 16
      %v1343 = vrot.slane %v1341, 5
      %v1344 = vsel %vm1330, %v1339, %v1343
      %v1345 = vshrl.u32 %v1248, 16
      %v1347 = vrot.slane %v1345, 4
      %v1348 = vor.u32 %v1347, %v1343
      %v1349 = vrot.slane %v1348, 4
      %v1351 = vshll.u32 %v1295, 16
      %v1353 = vrot.slane %v1351, 5
      %v1354 = vsel %vm1330, %v1349, %v1353
      %v1356 = vshrl.u32 %v1249, 16
      %v1358 = vrot.slane %v1356, 4
      %v1359 = vshll.u32 %v1249, 16
      %v1361 = vrot.slane %v1359, 5
      %v1362 = vor.u32 %v1358, %v1361
      %v1363 = vrot.slane %v1362, 4
      %v1365 = vshll.u32 %v1250, 16
      %v1367 = vrot.slane %v1365, 5
      %v1368 = vsel %vm1330, %v1363, %v1367
      %v1369 = vshrl.u32 %v1250, 16
      %v1371 = vrot.slane %v1369, 4
      %v1372 = vor.u32 %v1371, %v1367
      %v1373 = vrot.slane %v1372, 4
      %v1375 = vshll.u32 %v1296, 16
      %v1377 = vrot.slane %v1375, 5
      %v1378 = vsel %vm1330, %v1373, %v1377
      %v1380 = vshrl.u32 %v1251, 16
      %v1382 = vrot.slane %v1380, 4
      %v1383 = vshll.u32 %v1251, 16
      %v1385 = vrot.slane %v1383, 5
      %v1386 = vor.u32 %v1382, %v1385
      %v1387 = vrot.slane %v1386, 4
      %v1389 = vshll.u32 %v1252, 16
      %v1391 = vrot.slane %v1389, 5
      %v1392 = vsel %vm1330, %v1387, %v1391
      %v1393 = vshrl.u32 %v1252, 16
      %v1395 = vrot.slane %v1393, 4
      %v1396 = vor.u32 %v1395, %v1391
      %v1397 = vrot.slane %v1396, 4
      %v1399 = vshll.u32 %v1297, 16
      %v1401 = vrot.slane %v1399, 5
      %v1402 = vsel %vm1330, %v1397, %v1401
      %v1404 = vshrl.u32 %v1253, 16
      %v1406 = vrot.slane %v1404, 4
      %v1407 = vshll.u32 %v1253, 16
      %v1409 = vrot.slane %v1407, 5
      %v1410 = vor.u32 %v1406, %v1409
      %v1411 = vrot.slane %v1410, 4
      %v1413 = vshll.u32 %v1254, 16
      %v1415 = vrot.slane %v1413, 5
      %v1416 = vsel %vm1330, %v1411, %v1415
      %v1417 = vshrl.u32 %v1254, 16
      %v1419 = vrot.slane %v1417, 4
      %v1420 = vor.u32 %v1419, %v1415
      %v1421 = vrot.slane %v1420, 4
      %v1423 = vshll.u32 %v1298, 16
      %v1425 = vrot.slane %v1423, 5
      %v1426 = vsel %vm1330, %v1421, %v1425
      %v1428 = vshrl.u32 %v1255, 16
      %v1430 = vrot.slane %v1428, 4
      %v1431 = vshll.u32 %v1255, 16
      %v1433 = vrot.slane %v1431, 5
      %v1434 = vor.u32 %v1430, %v1433
      %v1435 = vrot.slane %v1434, 4
      %v1437 = vshll.u32 %v1256, 16
      %v1439 = vrot.slane %v1437, 5
      %v1440 = vsel %vm1330, %v1435, %v1439
      %v1441 = vshrl.u32 %v1256, 16
      %v1443 = vrot.slane %v1441, 4
      %v1444 = vor.u32 %v1443, %v1439
      %v1445 = vrot.slane %v1444, 4
      %v1447 = vshll.u32 %v1299, 16
      %v1449 = vrot.slane %v1447, 5
      %v1450 = vsel %vm1330, %v1445, %v1449
      %v1452 = vshrl.u32 %v1257, 16
      %v1454 = vrot.slane %v1452, 4
      %v1455 = vshll.u32 %v1257, 16
      %v1457 = vrot.slane %v1455, 5
      %v1458 = vor.u32 %v1454, %v1457
      %v1459 = vrot.slane %v1458, 4
      %v1461 = vshll.u32 %v1258, 16
      %v1463 = vrot.slane %v1461, 5
      %v1464 = vsel %vm1330, %v1459, %v1463
      %v1465 = vshrl.u32 %v1258, 16
      %v1467 = vrot.slane %v1465, 4
      %v1468 = vor.u32 %v1467, %v1463
      %v1469 = vrot.slane %v1468, 4
      %v1471 = vshll.u32 %v1300, 16
      %v1473 = vrot.slane %v1471, 5
      %v1474 = vsel %vm1330, %v1469, %v1473
      %v1476 = vshrl.u32 %v1259, 16
      %v1478 = vrot.slane %v1476, 4
      %v1479 = vshll.u32 %v1259, 16
      %v1481 = vrot.slane %v1479, 5
      %v1482 = vor.u32 %v1478, %v1481
      %v1483 = vrot.slane %v1482, 4
      %v1485 = vshll.u32 %v1260, 16
      %v1487 = vrot.slane %v1485, 5
      %v1488 = vsel %vm1330, %v1483, %v1487
      %v1489 = vshrl.u32 %v1260, 16
      %v1491 = vrot.slane %v1489, 4
      %v1492 = vor.u32 %v1491, %v1487
      %v1493 = vrot.slane %v1492, 4
      %v1495 = vshll.u32 %v1301, 16
      %v1497 = vrot.slane %v1495, 5
      %v1498 = vsel %vm1330, %v1493, %v1497
      %v1500 = vshrl.u32 %v1261, 16
      %v1502 = vrot.slane %v1500, 4
      %v1503 = vshll.u32 %v1261, 16
      %v1505 = vrot.slane %v1503, 5
      %v1506 = vor.u32 %v1502, %v1505
      %v1507 = vrot.slane %v1506, 4
      %v1509 = vshll.u32 %v1262, 16
      %v1511 = vrot.slane %v1509, 5
      %v1512 = vsel %vm1330, %v1507, %v1511
      %v1513 = vshrl.u32 %v1262, 16
      %v1515 = vrot.slane %v1513, 4
      %v1516 = vor.u32 %v1515, %v1511
      %v1517 = vrot.slane %v1516, 4
      %v1519 = vshll.u32 %v1302, 16
      %v1521 = vrot.slane %v1519, 5
      %v1522 = vsel %vm1330, %v1517, %v1521
      %v1524 = vshrl.u32 %v1263, 16
      %v1526 = vrot.slane %v1524, 4
      %v1527 = vshll.u32 %v1263, 16
      %v1529 = vrot.slane %v1527, 5
      %v1530 = vor.u32 %v1526, %v1529
      %v1531 = vrot.slane %v1530, 4
      %v1533 = vshll.u32 %v1264, 16
      %v1535 = vrot.slane %v1533, 5
      %v1536 = vsel %vm1330, %v1531, %v1535
      %v1537 = vshrl.u32 %v1264, 16
      %v1539 = vrot.slane %v1537, 4
      %v1540 = vor.u32 %v1539, %v1535
      %v1541 = vrot.slane %v1540, 4
      %v1543 = vshll.u32 %v1303, 16
      %v1545 = vrot.slane %v1543, 5
      %v1546 = vsel %vm1330, %v1541, %v1545
      %v1548 = vshrl.u32 %v1265, 16
      %v1550 = vrot.slane %v1548, 4
      %v1551 = vshll.u32 %v1265, 16
      %v1553 = vrot.slane %v1551, 5
      %v1554 = vor.u32 %v1550, %v1553
      %v1555 = vrot.slane %v1554, 4
      %v1557 = vshll.u32 %v1266, 16
      %v1559 = vrot.slane %v1557, 5
      %v1560 = vsel %vm1330, %v1555, %v1559
      %v1561 = vshrl.u32 %v1266, 16
      %v1563 = vrot.slane %v1561, 4
      %v1564 = vor.u32 %v1563, %v1559
      %v1565 = vrot.slane %v1564, 4
      %v1567 = vshll.u32 %v1304, 16
      %v1569 = vrot.slane %v1567, 5
      %v1570 = vsel %vm1330, %v1565, %v1569
      %v1572 = vshrl.u32 %v1267, 16
      %v1574 = vrot.slane %v1572, 4
      %v1575 = vshll.u32 %v1267, 16
      %v1577 = vrot.slane %v1575, 5
      %v1578 = vor.u32 %v1574, %v1577
      %v1579 = vrot.slane %v1578, 4
      %v1581 = vshll.u32 %v1268, 16
      %v1583 = vrot.slane %v1581, 5
      %v1584 = vsel %vm1330, %v1579, %v1583
      %v1585 = vshrl.u32 %v1268, 16
      %v1587 = vrot.slane %v1585, 4
      %v1588 = vor.u32 %v1587, %v1583
      %v1589 = vrot.slane %v1588, 4
      %v1591 = vshll.u32 %v1305, 16
      %v1593 = vrot.slane %v1591, 5
      %v1594 = vsel %vm1330, %v1589, %v1593
      %v1596 = vshrl.u32 %v1269, 16
      %v1598 = vrot.slane %v1596, 4
      %v1599 = vshll.u32 %v1269, 16
      %v1601 = vrot.slane %v1599, 5
      %v1602 = vor.u32 %v1598, %v1601
      %v1603 = vrot.slane %v1602, 4
      %v1605 = vshll.u32 %v1270, 16
      %v1607 = vrot.slane %v1605, 5
      %v1608 = vsel %vm1330, %v1603, %v1607
      %v1609 = vshrl.u32 %v1270, 16
      %v1611 = vrot.slane %v1609, 4
      %v1612 = vor.u32 %v1611, %v1607
      %v1613 = vrot.slane %v1612, 4
      %v1615 = vshll.u32 %v1306, 16
      %v1617 = vrot.slane %v1615, 5
      %v1618 = vsel %vm1330, %v1613, %v1617
      %v1620 = vshrl.u32 %v1271, 16
      %v1622 = vrot.slane %v1620, 4
      %v1623 = vshll.u32 %v1271, 16
      %v1625 = vrot.slane %v1623, 5
      %v1626 = vor.u32 %v1622, %v1625
      %v1627 = vrot.slane %v1626, 4
      %v1629 = vshll.u32 %v1272, 16
      %v1631 = vrot.slane %v1629, 5
      %v1632 = vsel %vm1330, %v1627, %v1631
      %v1633 = vshrl.u32 %v1272, 16
      %v1635 = vrot.slane %v1633, 4
      %v1636 = vor.u32 %v1635, %v1631
      %v1637 = vrot.slane %v1636, 4
      %v1639 = vshll.u32 %v1307, 16
      %v1641 = vrot.slane %v1639, 5
      %v1642 = vsel %vm1330, %v1637, %v1641
      %v1644 = vshrl.u32 %v1273, 16
      %v1646 = vrot.slane %v1644, 4
      %v1647 = vshll.u32 %v1273, 16
      %v1649 = vrot.slane %v1647, 5
      %v1650 = vor.u32 %v1646, %v1649
      %v1651 = vrot.slane %v1650, 4
      %v1653 = vshll.u32 %v1274, 16
      %v1655 = vrot.slane %v1653, 5
      %v1656 = vsel %vm1330, %v1651, %v1655
      %v1657 = vshrl.u32 %v1274, 16
      %v1659 = vrot.slane %v1657, 4
      %v1660 = vor.u32 %v1659, %v1655
      %v1661 = vrot.slane %v1660, 4
      %v1663 = vshll.u32 %v1308, 16
      %v1665 = vrot.slane %v1663, 5
      %v1666 = vsel %vm1330, %v1661, %v1665
      %v1668 = vshrl.u32 %v1275, 16
      %v1670 = vrot.slane %v1668, 4
      %v1671 = vshll.u32 %v1275, 16
      %v1673 = vrot.slane %v1671, 5
      %v1674 = vor.u32 %v1670, %v1673
      %v1675 = vrot.slane %v1674, 4
      %v1677 = vshll.u32 %v1276, 16
      %v1679 = vrot.slane %v1677, 5
      %v1680 = vsel %vm1330, %v1675, %v1679
      %v1681 = vshrl.u32 %v1276, 16
      %v1683 = vrot.slane %v1681, 4
      %v1684 = vor.u32 %v1683, %v1679
      %v1685 = vrot.slane %v1684, 4
      %v1687 = vshll.u32 %v1309, 16
      %v1689 = vrot.slane %v1687, 5
      %v1690 = vsel %vm1330, %v1685, %v1689
      %v1692 = vshrl.u32 %v1277, 16
      %v1694 = vrot.slane %v1692, 4
      %v1695 = vshll.u32 %v1277, 16
      %v1697 = vrot.slane %v1695, 5
      %v1698 = vor.u32 %v1694, %v1697
      %v1699 = vrot.slane %v1698, 4
      %v1701 = vshll.u32 %v1278, 16
      %v1703 = vrot.slane %v1701, 5
      %v1704 = vsel %vm1330, %v1699, %v1703
      %v1705 = vshrl.u32 %v1278, 16
      %v1707 = vrot.slane %v1705, 4
      %v1708 = vor.u32 %v1707, %v1703
      %v1709 = vrot.slane %v1708, 4
      %v1711 = vshll.u32 %v1310, 16
      %v1713 = vrot.slane %v1711, 5
      %v1714 = vsel %vm1330, %v1709, %v1713
      %v1715 = vunpack.c.l.b16 %v1344
      %v1716 = vunpack.c.l.b16 %v1354
      %v1717 = vunpack.c.l.b16 %v1368
      %v1718 = vunpack.c.l.b16 %v1378
      %v1719 = vunpack.c.l.b16 %v1392
      %v1720 = vunpack.c.l.b16 %v1402
      %v1721 = vunpack.c.l.b16 %v1416
      %v1722 = vunpack.c.l.b16 %v1426
      %v1723 = vunpack.c.l.b16 %v1440
      %v1724 = vunpack.c.l.b16 %v1450
      %v1725 = vunpack.c.l.b16 %v1464
      %v1726 = vunpack.c.l.b16 %v1474
      %v1727 = vunpack.c.l.b16 %v1488
      %v1728 = vunpack.c.l.b16 %v1498
      %v1729 = vunpack.c.l.b16 %v1512
      %v1730 = vunpack.c.l.b16 %v1522
      %v1731 = vunpack.c.l.b16 %v1536
      %v1732 = vunpack.c.l.b16 %v1546
      %v1733 = vunpack.c.l.b16 %v1560
      %v1734 = vunpack.c.l.b16 %v1570
      %v1735 = vunpack.c.l.b16 %v1584
      %v1736 = vunpack.c.l.b16 %v1594
      %v1737 = vunpack.c.l.b16 %v1608
      %v1738 = vunpack.c.l.b16 %v1618
      %v1739 = vunpack.c.l.b16 %v1632
      %v1740 = vunpack.c.l.b16 %v1642
      %v1741 = vunpack.c.l.b16 %v1656
      %v1742 = vunpack.c.l.b16 %v1666
      %v1743 = vunpack.c.l.b16 %v1680
      %v1744 = vunpack.c.l.b16 %v1690
      %v1745 = vunpack.c.l.b16 %v1704
      %v1746 = vunpack.c.l.b16 %v1714
      %v1747 = vpack.c.b16 %v1716, %v1715
      %v1748 = vpack.c.b16 %v1718, %v1717
      %v1749 = vpack.c.b16 %v1720, %v1719
      %v1750 = vpack.c.b16 %v1722, %v1721
      %v1751 = vpack.c.b16 %v1724, %v1723
      %v1752 = vpack.c.b16 %v1726, %v1725
      %v1753 = vpack.c.b16 %v1728, %v1727
      %v1754 = vpack.c.b16 %v1730, %v1729
      %v1755 = vpack.c.b16 %v1732, %v1731
      %v1756 = vpack.c.b16 %v1734, %v1733
      %v1757 = vpack.c.b16 %v1736, %v1735
      %v1758 = vpack.c.b16 %v1738, %v1737
      %v1759 = vpack.c.b16 %v1740, %v1739
      %v1760 = vpack.c.b16 %v1742, %v1741
      %v1761 = vpack.c.b16 %v1744, %v1743
      %v1762 = vpack.c.b16 %v1746, %v1745
      %v1795 = vunpack.c.l.b16 %v1312
      %v1796 = vunpack.c.l.b16 %v1313
      %v1797 = vunpack.c.l.b16 %v1314
      %v1798 = vunpack.c.l.b16 %v1315
      %v1799 = vunpack.c.l.b16 %v1316
      %v1800 = vunpack.c.l.b16 %v1317
      %v1801 = vunpack.c.l.b16 %v1318
      %v1802 = vunpack.c.l.b16 %v1319
      %v1803 = vunpack.c.l.b16 %v1320
      %v1804 = vunpack.c.l.b16 %v1321
      %v1805 = vunpack.c.l.b16 %v1322
      %v1806 = vunpack.c.l.b16 %v1323
      %v1807 = vunpack.c.l.b16 %v1324
      %v1808 = vunpack.c.l.b16 %v1325
      %v1809 = vunpack.c.l.b16 %v1326
      %v1810 = vunpack.c.l.b16 %v1327
      %v1811 = vpack.c.b16 %v1796, %v1795
      %v1812 = vpack.c.b16 %v1798, %v1797
      %v1813 = vpack.c.b16 %v1800, %v1799
      %v1814 = vpack.c.b16 %v1802, %v1801
      %v1815 = vpack.c.b16 %v1804, %v1803
      %v1816 = vpack.c.b16 %v1806, %v1805
      %v1817 = vpack.c.b16 %v1808, %v1807
      %v1818 = vpack.c.b16 %v1810, %v1809
      %1827 = vmatpush.bf16.msra.mxu0 %v1818
      %1828 = vmatpush.bf16.msra.mxu0 %v1817
      %1829 = vmatpush.bf16.msra.mxu0 %v1816
      %1830 = vmatpush.bf16.msra.mxu0 %v1815
      %1831 = vmatpush.bf16.msra.mxu0 %v1814
      %1832 = vmatpush.bf16.msra.mxu0 %v1813
      %1833 = vmatpush.bf16.msra.mxu0 %v1812
      %1834 = vmatpush.bf16.msra.mxu0 %v1811
      %1835 = vmatmul.bf16.gmra.mxu0 %v1747
      %v1836 = vpop.f32.mrf.mxu0
      %v1837 = vadd.f32 0.0, %v1836
      %v1838 = vpop.f32.mrf.mxu0
      %v1839 = vadd.f32 0.0, %v1838
      %1840 = vmatmul.bf16.gmra.mxu0 %v1748
      %v1841 = vpop.f32.mrf.mxu0
      %v1842 = vadd.f32 0.0, %v1841
      %v1843 = vpop.f32.mrf.mxu0
      %v1844 = vadd.f32 0.0, %v1843
      %1845 = vmatmul.bf16.gmra.mxu0 %v1749
      %v1846 = vpop.f32.mrf.mxu0
      %v1847 = vadd.f32 0.0, %v1846
      %v1848 = vpop.f32.mrf.mxu0
      %v1849 = vadd.f32 0.0, %v1848
      %1850 = vmatmul.bf16.gmra.mxu0 %v1750
      %v1851 = vpop.f32.mrf.mxu0
      %v1852 = vadd.f32 0.0, %v1851
      %v1853 = vpop.f32.mrf.mxu0
      %v1854 = vadd.f32 0.0, %v1853
      %1855 = vmatmul.bf16.gmra.mxu0 %v1751
      %v1856 = vpop.f32.mrf.mxu0
      %v1857 = vadd.f32 0.0, %v1856
      %v1858 = vpop.f32.mrf.mxu0
      %v1859 = vadd.f32 0.0, %v1858
      %1860 = vmatmul.bf16.gmra.mxu0 %v1752
      %v1861 = vpop.f32.mrf.mxu0
      %v1862 = vadd.f32 0.0, %v1861
      %v1863 = vpop.f32.mrf.mxu0
      %v1864 = vadd.f32 0.0, %v1863
      %1865 = vmatmul.bf16.gmra.mxu0 %v1753
      %v1866 = vpop.f32.mrf.mxu0
      %v1867 = vadd.f32 0.0, %v1866
      %v1868 = vpop.f32.mrf.mxu0
      %v1869 = vadd.f32 0.0, %v1868
      %1870 = vmatmul.bf16.gmra.mxu0 %v1754
      %v1871 = vpop.f32.mrf.mxu0
      %v1872 = vadd.f32 0.0, %v1871
      %v1873 = vpop.f32.mrf.mxu0
      %v1874 = vadd.f32 0.0, %v1873
      %1875 = vmatmul.bf16.gmra.mxu0 %v1755
      %v1876 = vpop.f32.mrf.mxu0
      %v1877 = vadd.f32 0.0, %v1876
      %v1878 = vpop.f32.mrf.mxu0
      %v1879 = vadd.f32 0.0, %v1878
      %1880 = vmatmul.bf16.gmra.mxu0 %v1756
      %v1881 = vpop.f32.mrf.mxu0
      %v1882 = vadd.f32 0.0, %v1881
      %v1883 = vpop.f32.mrf.mxu0
      %v1884 = vadd.f32 0.0, %v1883
      %1885 = vmatmul.bf16.gmra.mxu0 %v1757
      %v1886 = vpop.f32.mrf.mxu0
      %v1887 = vadd.f32 0.0, %v1886
      %v1888 = vpop.f32.mrf.mxu0
      %v1889 = vadd.f32 0.0, %v1888
      %1890 = vmatmul.bf16.gmra.mxu0 %v1758
      %v1891 = vpop.f32.mrf.mxu0
      %v1892 = vadd.f32 0.0, %v1891
      %v1893 = vpop.f32.mrf.mxu0
      %v1894 = vadd.f32 0.0, %v1893
      %1895 = vmatmul.bf16.gmra.mxu0 %v1759
      %v1896 = vpop.f32.mrf.mxu0
      %v1897 = vadd.f32 0.0, %v1896
      %v1898 = vpop.f32.mrf.mxu0
      %v1899 = vadd.f32 0.0, %v1898
      %1900 = vmatmul.bf16.gmra.mxu0 %v1760
      %v1901 = vpop.f32.mrf.mxu0
      %v1902 = vadd.f32 0.0, %v1901
      %v1903 = vpop.f32.mrf.mxu0
      %v1904 = vadd.f32 0.0, %v1903
      %1905 = vmatmul.bf16.gmra.mxu0 %v1761
      %v1906 = vpop.f32.mrf.mxu0
      %v1907 = vadd.f32 0.0, %v1906
      %v1908 = vpop.f32.mrf.mxu0
      %v1909 = vadd.f32 0.0, %v1908
      %1910 = vmatmul.bf16.gmra.mxu0 %v1762
      %v1911 = vpop.f32.mrf.mxu0
      %v1912 = vadd.f32 0.0, %v1911
      %v1913 = vpop.f32.mrf.mxu0
      %v1914 = vadd.f32 0.0, %v1913
      %1915 = vdwg.mxu0
      %v1948 = vunpack.c.l.b16 %v1247
      %v1949 = vunpack.c.l.b16 %v1248
      %v1950 = vunpack.c.l.b16 %v1249
      %v1951 = vunpack.c.l.b16 %v1250
      %v1952 = vunpack.c.l.b16 %v1251
      %v1953 = vunpack.c.l.b16 %v1252
      %v1954 = vunpack.c.l.b16 %v1253
      %v1955 = vunpack.c.l.b16 %v1254
      %v1956 = vunpack.c.l.b16 %v1255
      %v1957 = vunpack.c.l.b16 %v1256
      %v1958 = vunpack.c.l.b16 %v1257
      %v1959 = vunpack.c.l.b16 %v1258
      %v1960 = vunpack.c.l.b16 %v1259
      %v1961 = vunpack.c.l.b16 %v1260
      %v1962 = vunpack.c.l.b16 %v1261
      %v1963 = vunpack.c.l.b16 %v1262
      %v1964 = vunpack.c.l.b16 %v1263
      %v1965 = vunpack.c.l.b16 %v1264
      %v1966 = vunpack.c.l.b16 %v1265
      %v1967 = vunpack.c.l.b16 %v1266
      %v1968 = vunpack.c.l.b16 %v1267
      %v1969 = vunpack.c.l.b16 %v1268
      %v1970 = vunpack.c.l.b16 %v1269
      %v1971 = vunpack.c.l.b16 %v1270
      %v1972 = vunpack.c.l.b16 %v1271
      %v1973 = vunpack.c.l.b16 %v1272
      %v1974 = vunpack.c.l.b16 %v1273
      %v1975 = vunpack.c.l.b16 %v1274
      %v1976 = vunpack.c.l.b16 %v1275
      %v1977 = vunpack.c.l.b16 %v1276
      %v1978 = vunpack.c.l.b16 %v1277
      %v1979 = vunpack.c.l.b16 %v1278
      %v1980 = vpack.c.b16 %v1949, %v1948
      %v1981 = vpack.c.b16 %v1951, %v1950
      %v1982 = vpack.c.b16 %v1953, %v1952
      %v1983 = vpack.c.b16 %v1955, %v1954
      %v1984 = vpack.c.b16 %v1957, %v1956
      %v1985 = vpack.c.b16 %v1959, %v1958
      %v1986 = vpack.c.b16 %v1961, %v1960
      %v1987 = vpack.c.b16 %v1963, %v1962
      %v1988 = vpack.c.b16 %v1965, %v1964
      %v1989 = vpack.c.b16 %v1967, %v1966
      %v1990 = vpack.c.b16 %v1969, %v1968
      %v1991 = vpack.c.b16 %v1971, %v1970
      %v1992 = vpack.c.b16 %v1973, %v1972
      %v1993 = vpack.c.b16 %v1975, %v1974
      %v1994 = vpack.c.b16 %v1977, %v1976
      %v1995 = vpack.c.b16 %v1979, %v1978
      %v2028 = vunpack.c.l.b16 %v1279
      %v2029 = vunpack.c.l.b16 %v1280
      %v2030 = vunpack.c.l.b16 %v1281
      %v2031 = vunpack.c.l.b16 %v1282
      %v2032 = vunpack.c.l.b16 %v1283
      %v2033 = vunpack.c.l.b16 %v1284
      %v2034 = vunpack.c.l.b16 %v1285
      %v2035 = vunpack.c.l.b16 %v1286
      %v2036 = vunpack.c.l.b16 %v1287
      %v2037 = vunpack.c.l.b16 %v1288
      %v2038 = vunpack.c.l.b16 %v1289
      %v2039 = vunpack.c.l.b16 %v1290
      %v2040 = vunpack.c.l.b16 %v1291
      %v2041 = vunpack.c.l.b16 %v1292
      %v2042 = vunpack.c.l.b16 %v1293
      %v2043 = vunpack.c.l.b16 %v1294
      %v2044 = vpack.c.b16 %v2029, %v2028
      %v2045 = vpack.c.b16 %v2031, %v2030
      %v2046 = vpack.c.b16 %v2033, %v2032
      %v2047 = vpack.c.b16 %v2035, %v2034
      %v2048 = vpack.c.b16 %v2037, %v2036
      %v2049 = vpack.c.b16 %v2039, %v2038
      %v2050 = vpack.c.b16 %v2041, %v2040
      %v2051 = vpack.c.b16 %v2043, %v2042
      %2060 = vmatpush.bf16.msra.mxu0 %v2051
      %2061 = vmatpush.bf16.msra.mxu0 %v2050
      %2062 = vmatpush.bf16.msra.mxu0 %v2049
      %2063 = vmatpush.bf16.msra.mxu0 %v2048
      %2064 = vmatpush.bf16.msra.mxu0 %v2047
      %2065 = vmatpush.bf16.msra.mxu0 %v2046
      %2066 = vmatpush.bf16.msra.mxu0 %v2045
      %2067 = vmatpush.bf16.msra.mxu0 %v2044
      %2068 = vmatmul.bf16.gmra.mxu0 %v1980
      %v2069 = vpop.f32.mrf.mxu0
      %v2070 = vadd.f32 %v1837, %v2069
      %v2071 = vpop.f32.mrf.mxu0
      %v2072 = vadd.f32 %v1839, %v2071
      %2073 = vmatmul.bf16.gmra.mxu0 %v1981
      %v2074 = vpop.f32.mrf.mxu0
      %v2075 = vadd.f32 %v1842, %v2074
      %v2076 = vpop.f32.mrf.mxu0
      %v2077 = vadd.f32 %v1844, %v2076
      %2078 = vmatmul.bf16.gmra.mxu0 %v1982
      %v2079 = vpop.f32.mrf.mxu0
      %v2080 = vadd.f32 %v1847, %v2079
      %v2081 = vpop.f32.mrf.mxu0
      %v2082 = vadd.f32 %v1849, %v2081
      %2083 = vmatmul.bf16.gmra.mxu0 %v1983
      %v2084 = vpop.f32.mrf.mxu0
      %v2085 = vadd.f32 %v1852, %v2084
      %v2086 = vpop.f32.mrf.mxu0
      %v2087 = vadd.f32 %v1854, %v2086
      %2088 = vmatmul.bf16.gmra.mxu0 %v1984
      %v2089 = vpop.f32.mrf.mxu0
      %v2090 = vadd.f32 %v1857, %v2089
      %v2091 = vpop.f32.mrf.mxu0
      %v2092 = vadd.f32 %v1859, %v2091
      %2093 = vmatmul.bf16.gmra.mxu0 %v1985
      %v2094 = vpop.f32.mrf.mxu0
      %v2095 = vadd.f32 %v1862, %v2094
      %v2096 = vpop.f32.mrf.mxu0
      %v2097 = vadd.f32 %v1864, %v2096
      %2098 = vmatmul.bf16.gmra.mxu0 %v1986
      %v2099 = vpop.f32.mrf.mxu0
      %v2100 = vadd.f32 %v1867, %v2099
      %v2101 = vpop.f32.mrf.mxu0
      %v2102 = vadd.f32 %v1869, %v2101
      %2103 = vmatmul.bf16.gmra.mxu0 %v1987
      %v2104 = vpop.f32.mrf.mxu0
      %v2105 = vadd.f32 %v1872, %v2104
      %v2106 = vpop.f32.mrf.mxu0
      %v2107 = vadd.f32 %v1874, %v2106
      %2108 = vmatmul.bf16.gmra.mxu0 %v1988
      %v2109 = vpop.f32.mrf.mxu0
      %v2110 = vadd.f32 %v1877, %v2109
      %v2111 = vpop.f32.mrf.mxu0
      %v2112 = vadd.f32 %v1879, %v2111
      %2113 = vmatmul.bf16.gmra.mxu0 %v1989
      %v2114 = vpop.f32.mrf.mxu0
      %v2115 = vadd.f32 %v1882, %v2114
      %v2116 = vpop.f32.mrf.mxu0
      %v2117 = vadd.f32 %v1884, %v2116
      %2118 = vmatmul.bf16.gmra.mxu0 %v1990
      %v2119 = vpop.f32.mrf.mxu0
      %v2120 = vadd.f32 %v1887, %v2119
      %v2121 = vpop.f32.mrf.mxu0
      %v2122 = vadd.f32 %v1889, %v2121
      %2123 = vmatmul.bf16.gmra.mxu0 %v1991
      %v2124 = vpop.f32.mrf.mxu0
      %v2125 = vadd.f32 %v1892, %v2124
      %v2126 = vpop.f32.mrf.mxu0
      %v2127 = vadd.f32 %v1894, %v2126
      %2128 = vmatmul.bf16.gmra.mxu0 %v1992
      %v2129 = vpop.f32.mrf.mxu0
      %v2130 = vadd.f32 %v1897, %v2129
      %v2131 = vpop.f32.mrf.mxu0
      %v2132 = vadd.f32 %v1899, %v2131
      %2133 = vmatmul.bf16.gmra.mxu0 %v1993
      %v2134 = vpop.f32.mrf.mxu0
      %v2135 = vadd.f32 %v1902, %v2134
      %v2136 = vpop.f32.mrf.mxu0
      %v2137 = vadd.f32 %v1904, %v2136
      %2138 = vmatmul.bf16.gmra.mxu0 %v1994
      %v2139 = vpop.f32.mrf.mxu0
      %v2140 = vadd.f32 %v1907, %v2139
      %v2141 = vpop.f32.mrf.mxu0
      %v2142 = vadd.f32 %v1909, %v2141
      %2143 = vmatmul.bf16.gmra.mxu0 %v1995
      %v2144 = vpop.f32.mrf.mxu0
      %v2145 = vadd.f32 %v1912, %v2144
      %v2146 = vpop.f32.mrf.mxu0
      %v2147 = vadd.f32 %v1914, %v2146
      %2148 = vdwg.mxu0
      %v2149 = vld [vmem:[#allocation2] sm:$0xe]
      %v2150 = vld [vmem:[#allocation2 + $0xc] sm:$0xe]
      %v2151 = vld [vmem:[#allocation2 + $0x18] sm:$0xe]
      %v2152 = vld [vmem:[#allocation2 + $0x24] sm:$0xe]
      %v2153 = vld [vmem:[#allocation2 + $0x30] sm:$0xe]
      %v2154 = vld [vmem:[#allocation2 + $0x3c] sm:$0xe]
      %v2155 = vld [vmem:[#allocation2 + $0x48] sm:$0xe]
      %v2156 = vld [vmem:[#allocation2 + $0x54] sm:$0xe]
      %v2157 = vld [vmem:[#allocation2 + $0x60] sm:$0xe]
      %v2158 = vld [vmem:[#allocation2 + $0x6c] sm:$0xe]
      %v2159 = vld [vmem:[#allocation2 + $0x78] sm:$0xe]
      %v2160 = vld [vmem:[#allocation2 + $0x84] sm:$0xe]
      %v2161 = vld [vmem:[#allocation2 + $0x90] sm:$0xe]
      %v2162 = vld [vmem:[#allocation2 + $0x9c] sm:$0xe]
      %v2163 = vld [vmem:[#allocation2 + $0xa8] sm:$0xe]
      %v2164 = vld [vmem:[#allocation2 + $0xb4] sm:$0xe]
      %s2165 = scalar_lea.vmem %s4, 128
      %v2166 = vld [vmem:[%s2165] sm:$0xf]
      %v2167 = vld [vmem:[%s2165 + $0x4] sm:$0xf]
      %v2168 = vld [vmem:[%s2165 + $0x8] sm:$0xf]
      %v2169 = vld [vmem:[%s2165 + $0xc] sm:$0xf]
      %v2170 = vld [vmem:[%s2165 + $0x10] sm:$0xf]
      %v2171 = vld [vmem:[%s2165 + $0x14] sm:$0xf]
      %v2172 = vld [vmem:[%s2165 + $0x18] sm:$0xf]
      %v2173 = vld [vmem:[%s2165 + $0x1c] sm:$0xf]
      %v2174 = vld [vmem:[%s2165 + $0x20] sm:$0xf]
      %v2175 = vld [vmem:[%s2165 + $0x24] sm:$0xf]
      %v2176 = vld [vmem:[%s2165 + $0x28] sm:$0xf]
      %v2177 = vld [vmem:[%s2165 + $0x2c] sm:$0xf]
      %v2178 = vld [vmem:[%s2165 + $0x30] sm:$0xf]
      %v2179 = vld [vmem:[%s2165 + $0x34] sm:$0xf]
      %v2180 = vld [vmem:[%s2165 + $0x38] sm:$0xf]
      %v2181 = vld [vmem:[%s2165 + $0x3c] sm:$0xf]
      %vm2214 = vcmask 1042432
      %vm2215 = vcmask 1046532
      %vm2216 = vmor %vm2214, %vm2215
      %v2217 = vrot.slane %v2149, 5
      %v2218 = vrot.slane %v2217, 4
      %v2219 = vrot.slane %v1248, 5
      %v2220 = vsel %vm2216, %v2218, %v2219
      %v2221 = vrot.slane %v2219, 4
      %v2222 = vrot.slane %v1295, 5
      %v2223 = vsel %vm2216, %v2221, %v2222
      %v2224 = vrot.slane %v2150, 5
      %v2225 = vrot.slane %v2224, 4
      %v2226 = vrot.slane %v1250, 5
      %v2227 = vsel %vm2216, %v2225, %v2226
      %v2228 = vrot.slane %v2226, 4
      %v2229 = vrot.slane %v1296, 5
      %v2230 = vsel %vm2216, %v2228, %v2229
      %v2231 = vrot.slane %v2151, 5
      %v2232 = vrot.slane %v2231, 4
      %v2233 = vrot.slane %v1252, 5
      %v2234 = vsel %vm2216, %v2232, %v2233
      %v2235 = vrot.slane %v2233, 4
      %v2236 = vrot.slane %v1297, 5
      %v2237 = vsel %vm2216, %v2235, %v2236
      %v2238 = vrot.slane %v2152, 5
      %v2239 = vrot.slane %v2238, 4
      %v2240 = vrot.slane %v1254, 5
      %v2241 = vsel %vm2216, %v2239, %v2240
      %v2242 = vrot.slane %v2240, 4
      %v2243 = vrot.slane %v1298, 5
      %v2244 = vsel %vm2216, %v2242, %v2243
      %v2245 = vrot.slane %v2153, 5
      %v2246 = vrot.slane %v2245, 4
      %v2247 = vrot.slane %v1256, 5
      %v2248 = vsel %vm2216, %v2246, %v2247
      %v2249 = vrot.slane %v2247, 4
      %v2250 = vrot.slane %v1299, 5
      %v2251 = vsel %vm2216, %v2249, %v2250
      %v2252 = vrot.slane %v2154, 5
      %v2253 = vrot.slane %v2252, 4
      %v2254 = vrot.slane %v1258, 5
      %v2255 = vsel %vm2216, %v2253, %v2254
      %v2256 = vrot.slane %v2254, 4
      %v2257 = vrot.slane %v1300, 5
      %v2258 = vsel %vm2216, %v2256, %v2257
      %v2259 = vrot.slane %v2155, 5
      %v2260 = vrot.slane %v2259, 4
      %v2261 = vrot.slane %v1260, 5
      %v2262 = vsel %vm2216, %v2260, %v2261
      %v2263 = vrot.slane %v2261, 4
      %v2264 = vrot.slane %v1301, 5
      %v2265 = vsel %vm2216, %v2263, %v2264
      %v2266 = vrot.slane %v2156, 5
      %v2267 = vrot.slane %v2266, 4
      %v2268 = vrot.slane %v1262, 5
      %v2269 = vsel %vm2216, %v2267, %v2268
      %v2270 = vrot.slane %v2268, 4
      %v2271 = vrot.slane %v1302, 5
      %v2272 = vsel %vm2216, %v2270, %v2271
      %v2273 = vrot.slane %v2157, 5
      %v2274 = vrot.slane %v2273, 4
      %v2275 = vrot.slane %v1264, 5
      %v2276 = vsel %vm2216, %v2274, %v2275
      %v2277 = vrot.slane %v2275, 4
      %v2278 = vrot.slane %v1303, 5
      %v2279 = vsel %vm2216, %v2277, %v2278
      %v2280 = vrot.slane %v2158, 5
      %v2281 = vrot.slane %v2280, 4
      %v2282 = vrot.slane %v1266, 5
      %v2283 = vsel %vm2216, %v2281, %v2282
      %v2284 = vrot.slane %v2282, 4
      %v2285 = vrot.slane %v1304, 5
      %v2286 = vsel %vm2216, %v2284, %v2285
      %v2287 = vrot.slane %v2159, 5
      %v2288 = vrot.slane %v2287, 4
      %v2289 = vrot.slane %v1268, 5
      %v2290 = vsel %vm2216, %v2288, %v2289
      %v2291 = vrot.slane %v2289, 4
      %v2292 = vrot.slane %v1305, 5
      %v2293 = vsel %vm2216, %v2291, %v2292
      %v2294 = vrot.slane %v2160, 5
      %v2295 = vrot.slane %v2294, 4
      %v2296 = vrot.slane %v1270, 5
      %v2297 = vsel %vm2216, %v2295, %v2296
      %v2298 = vrot.slane %v2296, 4
      %v2299 = vrot.slane %v1306, 5
      %v2300 = vsel %vm2216, %v2298, %v2299
      %v2301 = vrot.slane %v2161, 5
      %v2302 = vrot.slane %v2301, 4
      %v2303 = vrot.slane %v1272, 5
      %v2304 = vsel %vm2216, %v2302, %v2303
      %v2305 = vrot.slane %v2303, 4
      %v2306 = vrot.slane %v1307, 5
      %v2307 = vsel %vm2216, %v2305, %v2306
      %v2308 = vrot.slane %v2162, 5
      %v2309 = vrot.slane %v2308, 4
      %v2310 = vrot.slane %v1274, 5
      %v2311 = vsel %vm2216, %v2309, %v2310
      %v2312 = vrot.slane %v2310, 4
      %v2313 = vrot.slane %v1308, 5
      %v2314 = vsel %vm2216, %v2312, %v2313
      %v2315 = vrot.slane %v2163, 5
      %v2316 = vrot.slane %v2315, 4
      %v2317 = vrot.slane %v1276, 5
      %v2318 = vsel %vm2216, %v2316, %v2317
      %v2319 = vrot.slane %v2317, 4
      %v2320 = vrot.slane %v1309, 5
      %v2321 = vsel %vm2216, %v2319, %v2320
      %v2322 = vrot.slane %v2164, 5
      %v2323 = vrot.slane %v2322, 4
      %v2324 = vrot.slane %v1278, 5
      %v2325 = vsel %vm2216, %v2323, %v2324
      %v2326 = vrot.slane %v2324, 4
      %v2327 = vrot.slane %v1310, 5
      %v2328 = vsel %vm2216, %v2326, %v2327
      %v2329 = vunpack.c.l.b16 %v2220
      %v2330 = vunpack.c.l.b16 %v2223
      %v2331 = vunpack.c.l.b16 %v2227
      %v2332 = vunpack.c.l.b16 %v2230
      %v2333 = vunpack.c.l.b16 %v2234
      %v2334 = vunpack.c.l.b16 %v2237
      %v2335 = vunpack.c.l.b16 %v2241
      %v2336 = vunpack.c.l.b16 %v2244
      %v2337 = vunpack.c.l.b16 %v2248
      %v2338 = vunpack.c.l.b16 %v2251
      %v2339 = vunpack.c.l.b16 %v2255
      %v2340 = vunpack.c.l.b16 %v2258
      %v2341 = vunpack.c.l.b16 %v2262
      %v2342 = vunpack.c.l.b16 %v2265
      %v2343 = vunpack.c.l.b16 %v2269
      %v2344 = vunpack.c.l.b16 %v2272
      %v2345 = vunpack.c.l.b16 %v2276
      %v2346 = vunpack.c.l.b16 %v2279
      %v2347 = vunpack.c.l.b16 %v2283
      %v2348 = vunpack.c.l.b16 %v2286
      %v2349 = vunpack.c.l.b16 %v2290
      %v2350 = vunpack.c.l.b16 %v2293
      %v2351 = vunpack.c.l.b16 %v2297
      %v2352 = vunpack.c.l.b16 %v2300
      %v2353 = vunpack.c.l.b16 %v2304
      %v2354 = vunpack.c.l.b16 %v2307
      %v2355 = vunpack.c.l.b16 %v2311
      %v2356 = vunpack.c.l.b16 %v2314
      %v2357 = vunpack.c.l.b16 %v2318
      %v2358 = vunpack.c.l.b16 %v2321
      %v2359 = vunpack.c.l.b16 %v2325
      %v2360 = vunpack.c.l.b16 %v2328
      %v2361 = vpack.c.b16 %v2330, %v2329
      %v2362 = vpack.c.b16 %v2332, %v2331
      %v2363 = vpack.c.b16 %v2334, %v2333
      %v2364 = vpack.c.b16 %v2336, %v2335
      %v2365 = vpack.c.b16 %v2338, %v2337
      %v2366 = vpack.c.b16 %v2340, %v2339
      %v2367 = vpack.c.b16 %v2342, %v2341
      %v2368 = vpack.c.b16 %v2344, %v2343
      %v2369 = vpack.c.b16 %v2346, %v2345
      %v2370 = vpack.c.b16 %v2348, %v2347
      %v2371 = vpack.c.b16 %v2350, %v2349
      %v2372 = vpack.c.b16 %v2352, %v2351
      %v2373 = vpack.c.b16 %v2354, %v2353
      %v2374 = vpack.c.b16 %v2356, %v2355
      %v2375 = vpack.c.b16 %v2358, %v2357
      %v2376 = vpack.c.b16 %v2360, %v2359
      %v2409 = vunpack.c.l.b16 %v2166
      %v2410 = vunpack.c.l.b16 %v2167
      %v2411 = vunpack.c.l.b16 %v2168
      %v2412 = vunpack.c.l.b16 %v2169
      %v2413 = vunpack.c.l.b16 %v2170
      %v2414 = vunpack.c.l.b16 %v2171
      %v2415 = vunpack.c.l.b16 %v2172
      %v2416 = vunpack.c.l.b16 %v2173
      %v2417 = vunpack.c.l.b16 %v2174
      %v2418 = vunpack.c.l.b16 %v2175
      %v2419 = vunpack.c.l.b16 %v2176
      %v2420 = vunpack.c.l.b16 %v2177
      %v2421 = vunpack.c.l.b16 %v2178
      %v2422 = vunpack.c.l.b16 %v2179
      %v2423 = vunpack.c.l.b16 %v2180
      %v2424 = vunpack.c.l.b16 %v2181
      %v2425 = vpack.c.b16 %v2410, %v2409
      %v2426 = vpack.c.b16 %v2412, %v2411
      %v2427 = vpack.c.b16 %v2414, %v2413
      %v2428 = vpack.c.b16 %v2416, %v2415
      %v2429 = vpack.c.b16 %v2418, %v2417
      %v2430 = vpack.c.b16 %v2420, %v2419
      %v2431 = vpack.c.b16 %v2422, %v2421
      %v2432 = vpack.c.b16 %v2424, %v2423
      %2441 = vmatpush.bf16.msra.mxu0 %v2432
      %2442 = vmatpush.bf16.msra.mxu0 %v2431
      %2443 = vmatpush.bf16.msra.mxu0 %v2430
      %2444 = vmatpush.bf16.msra.mxu0 %v2429
      %2445 = vmatpush.bf16.msra.mxu0 %v2428
      %2446 = vmatpush.bf16.msra.mxu0 %v2427
      %2447 = vmatpush.bf16.msra.mxu0 %v2426
      %2448 = vmatpush.bf16.msra.mxu0 %v2425
      %2449 = vmatmul.bf16.gmra.mxu0 %v2361
      %v2450 = vpop.f32.mrf.mxu0
      %v2451 = vadd.f32 0.0, %v2450
      %v2452 = vpop.f32.mrf.mxu0
      %v2453 = vadd.f32 0.0, %v2452
      %2454 = vmatmul.bf16.gmra.mxu0 %v2362
      %v2455 = vpop.f32.mrf.mxu0
      %v2456 = vadd.f32 0.0, %v2455
      %v2457 = vpop.f32.mrf.mxu0
      %v2458 = vadd.f32 0.0, %v2457
      %2459 = vmatmul.bf16.gmra.mxu0 %v2363
      %v2460 = vpop.f32.mrf.mxu0
      %v2461 = vadd.f32 0.0, %v2460
      %v2462 = vpop.f32.mrf.mxu0
      %v2463 = vadd.f32 0.0, %v2462
      %2464 = vmatmul.bf16.gmra.mxu0 %v2364
      %v2465 = vpop.f32.mrf.mxu0
      %v2466 = vadd.f32 0.0, %v2465
      %v2467 = vpop.f32.mrf.mxu0
      %v2468 = vadd.f32 0.0, %v2467
      %2469 = vmatmul.bf16.gmra.mxu0 %v2365
      %v2470 = vpop.f32.mrf.mxu0
      %v2471 = vadd.f32 0.0, %v2470
      %v2472 = vpop.f32.mrf.mxu0
      %v2473 = vadd.f32 0.0, %v2472
      %2474 = vmatmul.bf16.gmra.mxu0 %v2366
      %v2475 = vpop.f32.mrf.mxu0
      %v2476 = vadd.f32 0.0, %v2475
      %v2477 = vpop.f32.mrf.mxu0
      %v2478 = vadd.f32 0.0, %v2477
      %2479 = vmatmul.bf16.gmra.mxu0 %v2367
      %v2480 = vpop.f32.mrf.mxu0
      %v2481 = vadd.f32 0.0, %v2480
      %v2482 = vpop.f32.mrf.mxu0
      %v2483 = vadd.f32 0.0, %v2482
      %2484 = vmatmul.bf16.gmra.mxu0 %v2368
      %v2485 = vpop.f32.mrf.mxu0
      %v2486 = vadd.f32 0.0, %v2485
      %v2487 = vpop.f32.mrf.mxu0
      %v2488 = vadd.f32 0.0, %v2487
      %2489 = vmatmul.bf16.gmra.mxu0 %v2369
      %v2490 = vpop.f32.mrf.mxu0
      %v2491 = vadd.f32 0.0, %v2490
      %v2492 = vpop.f32.mrf.mxu0
      %v2493 = vadd.f32 0.0, %v2492
      %2494 = vmatmul.bf16.gmra.mxu0 %v2370
      %v2495 = vpop.f32.mrf.mxu0
      %v2496 = vadd.f32 0.0, %v2495
      %v2497 = vpop.f32.mrf.mxu0
      %v2498 = vadd.f32 0.0, %v2497
      %2499 = vmatmul.bf16.gmra.mxu0 %v2371
      %v2500 = vpop.f32.mrf.mxu0
      %v2501 = vadd.f32 0.0, %v2500
      %v2502 = vpop.f32.mrf.mxu0
      %v2503 = vadd.f32 0.0, %v2502
      %2504 = vmatmul.bf16.gmra.mxu0 %v2372
      %v2505 = vpop.f32.mrf.mxu0
      %v2506 = vadd.f32 0.0, %v2505
      %v2507 = vpop.f32.mrf.mxu0
      %v2508 = vadd.f32 0.0, %v2507
      %2509 = vmatmul.bf16.gmra.mxu0 %v2373
      %v2510 = vpop.f32.mrf.mxu0
      %v2511 = vadd.f32 0.0, %v2510
      %v2512 = vpop.f32.mrf.mxu0
      %v2513 = vadd.f32 0.0, %v2512
      %2514 = vmatmul.bf16.gmra.mxu0 %v2374
      %v2515 = vpop.f32.mrf.mxu0
      %v2516 = vadd.f32 0.0, %v2515
      %v2517 = vpop.f32.mrf.mxu0
      %v2518 = vadd.f32 0.0, %v2517
      %2519 = vmatmul.bf16.gmra.mxu0 %v2375
      %v2520 = vpop.f32.mrf.mxu0
      %v2521 = vadd.f32 0.0, %v2520
      %v2522 = vpop.f32.mrf.mxu0
      %v2523 = vadd.f32 0.0, %v2522
      %2524 = vmatmul.bf16.gmra.mxu0 %v2376
      %v2525 = vpop.f32.mrf.mxu0
      %v2526 = vadd.f32 0.0, %v2525
      %v2527 = vpop.f32.mrf.mxu0
      %v2528 = vadd.f32 0.0, %v2527
      %2529 = vdwg.mxu0
      %v2530 = vadd.f32 %v2070, %v2451
      %v2531 = vadd.f32 %v2072, %v2453
      %v2532 = vadd.f32 %v2075, %v2456
      %v2533 = vadd.f32 %v2077, %v2458
      %v2534 = vadd.f32 %v2080, %v2461
      %v2535 = vadd.f32 %v2082, %v2463
      %v2536 = vadd.f32 %v2085, %v2466
      %v2537 = vadd.f32 %v2087, %v2468
      %v2538 = vadd.f32 %v2090, %v2471
      %v2539 = vadd.f32 %v2092, %v2473
      %v2540 = vadd.f32 %v2095, %v2476
      %v2541 = vadd.f32 %v2097, %v2478
      %v2542 = vadd.f32 %v2100, %v2481
      %v2543 = vadd.f32 %v2102, %v2483
      %v2544 = vadd.f32 %v2105, %v2486
      %v2545 = vadd.f32 %v2107, %v2488
      %v2546 = vadd.f32 %v2110, %v2491
      %v2547 = vadd.f32 %v2112, %v2493
      %v2548 = vadd.f32 %v2115, %v2496
      %v2549 = vadd.f32 %v2117, %v2498
      %v2550 = vadd.f32 %v2120, %v2501
      %v2551 = vadd.f32 %v2122, %v2503
      %v2552 = vadd.f32 %v2125, %v2506
      %v2553 = vadd.f32 %v2127, %v2508
      %v2554 = vadd.f32 %v2130, %v2511
      %v2555 = vadd.f32 %v2132, %v2513
      %v2556 = vadd.f32 %v2135, %v2516
      %v2557 = vadd.f32 %v2137, %v2518
      %v2558 = vadd.f32 %v2140, %v2521
      %v2559 = vadd.f32 %v2142, %v2523
      %v2560 = vadd.f32 %v2145, %v2526
      %v2561 = vadd.f32 %v2147, %v2528
      %v2562 = vld [vmem:[%s1132] sm:$0xf]
      %v2563 = vld [vmem:[%s1132 + $0x4] sm:$0xf]
      %v2564 = vld [vmem:[%s1132 + $0xc] sm:$0xf]
      %v2565 = vld [vmem:[%s1132 + $0x10] sm:$0xf]
      %v2566 = vld [vmem:[%s1132 + $0x18] sm:$0xf]
      %v2567 = vld [vmem:[%s1132 + $0x1c] sm:$0xf]
      %v2568 = vld [vmem:[%s1132 + $0x24] sm:$0xf]
      %v2569 = vld [vmem:[%s1132 + $0x28] sm:$0xf]
      %v2570 = vld [vmem:[%s1132 + $0x30] sm:$0xf]
      %v2571 = vld [vmem:[%s1132 + $0x34] sm:$0xf]
      %v2572 = vld [vmem:[%s1132 + $0x3c] sm:$0xf]
      %v2573 = vld [vmem:[%s1132 + $0x40] sm:$0xf]
      %v2574 = vld [vmem:[%s1132 + $0x48] sm:$0xf]
      %v2575 = vld [vmem:[%s1132 + $0x4c] sm:$0xf]
      %v2576 = vld [vmem:[%s1132 + $0x54] sm:$0xf]
      %v2577 = vld [vmem:[%s1132 + $0x58] sm:$0xf]
      %v2578 = vld [vmem:[%s1132 + $0x60] sm:$0xf]
      %v2579 = vld [vmem:[%s1132 + $0x64] sm:$0xf]
      %v2580 = vld [vmem:[%s1132 + $0x6c] sm:$0xf]
      %v2581 = vld [vmem:[%s1132 + $0x70] sm:$0xf]
      %v2582 = vld [vmem:[%s1132 + $0x78] sm:$0xf]
      %v2583 = vld [vmem:[%s1132 + $0x7c] sm:$0xf]
      %v2584 = vld [vmem:[%s1132 + $0x84] sm:$0xf]
      %v2585 = vld [vmem:[%s1132 + $0x88] sm:$0xf]
      %v2586 = vld [vmem:[%s1132 + $0x90] sm:$0xf]
      %v2587 = vld [vmem:[%s1132 + $0x94] sm:$0xf]
      %v2588 = vld [vmem:[%s1132 + $0x9c] sm:$0xf]
      %v2589 = vld [vmem:[%s1132 + $0xa0] sm:$0xf]
      %v2590 = vld [vmem:[%s1132 + $0xa8] sm:$0xf]
      %v2591 = vld [vmem:[%s1132 + $0xac] sm:$0xf]
      %v2592 = vld [vmem:[%s1132 + $0xb4] sm:$0xf]
      %v2593 = vld [vmem:[%s1132 + $0xb8] sm:$0xf]
      %s2594 = scalar_lea.vmem %s4, 192
      %v2595 = vld [vmem:[%s2594] sm:$0xf]
      %v2596 = vld [vmem:[%s2594 + $0x4] sm:$0xf]
      %v2597 = vld [vmem:[%s2594 + $0x8] sm:$0xf]
      %v2598 = vld [vmem:[%s2594 + $0xc] sm:$0xf]
      %v2599 = vld [vmem:[%s2594 + $0x10] sm:$0xf]
      %v2600 = vld [vmem:[%s2594 + $0x14] sm:$0xf]
      %v2601 = vld [vmem:[%s2594 + $0x18] sm:$0xf]
      %v2602 = vld [vmem:[%s2594 + $0x1c] sm:$0xf]
      %v2603 = vld [vmem:[%s2594 + $0x20] sm:$0xf]
      %v2604 = vld [vmem:[%s2594 + $0x24] sm:$0xf]
      %v2605 = vld [vmem:[%s2594 + $0x28] sm:$0xf]
      %v2606 = vld [vmem:[%s2594 + $0x2c] sm:$0xf]
      %v2607 = vld [vmem:[%s2594 + $0x30] sm:$0xf]
      %v2608 = vld [vmem:[%s2594 + $0x34] sm:$0xf]
      %v2609 = vld [vmem:[%s2594 + $0x38] sm:$0xf]
      %v2610 = vld [vmem:[%s2594 + $0x3c] sm:$0xf]
      %v2643 = vunpack.c.l.b16 %v2562
      %v2644 = vunpack.c.l.b16 %v2563
      %v2645 = vunpack.c.l.b16 %v2564
      %v2646 = vunpack.c.l.b16 %v2565
      %v2647 = vunpack.c.l.b16 %v2566
      %v2648 = vunpack.c.l.b16 %v2567
      %v2649 = vunpack.c.l.b16 %v2568
      %v2650 = vunpack.c.l.b16 %v2569
      %v2651 = vunpack.c.l.b16 %v2570
      %v2652 = vunpack.c.l.b16 %v2571
      %v2653 = vunpack.c.l.b16 %v2572
      %v2654 = vunpack.c.l.b16 %v2573
      %v2655 = vunpack.c.l.b16 %v2574
      %v2656 = vunpack.c.l.b16 %v2575
      %v2657 = vunpack.c.l.b16 %v2576
      %v2658 = vunpack.c.l.b16 %v2577
      %v2659 = vunpack.c.l.b16 %v2578
      %v2660 = vunpack.c.l.b16 %v2579
      %v2661 = vunpack.c.l.b16 %v2580
      %v2662 = vunpack.c.l.b16 %v2581
      %v2663 = vunpack.c.l.b16 %v2582
      %v2664 = vunpack.c.l.b16 %v2583
      %v2665 = vunpack.c.l.b16 %v2584
      %v2666 = vunpack.c.l.b16 %v2585
      %v2667 = vunpack.c.l.b16 %v2586
      %v2668 = vunpack.c.l.b16 %v2587
      %v2669 = vunpack.c.l.b16 %v2588
      %v2670 = vunpack.c.l.b16 %v2589
      %v2671 = vunpack.c.l.b16 %v2590
      %v2672 = vunpack.c.l.b16 %v2591
      %v2673 = vunpack.c.l.b16 %v2592
      %v2674 = vunpack.c.l.b16 %v2593
      %v2675 = vpack.c.b16 %v2644, %v2643
      %v2676 = vpack.c.b16 %v2646, %v2645
      %v2677 = vpack.c.b16 %v2648, %v2647
      %v2678 = vpack.c.b16 %v2650, %v2649
      %v2679 = vpack.c.b16 %v2652, %v2651
      %v2680 = vpack.c.b16 %v2654, %v2653
      %v2681 = vpack.c.b16 %v2656, %v2655
      %v2682 = vpack.c.b16 %v2658, %v2657
      %v2683 = vpack.c.b16 %v2660, %v2659
      %v2684 = vpack.c.b16 %v2662, %v2661
      %v2685 = vpack.c.b16 %v2664, %v2663
      %v2686 = vpack.c.b16 %v2666, %v2665
      %v2687 = vpack.c.b16 %v2668, %v2667
      %v2688 = vpack.c.b16 %v2670, %v2669
      %v2689 = vpack.c.b16 %v2672, %v2671
      %v2690 = vpack.c.b16 %v2674, %v2673
      %v2723 = vunpack.c.l.b16 %v2595
      %v2724 = vunpack.c.l.b16 %v2596
      %v2725 = vunpack.c.l.b16 %v2597
      %v2726 = vunpack.c.l.b16 %v2598
      %v2727 = vunpack.c.l.b16 %v2599
      %v2728 = vunpack.c.l.b16 %v2600
      %v2729 = vunpack.c.l.b16 %v2601
      %v2730 = vunpack.c.l.b16 %v2602
      %v2731 = vunpack.c.l.b16 %v2603
      %v2732 = vunpack.c.l.b16 %v2604
      %v2733 = vunpack.c.l.b16 %v2605
      %v2734 = vunpack.c.l.b16 %v2606
      %v2735 = vunpack.c.l.b16 %v2607
      %v2736 = vunpack.c.l.b16 %v2608
      %v2737 = vunpack.c.l.b16 %v2609
      %v2738 = vunpack.c.l.b16 %v2610
      %v2739 = vpack.c.b16 %v2724, %v2723
      %v2740 = vpack.c.b16 %v2726, %v2725
      %v2741 = vpack.c.b16 %v2728, %v2727
      %v2742 = vpack.c.b16 %v2730, %v2729
      %v2743 = vpack.c.b16 %v2732, %v2731
      %v2744 = vpack.c.b16 %v2734, %v2733
      %v2745 = vpack.c.b16 %v2736, %v2735
      %v2746 = vpack.c.b16 %v2738, %v2737
      %2755 = vmatpush.bf16.msra.mxu0 %v2746
      %2756 = vmatpush.bf16.msra.mxu0 %v2745
      %2757 = vmatpush.bf16.msra.mxu0 %v2744
      %2758 = vmatpush.bf16.msra.mxu0 %v2743
      %2759 = vmatpush.bf16.msra.mxu0 %v2742
      %2760 = vmatpush.bf16.msra.mxu0 %v2741
      %2761 = vmatpush.bf16.msra.mxu0 %v2740
      %2762 = vmatpush.bf16.msra.mxu0 %v2739
      %2763 = vmatmul.bf16.gmra.mxu0 %v2675
      %v2764 = vpop.f32.mrf.mxu0
      %v2765 = vadd.f32 0.0, %v2764
      %v2766 = vpop.f32.mrf.mxu0
      %v2767 = vadd.f32 0.0, %v2766
      %2768 = vmatmul.bf16.gmra.mxu0 %v2676
      %v2769 = vpop.f32.mrf.mxu0
      %v2770 = vadd.f32 0.0, %v2769
      %v2771 = vpop.f32.mrf.mxu0
      %v2772 = vadd.f32 0.0, %v2771
      %2773 = vmatmul.bf16.gmra.mxu0 %v2677
      %v2774 = vpop.f32.mrf.mxu0
      %v2775 = vadd.f32 0.0, %v2774
      %v2776 = vpop.f32.mrf.mxu0
      %v2777 = vadd.f32 0.0, %v2776
      %2778 = vmatmul.bf16.gmra.mxu0 %v2678
      %v2779 = vpop.f32.mrf.mxu0
      %v2780 = vadd.f32 0.0, %v2779
      %v2781 = vpop.f32.mrf.mxu0
      %v2782 = vadd.f32 0.0, %v2781
      %2783 = vmatmul.bf16.gmra.mxu0 %v2679
      %v2784 = vpop.f32.mrf.mxu0
      %v2785 = vadd.f32 0.0, %v2784
      %v2786 = vpop.f32.mrf.mxu0
      %v2787 = vadd.f32 0.0, %v2786
      %2788 = vmatmul.bf16.gmra.mxu0 %v2680
      %v2789 = vpop.f32.mrf.mxu0
      %v2790 = vadd.f32 0.0, %v2789
      %v2791 = vpop.f32.mrf.mxu0
      %v2792 = vadd.f32 0.0, %v2791
      %2793 = vmatmul.bf16.gmra.mxu0 %v2681
      %v2794 = vpop.f32.mrf.mxu0
      %v2795 = vadd.f32 0.0, %v2794
      %v2796 = vpop.f32.mrf.mxu0
      %v2797 = vadd.f32 0.0, %v2796
      %2798 = vmatmul.bf16.gmra.mxu0 %v2682
      %v2799 = vpop.f32.mrf.mxu0
      %v2800 = vadd.f32 0.0, %v2799
      %v2801 = vpop.f32.mrf.mxu0
      %v2802 = vadd.f32 0.0, %v2801
      %2803 = vmatmul.bf16.gmra.mxu0 %v2683
      %v2804 = vpop.f32.mrf.mxu0
      %v2805 = vadd.f32 0.0, %v2804
      %v2806 = vpop.f32.mrf.mxu0
      %v2807 = vadd.f32 0.0, %v2806
      %2808 = vmatmul.bf16.gmra.mxu0 %v2684
      %v2809 = vpop.f32.mrf.mxu0
      %v2810 = vadd.f32 0.0, %v2809
      %v2811 = vpop.f32.mrf.mxu0
      %v2812 = vadd.f32 0.0, %v2811
      %2813 = vmatmul.bf16.gmra.mxu0 %v2685
      %v2814 = vpop.f32.mrf.mxu0
      %v2815 = vadd.f32 0.0, %v2814
      %v2816 = vpop.f32.mrf.mxu0
      %v2817 = vadd.f32 0.0, %v2816
      %2818 = vmatmul.bf16.gmra.mxu0 %v2686
      %v2819 = vpop.f32.mrf.mxu0
      %v2820 = vadd.f32 0.0, %v2819
      %v2821 = vpop.f32.mrf.mxu0
      %v2822 = vadd.f32 0.0, %v2821
      %2823 = vmatmul.bf16.gmra.mxu0 %v2687
      %v2824 = vpop.f32.mrf.mxu0
      %v2825 = vadd.f32 0.0, %v2824
      %v2826 = vpop.f32.mrf.mxu0
      %v2827 = vadd.f32 0.0, %v2826
      %2828 = vmatmul.bf16.gmra.mxu0 %v2688
      %v2829 = vpop.f32.mrf.mxu0
      %v2830 = vadd.f32 0.0, %v2829
      %v2831 = vpop.f32.mrf.mxu0
      %v2832 = vadd.f32 0.0, %v2831
      %2833 = vmatmul.bf16.gmra.mxu0 %v2689
      %v2834 = vpop.f32.mrf.mxu0
      %v2835 = vadd.f32 0.0, %v2834
      %v2836 = vpop.f32.mrf.mxu0
      %v2837 = vadd.f32 0.0, %v2836
      %2838 = vmatmul.bf16.gmra.mxu0 %v2690
      %v2839 = vpop.f32.mrf.mxu0
      %v2840 = vadd.f32 0.0, %v2839
      %v2841 = vpop.f32.mrf.mxu0
      %v2842 = vadd.f32 0.0, %v2841
      %2843 = vdwg.mxu0
      %v2844 = vadd.f32 %v2530, %v2765
      %v2845 = vadd.f32 %v2531, %v2767
      %v2846 = vadd.f32 %v2532, %v2770
      %v2847 = vadd.f32 %v2533, %v2772
      %v2848 = vadd.f32 %v2534, %v2775
      %v2849 = vadd.f32 %v2535, %v2777
      %v2850 = vadd.f32 %v2536, %v2780
      %v2851 = vadd.f32 %v2537, %v2782
      %v2852 = vadd.f32 %v2538, %v2785
      %v2853 = vadd.f32 %v2539, %v2787
      %v2854 = vadd.f32 %v2540, %v2790
      %v2855 = vadd.f32 %v2541, %v2792
      %v2856 = vadd.f32 %v2542, %v2795
      %v2857 = vadd.f32 %v2543, %v2797
      %v2858 = vadd.f32 %v2544, %v2800
      %v2859 = vadd.f32 %v2545, %v2802
      %v2860 = vadd.f32 %v2546, %v2805
      %v2861 = vadd.f32 %v2547, %v2807
      %v2862 = vadd.f32 %v2548, %v2810
      %v2863 = vadd.f32 %v2549, %v2812
      %v2864 = vadd.f32 %v2550, %v2815
      %v2865 = vadd.f32 %v2551, %v2817
      %v2866 = vadd.f32 %v2552, %v2820
      %v2867 = vadd.f32 %v2553, %v2822
      %v2868 = vadd.f32 %v2554, %v2825
      %v2869 = vadd.f32 %v2555, %v2827
      %v2870 = vadd.f32 %v2556, %v2830
      %v2871 = vadd.f32 %v2557, %v2832
      %v2872 = vadd.f32 %v2558, %v2835
      %v2873 = vadd.f32 %v2559, %v2837
      %v2874 = vadd.f32 %v2560, %v2840
      %v2875 = vadd.f32 %v2561, %v2842
      %v2876 = vld [vmem:[%s1132] sm:$0xf]
      %v2877 = vld [vmem:[%s1132 + $0x4] sm:$0xf]
      %v2878 = vld [vmem:[%s1132 + $0x8] sm:$0x1]
      %v2879 = vld [vmem:[%s1132 + $0xc] sm:$0xf]
      %v2880 = vld [vmem:[%s1132 + $0x10] sm:$0xf]
      %v2881 = vld [vmem:[%s1132 + $0x14] sm:$0x1]
      %v2882 = vld [vmem:[%s1132 + $0x18] sm:$0xf]
      %v2883 = vld [vmem:[%s1132 + $0x1c] sm:$0xf]
      %v2884 = vld [vmem:[%s1132 + $0x20] sm:$0x1]
      %v2885 = vld [vmem:[%s1132 + $0x24] sm:$0xf]
      %v2886 = vld [vmem:[%s1132 + $0x28] sm:$0xf]
      %v2887 = vld [vmem:[%s1132 + $0x2c] sm:$0x1]
      %v2888 = vld [vmem:[%s1132 + $0x30] sm:$0xf]
      %v2889 = vld [vmem:[%s1132 + $0x34] sm:$0xf]
      %v2890 = vld [vmem:[%s1132 + $0x38] sm:$0x1]
      %v2891 = vld [vmem:[%s1132 + $0x3c] sm:$0xf]
      %v2892 = vld [vmem:[%s1132 + $0x40] sm:$0xf]
      %v2893 = vld [vmem:[%s1132 + $0x44] sm:$0x1]
      %v2894 = vld [vmem:[%s1132 + $0x48] sm:$0xf]
      %v2895 = vld [vmem:[%s1132 + $0x4c] sm:$0xf]
      %v2896 = vld [vmem:[%s1132 + $0x50] sm:$0x1]
      %v2897 = vld [vmem:[%s1132 + $0x54] sm:$0xf]
      %v2898 = vld [vmem:[%s1132 + $0x58] sm:$0xf]
      %v2899 = vld [vmem:[%s1132 + $0x5c] sm:$0x1]
      %v2900 = vld [vmem:[%s1132 + $0x60] sm:$0xf]
      %v2901 = vld [vmem:[%s1132 + $0x64] sm:$0xf]
      %v2902 = vld [vmem:[%s1132 + $0x68] sm:$0x1]
      %v2903 = vld [vmem:[%s1132 + $0x6c] sm:$0xf]
      %v2904 = vld [vmem:[%s1132 + $0x70] sm:$0xf]
      %v2905 = vld [vmem:[%s1132 + $0x74] sm:$0x1]
      %v2906 = vld [vmem:[%s1132 + $0x78] sm:$0xf]
      %v2907 = vld [vmem:[%s1132 + $0x7c] sm:$0xf]
      %v2908 = vld [vmem:[%s1132 + $0x80] sm:$0x1]
      %v2909 = vld [vmem:[%s1132 + $0x84] sm:$0xf]
      %v2910 = vld [vmem:[%s1132 + $0x88] sm:$0xf]
      %v2911 = vld [vmem:[%s1132 + $0x8c] sm:$0x1]
      %v2912 = vld [vmem:[%s1132 + $0x90] sm:$0xf]
      %v2913 = vld [vmem:[%s1132 + $0x94] sm:$0xf]
      %v2914 = vld [vmem:[%s1132 + $0x98] sm:$0x1]
      %v2915 = vld [vmem:[%s1132 + $0x9c] sm:$0xf]
      %v2916 = vld [vmem:[%s1132 + $0xa0] sm:$0xf]
      %v2917 = vld [vmem:[%s1132 + $0xa4] sm:$0x1]
      %v2918 = vld [vmem:[%s1132 + $0xa8] sm:$0xf]
      %v2919 = vld [vmem:[%s1132 + $0xac] sm:$0xf]
      %v2920 = vld [vmem:[%s1132 + $0xb0] sm:$0x1]
      %v2921 = vld [vmem:[%s1132 + $0xb4] sm:$0xf]
      %v2922 = vld [vmem:[%s1132 + $0xb8] sm:$0xf]
      %v2923 = vld [vmem:[%s1132 + $0xbc] sm:$0x1]
      %s2924 = scalar_lea.vmem %s4, 256
      %v2925 = vld [vmem:[%s2924] sm:$0xf]
      %v2926 = vld [vmem:[%s2924 + $0x4] sm:$0xf]
      %v2927 = vld [vmem:[%s2924 + $0x8] sm:$0xf]
      %v2928 = vld [vmem:[%s2924 + $0xc] sm:$0xf]
      %v2929 = vld [vmem:[%s2924 + $0x10] sm:$0xf]
      %v2930 = vld [vmem:[%s2924 + $0x14] sm:$0xf]
      %v2931 = vld [vmem:[%s2924 + $0x18] sm:$0xf]
      %v2932 = vld [vmem:[%s2924 + $0x1c] sm:$0xf]
      %v2933 = vld [vmem:[%s2924 + $0x20] sm:$0xf]
      %v2934 = vld [vmem:[%s2924 + $0x24] sm:$0xf]
      %v2935 = vld [vmem:[%s2924 + $0x28] sm:$0xf]
      %v2936 = vld [vmem:[%s2924 + $0x2c] sm:$0xf]
      %v2937 = vld [vmem:[%s2924 + $0x30] sm:$0xf]
      %v2938 = vld [vmem:[%s2924 + $0x34] sm:$0xf]
      %v2939 = vld [vmem:[%s2924 + $0x38] sm:$0xf]
      %v2940 = vld [vmem:[%s2924 + $0x3c] sm:$0xf]
      %v2942 = vshrl.u32 %v2876, 16
      %v2944 = vrot.slane %v2942, 4
      %v2945 = vshll.u32 %v2876, 16
      %v2947 = vrot.slane %v2945, 5
      %v2948 = vor.u32 %v2944, %v2947
      %v2949 = vrot.slane %v2948, 4
      %v2951 = vshll.u32 %v2877, 16
      %v2953 = vrot.slane %v2951, 5
      %v2954 = vsel %vm1330, %v2949, %v2953
      %v2955 = vshrl.u32 %v2877, 16
      %v2957 = vrot.slane %v2955, 4
      %v2958 = vor.u32 %v2957, %v2953
      %v2959 = vrot.slane %v2958, 4
      %v2961 = vshll.u32 %v2878, 16
      %v2963 = vrot.slane %v2961, 5
      %v2964 = vsel %vm1330, %v2959, %v2963
      %v2966 = vshrl.u32 %v2879, 16
      %v2968 = vrot.slane %v2966, 4
      %v2969 = vshll.u32 %v2879, 16
      %v2971 = vrot.slane %v2969, 5
      %v2972 = vor.u32 %v2968, %v2971
      %v2973 = vrot.slane %v2972, 4
      %v2975 = vshll.u32 %v2880, 16
      %v2977 = vrot.slane %v2975, 5
      %v2978 = vsel %vm1330, %v2973, %v2977
      %v2979 = vshrl.u32 %v2880, 16
      %v2981 = vrot.slane %v2979, 4
      %v2982 = vor.u32 %v2981, %v2977
      %v2983 = vrot.slane %v2982, 4
      %v2985 = vshll.u32 %v2881, 16
      %v2987 = vrot.slane %v2985, 5
      %v2988 = vsel %vm1330, %v2983, %v2987
      %v2990 = vshrl.u32 %v2882, 16
      %v2992 = vrot.slane %v2990, 4
      %v2993 = vshll.u32 %v2882, 16
      %v2995 = vrot.slane %v2993, 5
      %v2996 = vor.u32 %v2992, %v2995
      %v2997 = vrot.slane %v2996, 4
      %v2999 = vshll.u32 %v2883, 16
      %v3001 = vrot.slane %v2999, 5
      %v3002 = vsel %vm1330, %v2997, %v3001
      %v3003 = vshrl.u32 %v2883, 16
      %v3005 = vrot.slane %v3003, 4
      %v3006 = vor.u32 %v3005, %v3001
      %v3007 = vrot.slane %v3006, 4
      %v3009 = vshll.u32 %v2884, 16
      %v3011 = vrot.slane %v3009, 5
      %v3012 = vsel %vm1330, %v3007, %v3011
      %v3014 = vshrl.u32 %v2885, 16
      %v3016 = vrot.slane %v3014, 4
      %v3017 = vshll.u32 %v2885, 16
      %v3019 = vrot.slane %v3017, 5
      %v3020 = vor.u32 %v3016, %v3019
      %v3021 = vrot.slane %v3020, 4
      %v3023 = vshll.u32 %v2886, 16
      %v3025 = vrot.slane %v3023, 5
      %v3026 = vsel %vm1330, %v3021, %v3025
      %v3027 = vshrl.u32 %v2886, 16
      %v3029 = vrot.slane %v3027, 4
      %v3030 = vor.u32 %v3029, %v3025
      %v3031 = vrot.slane %v3030, 4
      %v3033 = vshll.u32 %v2887, 16
      %v3035 = vrot.slane %v3033, 5
      %v3036 = vsel %vm1330, %v3031, %v3035
      %v3038 = vshrl.u32 %v2888, 16
      %v3040 = vrot.slane %v3038, 4
      %v3041 = vshll.u32 %v2888, 16
      %v3043 = vrot.slane %v3041, 5
      %v3044 = vor.u32 %v3040, %v3043
      %v3045 = vrot.slane %v3044, 4
      %v3047 = vshll.u32 %v2889, 16
      %v3049 = vrot.slane %v3047, 5
      %v3050 = vsel %vm1330, %v3045, %v3049
      %v3051 = vshrl.u32 %v2889, 16
      %v3053 = vrot.slane %v3051, 4
      %v3054 = vor.u32 %v3053, %v3049
      %v3055 = vrot.slane %v3054, 4
      %v3057 = vshll.u32 %v2890, 16
      %v3059 = vrot.slane %v3057, 5
      %v3060 = vsel %vm1330, %v3055, %v3059
      %v3062 = vshrl.u32 %v2891, 16
      %v3064 = vrot.slane %v3062, 4
      %v3065 = vshll.u32 %v2891, 16
      %v3067 = vrot.slane %v3065, 5
      %v3068 = vor.u32 %v3064, %v3067
      %v3069 = vrot.slane %v3068, 4
      %v3071 = vshll.u32 %v2892, 16
      %v3073 = vrot.slane %v3071, 5
      %v3074 = vsel %vm1330, %v3069, %v3073
      %v3075 = vshrl.u32 %v2892, 16
      %v3077 = vrot.slane %v3075, 4
      %v3078 = vor.u32 %v3077, %v3073
      %v3079 = vrot.slane %v3078, 4
      %v3081 = vshll.u32 %v2893, 16
      %v3083 = vrot.slane %v3081, 5
      %v3084 = vsel %vm1330, %v3079, %v3083
      %v3086 = vshrl.u32 %v2894, 16
      %v3088 = vrot.slane %v3086, 4
      %v3089 = vshll.u32 %v2894, 16
      %v3091 = vrot.slane %v3089, 5
      %v3092 = vor.u32 %v3088, %v3091
      %v3093 = vrot.slane %v3092, 4
      %v3095 = vshll.u32 %v2895, 16
      %v3097 = vrot.slane %v3095, 5
      %v3098 = vsel %vm1330, %v3093, %v3097
      %v3099 = vshrl.u32 %v2895, 16
      %v3101 = vrot.slane %v3099, 4
      %v3102 = vor.u32 %v3101, %v3097
      %v3103 = vrot.slane %v3102, 4
      %v3105 = vshll.u32 %v2896, 16
      %v3107 = vrot.slane %v3105, 5
      %v3108 = vsel %vm1330, %v3103, %v3107
      %v3110 = vshrl.u32 %v2897, 16
      %v3112 = vrot.slane %v3110, 4
      %v3113 = vshll.u32 %v2897, 16
      %v3115 = vrot.slane %v3113, 5
      %v3116 = vor.u32 %v3112, %v3115
      %v3117 = vrot.slane %v3116, 4
      %v3119 = vshll.u32 %v2898, 16
      %v3121 = vrot.slane %v3119, 5
      %v3122 = vsel %vm1330, %v3117, %v3121
      %v3123 = vshrl.u32 %v2898, 16
      %v3125 = vrot.slane %v3123, 4
      %v3126 = vor.u32 %v3125, %v3121
      %v3127 = vrot.slane %v3126, 4
      %v3129 = vshll.u32 %v2899, 16
      %v3131 = vrot.slane %v3129, 5
      %v3132 = vsel %vm1330, %v3127, %v3131
      %v3134 = vshrl.u32 %v2900, 16
      %v3136 = vrot.slane %v3134, 4
      %v3137 = vshll.u32 %v2900, 16
      %v3139 = vrot.slane %v3137, 5
      %v3140 = vor.u32 %v3136, %v3139
      %v3141 = vrot.slane %v3140, 4
      %v3143 = vshll.u32 %v2901, 16
      %v3145 = vrot.slane %v3143, 5
      %v3146 = vsel %vm1330, %v3141, %v3145
      %v3147 = vshrl.u32 %v2901, 16
      %v3149 = vrot.slane %v3147, 4
      %v3150 = vor.u32 %v3149, %v3145
      %v3151 = vrot.slane %v3150, 4
      %v3153 = vshll.u32 %v2902, 16
      %v3155 = vrot.slane %v3153, 5
      %v3156 = vsel %vm1330, %v3151, %v3155
      %v3158 = vshrl.u32 %v2903, 16
      %v3160 = vrot.slane %v3158, 4
      %v3161 = vshll.u32 %v2903, 16
      %v3163 = vrot.slane %v3161, 5
      %v3164 = vor.u32 %v3160, %v3163
      %v3165 = vrot.slane %v3164, 4
      %v3167 = vshll.u32 %v2904, 16
      %v3169 = vrot.slane %v3167, 5
      %v3170 = vsel %vm1330, %v3165, %v3169
      %v3171 = vshrl.u32 %v2904, 16
      %v3173 = vrot.slane %v3171, 4
      %v3174 = vor.u32 %v3173, %v3169
      %v3175 = vrot.slane %v3174, 4
      %v3177 = vshll.u32 %v2905, 16
      %v3179 = vrot.slane %v3177, 5
      %v3180 = vsel %vm1330, %v3175, %v3179
      %v3182 = vshrl.u32 %v2906, 16
      %v3184 = vrot.slane %v3182, 4
      %v3185 = vshll.u32 %v2906, 16
      %v3187 = vrot.slane %v3185, 5
      %v3188 = vor.u32 %v3184, %v3187
      %v3189 = vrot.slane %v3188, 4
      %v3191 = vshll.u32 %v2907, 16
      %v3193 = vrot.slane %v3191, 5
      %v3194 = vsel %vm1330, %v3189, %v3193
      %v3195 = vshrl.u32 %v2907, 16
      %v3197 = vrot.slane %v3195, 4
      %v3198 = vor.u32 %v3197, %v3193
      %v3199 = vrot.slane %v3198, 4
      %v3201 = vshll.u32 %v2908, 16
      %v3203 = vrot.slane %v3201, 5
      %v3204 = vsel %vm1330, %v3199, %v3203
      %v3206 = vshrl.u32 %v2909, 16
      %v3208 = vrot.slane %v3206, 4
      %v3209 = vshll.u32 %v2909, 16
      %v3211 = vrot.slane %v3209, 5
      %v3212 = vor.u32 %v3208, %v3211
      %v3213 = vrot.slane %v3212, 4
      %v3215 = vshll.u32 %v2910, 16
      %v3217 = vrot.slane %v3215, 5
      %v3218 = vsel %vm1330, %v3213, %v3217
      %v3219 = vshrl.u32 %v2910, 16
      %v3221 = vrot.slane %v3219, 4
      %v3222 = vor.u32 %v3221, %v3217
      %v3223 = vrot.slane %v3222, 4
      %v3225 = vshll.u32 %v2911, 16
      %v3227 = vrot.slane %v3225, 5
      %v3228 = vsel %vm1330, %v3223, %v3227
      %v3230 = vshrl.u32 %v2912, 16
      %v3232 = vrot.slane %v3230, 4
      %v3233 = vshll.u32 %v2912, 16
      %v3235 = vrot.slane %v3233, 5
      %v3236 = vor.u32 %v3232, %v3235
      %v3237 = vrot.slane %v3236, 4
      %v3239 = vshll.u32 %v2913, 16
      %v3241 = vrot.slane %v3239, 5
      %v3242 = vsel %vm1330, %v3237, %v3241
      %v3243 = vshrl.u32 %v2913, 16
      %v3245 = vrot.slane %v3243, 4
      %v3246 = vor.u32 %v3245, %v3241
      %v3247 = vrot.slane %v3246, 4
      %v3249 = vshll.u32 %v2914, 16
      %v3251 = vrot.slane %v3249, 5
      %v3252 = vsel %vm1330, %v3247, %v3251
      %v3254 = vshrl.u32 %v2915, 16
      %v3256 = vrot.slane %v3254, 4
      %v3257 = vshll.u32 %v2915, 16
      %v3259 = vrot.slane %v3257, 5
      %v3260 = vor.u32 %v3256, %v3259
      %v3261 = vrot.slane %v3260, 4
      %v3263 = vshll.u32 %v2916, 16
      %v3265 = vrot.slane %v3263, 5
      %v3266 = vsel %vm1330, %v3261, %v3265
      %v3267 = vshrl.u32 %v2916, 16
      %v3269 = vrot.slane %v3267, 4
      %v3270 = vor.u32 %v3269, %v3265
      %v3271 = vrot.slane %v3270, 4
      %v3273 = vshll.u32 %v2917, 16
      %v3275 = vrot.slane %v3273, 5
      %v3276 = vsel %vm1330, %v3271, %v3275
      %v3278 = vshrl.u32 %v2918, 16
      %v3280 = vrot.slane %v3278, 4
      %v3281 = vshll.u32 %v2918, 16
      %v3283 = vrot.slane %v3281, 5
      %v3284 = vor.u32 %v3280, %v3283
      %v3285 = vrot.slane %v3284, 4
      %v3287 = vshll.u32 %v2919, 16
      %v3289 = vrot.slane %v3287, 5
      %v3290 = vsel %vm1330, %v3285, %v3289
      %v3291 = vshrl.u32 %v2919, 16
      %v3293 = vrot.slane %v3291, 4
      %v3294 = vor.u32 %v3293, %v3289
      %v3295 = vrot.slane %v3294, 4
      %v3297 = vshll.u32 %v2920, 16
      %v3299 = vrot.slane %v3297, 5
      %v3300 = vsel %vm1330, %v3295, %v3299
      %v3302 = vshrl.u32 %v2921, 16
      %v3304 = vrot.slane %v3302, 4
      %v3305 = vshll.u32 %v2921, 16
      %v3307 = vrot.slane %v3305, 5
      %v3308 = vor.u32 %v3304, %v3307
      %v3309 = vrot.slane %v3308, 4
      %v3311 = vshll.u32 %v2922, 16
      %v3313 = vrot.slane %v3311, 5
      %v3314 = vsel %vm1330, %v3309, %v3313
      %v3315 = vshrl.u32 %v2922, 16
      %v3317 = vrot.slane %v3315, 4
      %v3318 = vor.u32 %v3317, %v3313
      %v3319 = vrot.slane %v3318, 4
      %v3321 = vshll.u32 %v2923, 16
      %v3323 = vrot.slane %v3321, 5
      %v3324 = vsel %vm1330, %v3319, %v3323
      %v3325 = vunpack.c.l.b16 %v2954
      %v3326 = vunpack.c.l.b16 %v2964
      %v3327 = vunpack.c.l.b16 %v2978
      %v3328 = vunpack.c.l.b16 %v2988
      %v3329 = vunpack.c.l.b16 %v3002
      %v3330 = vunpack.c.l.b16 %v3012
      %v3331 = vunpack.c.l.b16 %v3026
      %v3332 = vunpack.c.l.b16 %v3036
      %v3333 = vunpack.c.l.b16 %v3050
      %v3334 = vunpack.c.l.b16 %v3060
      %v3335 = vunpack.c.l.b16 %v3074
      %v3336 = vunpack.c.l.b16 %v3084
      %v3337 = vunpack.c.l.b16 %v3098
      %v3338 = vunpack.c.l.b16 %v3108
      %v3339 = vunpack.c.l.b16 %v3122
      %v3340 = vunpack.c.l.b16 %v3132
      %v3341 = vunpack.c.l.b16 %v3146
      %v3342 = vunpack.c.l.b16 %v3156
      %v3343 = vunpack.c.l.b16 %v3170
      %v3344 = vunpack.c.l.b16 %v3180
      %v3345 = vunpack.c.l.b16 %v3194
      %v3346 = vunpack.c.l.b16 %v3204
      %v3347 = vunpack.c.l.b16 %v3218
      %v3348 = vunpack.c.l.b16 %v3228
      %v3349 = vunpack.c.l.b16 %v3242
      %v3350 = vunpack.c.l.b16 %v3252
      %v3351 = vunpack.c.l.b16 %v3266
      %v3352 = vunpack.c.l.b16 %v3276
      %v3353 = vunpack.c.l.b16 %v3290
      %v3354 = vunpack.c.l.b16 %v3300
      %v3355 = vunpack.c.l.b16 %v3314
      %v3356 = vunpack.c.l.b16 %v3324
      %v3357 = vpack.c.b16 %v3326, %v3325
      %v3358 = vpack.c.b16 %v3328, %v3327
      %v3359 = vpack.c.b16 %v3330, %v3329
      %v3360 = vpack.c.b16 %v3332, %v3331
      %v3361 = vpack.c.b16 %v3334, %v3333
      %v3362 = vpack.c.b16 %v3336, %v3335
      %v3363 = vpack.c.b16 %v3338, %v3337
      %v3364 = vpack.c.b16 %v3340, %v3339
      %v3365 = vpack.c.b16 %v3342, %v3341
      %v3366 = vpack.c.b16 %v3344, %v3343
      %v3367 = vpack.c.b16 %v3346, %v3345
      %v3368 = vpack.c.b16 %v3348, %v3347
      %v3369 = vpack.c.b16 %v3350, %v3349
      %v3370 = vpack.c.b16 %v3352, %v3351
      %v3371 = vpack.c.b16 %v3354, %v3353
      %v3372 = vpack.c.b16 %v3356, %v3355
      %v3405 = vunpack.c.l.b16 %v2925
      %v3406 = vunpack.c.l.b16 %v2926
      %v3407 = vunpack.c.l.b16 %v2927
      %v3408 = vunpack.c.l.b16 %v2928
      %v3409 = vunpack.c.l.b16 %v2929
      %v3410 = vunpack.c.l.b16 %v2930
      %v3411 = vunpack.c.l.b16 %v2931
      %v3412 = vunpack.c.l.b16 %v2932
      %v3413 = vunpack.c.l.b16 %v2933
      %v3414 = vunpack.c.l.b16 %v2934
      %v3415 = vunpack.c.l.b16 %v2935
      %v3416 = vunpack.c.l.b16 %v2936
      %v3417 = vunpack.c.l.b16 %v2937
      %v3418 = vunpack.c.l.b16 %v2938
      %v3419 = vunpack.c.l.b16 %v2939
      %v3420 = vunpack.c.l.b16 %v2940
      %v3421 = vpack.c.b16 %v3406, %v3405
      %v3422 = vpack.c.b16 %v3408, %v3407
      %v3423 = vpack.c.b16 %v3410, %v3409
      %v3424 = vpack.c.b16 %v3412, %v3411
      %v3425 = vpack.c.b16 %v3414, %v3413
      %v3426 = vpack.c.b16 %v3416, %v3415
      %v3427 = vpack.c.b16 %v3418, %v3417
      %v3428 = vpack.c.b16 %v3420, %v3419
      %3437 = vmatpush.bf16.msra.mxu0 %v3428
      %3438 = vmatpush.bf16.msra.mxu0 %v3427
      %3439 = vmatpush.bf16.msra.mxu0 %v3426
      %3440 = vmatpush.bf16.msra.mxu0 %v3425
      %3441 = vmatpush.bf16.msra.mxu0 %v3424
      %3442 = vmatpush.bf16.msra.mxu0 %v3423
      %3443 = vmatpush.bf16.msra.mxu0 %v3422
      %3444 = vmatpush.bf16.msra.mxu0 %v3421
      %3445 = vmatmul.bf16.gmra.mxu0 %v3357
      %v3446 = vpop.f32.mrf.mxu0
      %v3447 = vadd.f32 0.0, %v3446
      %v3448 = vpop.f32.mrf.mxu0
      %v3449 = vadd.f32 0.0, %v3448
      %3450 = vmatmul.bf16.gmra.mxu0 %v3358
      %v3451 = vpop.f32.mrf.mxu0
      %v3452 = vadd.f32 0.0, %v3451
      %v3453 = vpop.f32.mrf.mxu0
      %v3454 = vadd.f32 0.0, %v3453
      %3455 = vmatmul.bf16.gmra.mxu0 %v3359
      %v3456 = vpop.f32.mrf.mxu0
      %v3457 = vadd.f32 0.0, %v3456
      %v3458 = vpop.f32.mrf.mxu0
      %v3459 = vadd.f32 0.0, %v3458
      %3460 = vmatmul.bf16.gmra.mxu0 %v3360
      %v3461 = vpop.f32.mrf.mxu0
      %v3462 = vadd.f32 0.0, %v3461
      %v3463 = vpop.f32.mrf.mxu0
      %v3464 = vadd.f32 0.0, %v3463
      %3465 = vmatmul.bf16.gmra.mxu0 %v3361
      %v3466 = vpop.f32.mrf.mxu0
      %v3467 = vadd.f32 0.0, %v3466
      %v3468 = vpop.f32.mrf.mxu0
      %v3469 = vadd.f32 0.0, %v3468
      %3470 = vmatmul.bf16.gmra.mxu0 %v3362
      %v3471 = vpop.f32.mrf.mxu0
      %v3472 = vadd.f32 0.0, %v3471
      %v3473 = vpop.f32.mrf.mxu0
      %v3474 = vadd.f32 0.0, %v3473
      %3475 = vmatmul.bf16.gmra.mxu0 %v3363
      %v3476 = vpop.f32.mrf.mxu0
      %v3477 = vadd.f32 0.0, %v3476
      %v3478 = vpop.f32.mrf.mxu0
      %v3479 = vadd.f32 0.0, %v3478
      %3480 = vmatmul.bf16.gmra.mxu0 %v3364
      %v3481 = vpop.f32.mrf.mxu0
      %v3482 = vadd.f32 0.0, %v3481
      %v3483 = vpop.f32.mrf.mxu0
      %v3484 = vadd.f32 0.0, %v3483
      %3485 = vmatmul.bf16.gmra.mxu0 %v3365
      %v3486 = vpop.f32.mrf.mxu0
      %v3487 = vadd.f32 0.0, %v3486
      %v3488 = vpop.f32.mrf.mxu0
      %v3489 = vadd.f32 0.0, %v3488
      %3490 = vmatmul.bf16.gmra.mxu0 %v3366
      %v3491 = vpop.f32.mrf.mxu0
      %v3492 = vadd.f32 0.0, %v3491
      %v3493 = vpop.f32.mrf.mxu0
      %v3494 = vadd.f32 0.0, %v3493
      %3495 = vmatmul.bf16.gmra.mxu0 %v3367
      %v3496 = vpop.f32.mrf.mxu0
      %v3497 = vadd.f32 0.0, %v3496
      %v3498 = vpop.f32.mrf.mxu0
      %v3499 = vadd.f32 0.0, %v3498
      %3500 = vmatmul.bf16.gmra.mxu0 %v3368
      %v3501 = vpop.f32.mrf.mxu0
      %v3502 = vadd.f32 0.0, %v3501
      %v3503 = vpop.f32.mrf.mxu0
      %v3504 = vadd.f32 0.0, %v3503
      %3505 = vmatmul.bf16.gmra.mxu0 %v3369
      %v3506 = vpop.f32.mrf.mxu0
      %v3507 = vadd.f32 0.0, %v3506
      %v3508 = vpop.f32.mrf.mxu0
      %v3509 = vadd.f32 0.0, %v3508
      %3510 = vmatmul.bf16.gmra.mxu0 %v3370
      %v3511 = vpop.f32.mrf.mxu0
      %v3512 = vadd.f32 0.0, %v3511
      %v3513 = vpop.f32.mrf.mxu0
      %v3514 = vadd.f32 0.0, %v3513
      %3515 = vmatmul.bf16.gmra.mxu0 %v3371
      %v3516 = vpop.f32.mrf.mxu0
      %v3517 = vadd.f32 0.0, %v3516
      %v3518 = vpop.f32.mrf.mxu0
      %v3519 = vadd.f32 0.0, %v3518
      %3520 = vmatmul.bf16.gmra.mxu0 %v3372
      %v3521 = vpop.f32.mrf.mxu0
      %v3522 = vadd.f32 0.0, %v3521
      %v3523 = vpop.f32.mrf.mxu0
      %v3524 = vadd.f32 0.0, %v3523
      %3525 = vdwg.mxu0
      %v3526 = vadd.f32 %v2844, %v3447
      %v3527 = vadd.f32 %v2845, %v3449
      %v3528 = vadd.f32 %v2846, %v3452
      %v3529 = vadd.f32 %v2847, %v3454
      %v3530 = vadd.f32 %v2848, %v3457
      %v3531 = vadd.f32 %v2849, %v3459
      %v3532 = vadd.f32 %v2850, %v3462
      %v3533 = vadd.f32 %v2851, %v3464
      %v3534 = vadd.f32 %v2852, %v3467
      %v3535 = vadd.f32 %v2853, %v3469
      %v3536 = vadd.f32 %v2854, %v3472
      %v3537 = vadd.f32 %v2855, %v3474
      %v3538 = vadd.f32 %v2856, %v3477
      %v3539 = vadd.f32 %v2857, %v3479
      %v3540 = vadd.f32 %v2858, %v3482
      %v3541 = vadd.f32 %v2859, %v3484
      %v3542 = vadd.f32 %v2860, %v3487
      %v3543 = vadd.f32 %v2861, %v3489
      %v3544 = vadd.f32 %v2862, %v3492
      %v3545 = vadd.f32 %v2863, %v3494
      %v3546 = vadd.f32 %v2864, %v3497
      %v3547 = vadd.f32 %v2865, %v3499
      %v3548 = vadd.f32 %v2866, %v3502
      %v3549 = vadd.f32 %v2867, %v3504
      %v3550 = vadd.f32 %v2868, %v3507
      %v3551 = vadd.f32 %v2869, %v3509
      %v3552 = vadd.f32 %v2870, %v3512
      %v3553 = vadd.f32 %v2871, %v3514
      %v3554 = vadd.f32 %v2872, %v3517
      %v3555 = vadd.f32 %v2873, %v3519
      %v3556 = vadd.f32 %v2874, %v3522
      %v3557 = vadd.f32 %v2875, %v3524
      %v3558 = vld [vmem:[%s1132] sm:$0xe]
      %v3559 = vld [vmem:[%s1132 + $0xc] sm:$0xe]
      %v3560 = vld [vmem:[%s1132 + $0x18] sm:$0xe]
      %v3561 = vld [vmem:[%s1132 + $0x24] sm:$0xe]
      %v3562 = vld [vmem:[%s1132 + $0x30] sm:$0xe]
      %v3563 = vld [vmem:[%s1132 + $0x3c] sm:$0xe]
      %v3564 = vld [vmem:[%s1132 + $0x48] sm:$0xe]
      %v3565 = vld [vmem:[%s1132 + $0x54] sm:$0xe]
      %v3566 = vld [vmem:[%s1132 + $0x60] sm:$0xe]
      %v3567 = vld [vmem:[%s1132 + $0x6c] sm:$0xe]
      %v3568 = vld [vmem:[%s1132 + $0x78] sm:$0xe]
      %v3569 = vld [vmem:[%s1132 + $0x84] sm:$0xe]
      %v3570 = vld [vmem:[%s1132 + $0x90] sm:$0xe]
      %v3571 = vld [vmem:[%s1132 + $0x9c] sm:$0xe]
      %v3572 = vld [vmem:[%s1132 + $0xa8] sm:$0xe]
      %v3573 = vld [vmem:[%s1132 + $0xb4] sm:$0xe]
      %s3574 = scalar_lea.vmem %s4, 320
      %v3575 = vld [vmem:[%s3574] sm:$0xf]
      %v3576 = vld [vmem:[%s3574 + $0x4] sm:$0xf]
      %v3577 = vld [vmem:[%s3574 + $0x8] sm:$0xf]
      %v3578 = vld [vmem:[%s3574 + $0xc] sm:$0xf]
      %v3579 = vld [vmem:[%s3574 + $0x10] sm:$0xf]
      %v3580 = vld [vmem:[%s3574 + $0x14] sm:$0xf]
      %v3581 = vld [vmem:[%s3574 + $0x18] sm:$0xf]
      %v3582 = vld [vmem:[%s3574 + $0x1c] sm:$0xf]
      %v3583 = vld [vmem:[%s3574 + $0x20] sm:$0xf]
      %v3584 = vld [vmem:[%s3574 + $0x24] sm:$0xf]
      %v3585 = vld [vmem:[%s3574 + $0x28] sm:$0xf]
      %v3586 = vld [vmem:[%s3574 + $0x2c] sm:$0xf]
      %v3587 = vld [vmem:[%s3574 + $0x30] sm:$0xf]
      %v3588 = vld [vmem:[%s3574 + $0x34] sm:$0xf]
      %v3589 = vld [vmem:[%s3574 + $0x38] sm:$0xf]
      %v3590 = vld [vmem:[%s3574 + $0x3c] sm:$0xf]
      %v3639 = vrot.slane %v3558, 5
      %v3640 = vrot.slane %v3639, 4
      %v3641 = vrot.slane %v2877, 5
      %v3642 = vsel %vm2216, %v3640, %v3641
      %v3643 = vrot.slane %v3641, 4
      %v3644 = vrot.slane %v2878, 5
      %v3645 = vsel %vm2216, %v3643, %v3644
      %v3646 = vrot.slane %v3559, 5
      %v3647 = vrot.slane %v3646, 4
      %v3648 = vrot.slane %v2880, 5
      %v3649 = vsel %vm2216, %v3647, %v3648
      %v3650 = vrot.slane %v3648, 4
      %v3651 = vrot.slane %v2881, 5
      %v3652 = vsel %vm2216, %v3650, %v3651
      %v3653 = vrot.slane %v3560, 5
      %v3654 = vrot.slane %v3653, 4
      %v3655 = vrot.slane %v2883, 5
      %v3656 = vsel %vm2216, %v3654, %v3655
      %v3657 = vrot.slane %v3655, 4
      %v3658 = vrot.slane %v2884, 5
      %v3659 = vsel %vm2216, %v3657, %v3658
      %v3660 = vrot.slane %v3561, 5
      %v3661 = vrot.slane %v3660, 4
      %v3662 = vrot.slane %v2886, 5
      %v3663 = vsel %vm2216, %v3661, %v3662
      %v3664 = vrot.slane %v3662, 4
      %v3665 = vrot.slane %v2887, 5
      %v3666 = vsel %vm2216, %v3664, %v3665
      %v3667 = vrot.slane %v3562, 5
      %v3668 = vrot.slane %v3667, 4
      %v3669 = vrot.slane %v2889, 5
      %v3670 = vsel %vm2216, %v3668, %v3669
      %v3671 = vrot.slane %v3669, 4
      %v3672 = vrot.slane %v2890, 5
      %v3673 = vsel %vm2216, %v3671, %v3672
      %v3674 = vrot.slane %v3563, 5
      %v3675 = vrot.slane %v3674, 4
      %v3676 = vrot.slane %v2892, 5
      %v3677 = vsel %vm2216, %v3675, %v3676
      %v3678 = vrot.slane %v3676, 4
      %v3679 = vrot.slane %v2893, 5
      %v3680 = vsel %vm2216, %v3678, %v3679
      %v3681 = vrot.slane %v3564, 5
      %v3682 = vrot.slane %v3681, 4
      %v3683 = vrot.slane %v2895, 5
      %v3684 = vsel %vm2216, %v3682, %v3683
      %v3685 = vrot.slane %v3683, 4
      %v3686 = vrot.slane %v2896, 5
      %v3687 = vsel %vm2216, %v3685, %v3686
      %v3688 = vrot.slane %v3565, 5
      %v3689 = vrot.slane %v3688, 4
      %v3690 = vrot.slane %v2898, 5
      %v3691 = vsel %vm2216, %v3689, %v3690
      %v3692 = vrot.slane %v3690, 4
      %v3693 = vrot.slane %v2899, 5
      %v3694 = vsel %vm2216, %v3692, %v3693
      %v3695 = vrot.slane %v3566, 5
      %v3696 = vrot.slane %v3695, 4
      %v3697 = vrot.slane %v2901, 5
      %v3698 = vsel %vm2216, %v3696, %v3697
      %v3699 = vrot.slane %v3697, 4
      %v3700 = vrot.slane %v2902, 5
      %v3701 = vsel %vm2216, %v3699, %v3700
      %v3702 = vrot.slane %v3567, 5
      %v3703 = vrot.slane %v3702, 4
      %v3704 = vrot.slane %v2904, 5
      %v3705 = vsel %vm2216, %v3703, %v3704
      %v3706 = vrot.slane %v3704, 4
      %v3707 = vrot.slane %v2905, 5
      %v3708 = vsel %vm2216, %v3706, %v3707
      %v3709 = vrot.slane %v3568, 5
      %v3710 = vrot.slane %v3709, 4
      %v3711 = vrot.slane %v2907, 5
      %v3712 = vsel %vm2216, %v3710, %v3711
      %v3713 = vrot.slane %v3711, 4
      %v3714 = vrot.slane %v2908, 5
      %v3715 = vsel %vm2216, %v3713, %v3714
      %v3716 = vrot.slane %v3569, 5
      %v3717 = vrot.slane %v3716, 4
      %v3718 = vrot.slane %v2910, 5
      %v3719 = vsel %vm2216, %v3717, %v3718
      %v3720 = vrot.slane %v3718, 4
      %v3721 = vrot.slane %v2911, 5
      %v3722 = vsel %vm2216, %v3720, %v3721
      %v3723 = vrot.slane %v3570, 5
      %v3724 = vrot.slane %v3723, 4
      %v3725 = vrot.slane %v2913, 5
      %v3726 = vsel %vm2216, %v3724, %v3725
      %v3727 = vrot.slane %v3725, 4
      %v3728 = vrot.slane %v2914, 5
      %v3729 = vsel %vm2216, %v3727, %v3728
      %v3730 = vrot.slane %v3571, 5
      %v3731 = vrot.slane %v3730, 4
      %v3732 = vrot.slane %v2916, 5
      %v3733 = vsel %vm2216, %v3731, %v3732
      %v3734 = vrot.slane %v3732, 4
      %v3735 = vrot.slane %v2917, 5
      %v3736 = vsel %vm2216, %v3734, %v3735
      %v3737 = vrot.slane %v3572, 5
      %v3738 = vrot.slane %v3737, 4
      %v3739 = vrot.slane %v2919, 5
      %v3740 = vsel %vm2216, %v3738, %v3739
      %v3741 = vrot.slane %v3739, 4
      %v3742 = vrot.slane %v2920, 5
      %v3743 = vsel %vm2216, %v3741, %v3742
      %v3744 = vrot.slane %v3573, 5
      %v3745 = vrot.slane %v3744, 4
      %v3746 = vrot.slane %v2922, 5
      %v3747 = vsel %vm2216, %v3745, %v3746
      %v3748 = vrot.slane %v3746, 4
      %v3749 = vrot.slane %v2923, 5
      %v3750 = vsel %vm2216, %v3748, %v3749
      %v3751 = vunpack.c.l.b16 %v3642
      %v3752 = vunpack.c.l.b16 %v3645
      %v3753 = vunpack.c.l.b16 %v3649
      %v3754 = vunpack.c.l.b16 %v3652
      %v3755 = vunpack.c.l.b16 %v3656
      %v3756 = vunpack.c.l.b16 %v3659
      %v3757 = vunpack.c.l.b16 %v3663
      %v3758 = vunpack.c.l.b16 %v3666
      %v3759 = vunpack.c.l.b16 %v3670
      %v3760 = vunpack.c.l.b16 %v3673
      %v3761 = vunpack.c.l.b16 %v3677
      %v3762 = vunpack.c.l.b16 %v3680
      %v3763 = vunpack.c.l.b16 %v3684
      %v3764 = vunpack.c.l.b16 %v3687
      %v3765 = vunpack.c.l.b16 %v3691
      %v3766 = vunpack.c.l.b16 %v3694
      %v3767 = vunpack.c.l.b16 %v3698
      %v3768 = vunpack.c.l.b16 %v3701
      %v3769 = vunpack.c.l.b16 %v3705
      %v3770 = vunpack.c.l.b16 %v3708
      %v3771 = vunpack.c.l.b16 %v3712
      %v3772 = vunpack.c.l.b16 %v3715
      %v3773 = vunpack.c.l.b16 %v3719
      %v3774 = vunpack.c.l.b16 %v3722
      %v3775 = vunpack.c.l.b16 %v3726
      %v3776 = vunpack.c.l.b16 %v3729
      %v3777 = vunpack.c.l.b16 %v3733
      %v3778 = vunpack.c.l.b16 %v3736
      %v3779 = vunpack.c.l.b16 %v3740
      %v3780 = vunpack.c.l.b16 %v3743
      %v3781 = vunpack.c.l.b16 %v3747
      %v3782 = vunpack.c.l.b16 %v3750
      %v3783 = vpack.c.b16 %v3752, %v3751
      %v3784 = vpack.c.b16 %v3754, %v3753
      %v3785 = vpack.c.b16 %v3756, %v3755
      %v3786 = vpack.c.b16 %v3758, %v3757
      %v3787 = vpack.c.b16 %v3760, %v3759
      %v3788 = vpack.c.b16 %v3762, %v3761
      %v3789 = vpack.c.b16 %v3764, %v3763
      %v3790 = vpack.c.b16 %v3766, %v3765
      %v3791 = vpack.c.b16 %v3768, %v3767
      %v3792 = vpack.c.b16 %v3770, %v3769
      %v3793 = vpack.c.b16 %v3772, %v3771
      %v3794 = vpack.c.b16 %v3774, %v3773
      %v3795 = vpack.c.b16 %v3776, %v3775
      %v3796 = vpack.c.b16 %v3778, %v3777
      %v3797 = vpack.c.b16 %v3780, %v3779
      %v3798 = vpack.c.b16 %v3782, %v3781
      %v3831 = vunpack.c.l.b16 %v3575
      %v3832 = vunpack.c.l.b16 %v3576
      %v3833 = vunpack.c.l.b16 %v3577
      %v3834 = vunpack.c.l.b16 %v3578
      %v3835 = vunpack.c.l.b16 %v3579
      %v3836 = vunpack.c.l.b16 %v3580
      %v3837 = vunpack.c.l.b16 %v3581
      %v3838 = vunpack.c.l.b16 %v3582
      %v3839 = vunpack.c.l.b16 %v3583
      %v3840 = vunpack.c.l.b16 %v3584
      %v3841 = vunpack.c.l.b16 %v3585
      %v3842 = vunpack.c.l.b16 %v3586
      %v3843 = vunpack.c.l.b16 %v3587
      %v3844 = vunpack.c.l.b16 %v3588
      %v3845 = vunpack.c.l.b16 %v3589
      %v3846 = vunpack.c.l.b16 %v3590
      %v3847 = vpack.c.b16 %v3832, %v3831
      %v3848 = vpack.c.b16 %v3834, %v3833
      %v3849 = vpack.c.b16 %v3836, %v3835
      %v3850 = vpack.c.b16 %v3838, %v3837
      %v3851 = vpack.c.b16 %v3840, %v3839
      %v3852 = vpack.c.b16 %v3842, %v3841
      %v3853 = vpack.c.b16 %v3844, %v3843
      %v3854 = vpack.c.b16 %v3846, %v3845
      %3863 = vmatpush.bf16.msra.mxu0 %v3854
      %3864 = vmatpush.bf16.msra.mxu0 %v3853
      %3865 = vmatpush.bf16.msra.mxu0 %v3852
      %3866 = vmatpush.bf16.msra.mxu0 %v3851
      %3867 = vmatpush.bf16.msra.mxu0 %v3850
      %3868 = vmatpush.bf16.msra.mxu0 %v3849
      %3869 = vmatpush.bf16.msra.mxu0 %v3848
      %3870 = vmatpush.bf16.msra.mxu0 %v3847
      %3871 = vmatmul.bf16.gmra.mxu0 %v3783
      %v3872 = vpop.f32.mrf.mxu0
      %v3873 = vadd.f32 0.0, %v3872
      %v3874 = vpop.f32.mrf.mxu0
      %v3875 = vadd.f32 0.0, %v3874
      %3876 = vmatmul.bf16.gmra.mxu0 %v3784
      %v3877 = vpop.f32.mrf.mxu0
      %v3878 = vadd.f32 0.0, %v3877
      %v3879 = vpop.f32.mrf.mxu0
      %v3880 = vadd.f32 0.0, %v3879
      %3881 = vmatmul.bf16.gmra.mxu0 %v3785
      %v3882 = vpop.f32.mrf.mxu0
      %v3883 = vadd.f32 0.0, %v3882
      %v3884 = vpop.f32.mrf.mxu0
      %v3885 = vadd.f32 0.0, %v3884
      %3886 = vmatmul.bf16.gmra.mxu0 %v3786
      %v3887 = vpop.f32.mrf.mxu0
      %v3888 = vadd.f32 0.0, %v3887
      %v3889 = vpop.f32.mrf.mxu0
      %v3890 = vadd.f32 0.0, %v3889
      %3891 = vmatmul.bf16.gmra.mxu0 %v3787
      %v3892 = vpop.f32.mrf.mxu0
      %v3893 = vadd.f32 0.0, %v3892
      %v3894 = vpop.f32.mrf.mxu0
      %v3895 = vadd.f32 0.0, %v3894
      %3896 = vmatmul.bf16.gmra.mxu0 %v3788
      %v3897 = vpop.f32.mrf.mxu0
      %v3898 = vadd.f32 0.0, %v3897
      %v3899 = vpop.f32.mrf.mxu0
      %v3900 = vadd.f32 0.0, %v3899
      %3901 = vmatmul.bf16.gmra.mxu0 %v3789
      %v3902 = vpop.f32.mrf.mxu0
      %v3903 = vadd.f32 0.0, %v3902
      %v3904 = vpop.f32.mrf.mxu0
      %v3905 = vadd.f32 0.0, %v3904
      %3906 = vmatmul.bf16.gmra.mxu0 %v3790
      %v3907 = vpop.f32.mrf.mxu0
      %v3908 = vadd.f32 0.0, %v3907
      %v3909 = vpop.f32.mrf.mxu0
      %v3910 = vadd.f32 0.0, %v3909
      %3911 = vmatmul.bf16.gmra.mxu0 %v3791
      %v3912 = vpop.f32.mrf.mxu0
      %v3913 = vadd.f32 0.0, %v3912
      %v3914 = vpop.f32.mrf.mxu0
      %v3915 = vadd.f32 0.0, %v3914
      %3916 = vmatmul.bf16.gmra.mxu0 %v3792
      %v3917 = vpop.f32.mrf.mxu0
      %v3918 = vadd.f32 0.0, %v3917
      %v3919 = vpop.f32.mrf.mxu0
      %v3920 = vadd.f32 0.0, %v3919
      %3921 = vmatmul.bf16.gmra.mxu0 %v3793
      %v3922 = vpop.f32.mrf.mxu0
      %v3923 = vadd.f32 0.0, %v3922
      %v3924 = vpop.f32.mrf.mxu0
      %v3925 = vadd.f32 0.0, %v3924
      %3926 = vmatmul.bf16.gmra.mxu0 %v3794
      %v3927 = vpop.f32.mrf.mxu0
      %v3928 = vadd.f32 0.0, %v3927
      %v3929 = vpop.f32.mrf.mxu0
      %v3930 = vadd.f32 0.0, %v3929
      %3931 = vmatmul.bf16.gmra.mxu0 %v3795
      %v3932 = vpop.f32.mrf.mxu0
      %v3933 = vadd.f32 0.0, %v3932
      %v3934 = vpop.f32.mrf.mxu0
      %v3935 = vadd.f32 0.0, %v3934
      %3936 = vmatmul.bf16.gmra.mxu0 %v3796
      %v3937 = vpop.f32.mrf.mxu0
      %v3938 = vadd.f32 0.0, %v3937
      %v3939 = vpop.f32.mrf.mxu0
      %v3940 = vadd.f32 0.0, %v3939
      %3941 = vmatmul.bf16.gmra.mxu0 %v3797
      %v3942 = vpop.f32.mrf.mxu0
      %v3943 = vadd.f32 0.0, %v3942
      %v3944 = vpop.f32.mrf.mxu0
      %v3945 = vadd.f32 0.0, %v3944
      %3946 = vmatmul.bf16.gmra.mxu0 %v3798
      %v3947 = vpop.f32.mrf.mxu0
      %v3948 = vadd.f32 0.0, %v3947
      %v3949 = vpop.f32.mrf.mxu0
      %v3950 = vadd.f32 0.0, %v3949
      %3951 = vdwg.mxu0
      %v3952 = vadd.f32 %v3526, %v3873
      %v3953 = vadd.f32 %v3527, %v3875
      %v3954 = vadd.f32 %v3528, %v3878
      %v3955 = vadd.f32 %v3529, %v3880
      %v3956 = vadd.f32 %v3530, %v3883
      %v3957 = vadd.f32 %v3531, %v3885
      %v3958 = vadd.f32 %v3532, %v3888
      %v3959 = vadd.f32 %v3533, %v3890
      %v3960 = vadd.f32 %v3534, %v3893
      %v3961 = vadd.f32 %v3535, %v3895
      %v3962 = vadd.f32 %v3536, %v3898
      %v3963 = vadd.f32 %v3537, %v3900
      %v3964 = vadd.f32 %v3538, %v3903
      %v3965 = vadd.f32 %v3539, %v3905
      %v3966 = vadd.f32 %v3540, %v3908
      %v3967 = vadd.f32 %v3541, %v3910
      %v3968 = vadd.f32 %v3542, %v3913
      %v3969 = vadd.f32 %v3543, %v3915
      %v3970 = vadd.f32 %v3544, %v3918
      %v3971 = vadd.f32 %v3545, %v3920
      %v3972 = vadd.f32 %v3546, %v3923
      %v3973 = vadd.f32 %v3547, %v3925
      %v3974 = vadd.f32 %v3548, %v3928
      %v3975 = vadd.f32 %v3549, %v3930
      %v3976 = vadd.f32 %v3550, %v3933
      %v3977 = vadd.f32 %v3551, %v3935
      %v3978 = vadd.f32 %v3552, %v3938
      %v3979 = vadd.f32 %v3553, %v3940
      %v3980 = vadd.f32 %v3554, %v3943
      %v3981 = vadd.f32 %v3555, %v3945
      %v3982 = vadd.f32 %v3556, %v3948
      %v3983 = vadd.f32 %v3557, %v3950
      %s3984 = scalar_lea.vmem [#allocation2], 24
      %v3985 = vld [vmem:[%s3984] sm:$0xf]
      %v3986 = vld [vmem:[%s3984 + $0x4] sm:$0xf]
      %v3987 = vld [vmem:[%s3984 + $0xc] sm:$0xf]
      %v3988 = vld [vmem:[%s3984 + $0x10] sm:$0xf]
      %v3989 = vld [vmem:[%s3984 + $0x18] sm:$0xf]
      %v3990 = vld [vmem:[%s3984 + $0x1c] sm:$0xf]
      %v3991 = vld [vmem:[%s3984 + $0x24] sm:$0xf]
      %v3992 = vld [vmem:[%s3984 + $0x28] sm:$0xf]
      %v3993 = vld [vmem:[%s3984 + $0x30] sm:$0xf]
      %v3994 = vld [vmem:[%s3984 + $0x34] sm:$0xf]
      %v3995 = vld [vmem:[%s3984 + $0x3c] sm:$0xf]
      %v3996 = vld [vmem:[%s3984 + $0x40] sm:$0xf]
      %v3997 = vld [vmem:[%s3984 + $0x48] sm:$0xf]
      %v3998 = vld [vmem:[%s3984 + $0x4c] sm:$0xf]
      %v3999 = vld [vmem:[%s3984 + $0x54] sm:$0xf]
      %v4000 = vld [vmem:[%s3984 + $0x58] sm:$0xf]
      %v4001 = vld [vmem:[%s3984 + $0x60] sm:$0xf]
      %v4002 = vld [vmem:[%s3984 + $0x64] sm:$0xf]
      %v4003 = vld [vmem:[%s3984 + $0x6c] sm:$0xf]
      %v4004 = vld [vmem:[%s3984 + $0x70] sm:$0xf]
      %v4005 = vld [vmem:[%s3984 + $0x78] sm:$0xf]
      %v4006 = vld [vmem:[%s3984 + $0x7c] sm:$0xf]
      %v4007 = vld [vmem:[%s3984 + $0x84] sm:$0xf]
      %v4008 = vld [vmem:[%s3984 + $0x88] sm:$0xf]
      %v4009 = vld [vmem:[%s3984 + $0x90] sm:$0xf]
      %v4010 = vld [vmem:[%s3984 + $0x94] sm:$0xf]
      %v4011 = vld [vmem:[%s3984 + $0x9c] sm:$0xf]
      %v4012 = vld [vmem:[%s3984 + $0xa0] sm:$0xf]
      %v4013 = vld [vmem:[%s3984 + $0xa8] sm:$0xf]
      %v4014 = vld [vmem:[%s3984 + $0xac] sm:$0xf]
      %v4015 = vld [vmem:[%s3984 + $0xb4] sm:$0xf]
      %v4016 = vld [vmem:[%s3984 + $0xb8] sm:$0xf]
      %s4017 = scalar_lea.vmem %s4, 384
      %v4018 = vld [vmem:[%s4017] sm:$0xf]
      %v4019 = vld [vmem:[%s4017 + $0x4] sm:$0xf]
      %v4020 = vld [vmem:[%s4017 + $0x8] sm:$0xf]
      %v4021 = vld [vmem:[%s4017 + $0xc] sm:$0xf]
      %v4022 = vld [vmem:[%s4017 + $0x10] sm:$0xf]
      %v4023 = vld [vmem:[%s4017 + $0x14] sm:$0xf]
      %v4024 = vld [vmem:[%s4017 + $0x18] sm:$0xf]
      %v4025 = vld [vmem:[%s4017 + $0x1c] sm:$0xf]
      %v4026 = vld [vmem:[%s4017 + $0x20] sm:$0xf]
      %v4027 = vld [vmem:[%s4017 + $0x24] sm:$0xf]
      %v4028 = vld [vmem:[%s4017 + $0x28] sm:$0xf]
      %v4029 = vld [vmem:[%s4017 + $0x2c] sm:$0xf]
      %v4030 = vld [vmem:[%s4017 + $0x30] sm:$0xf]
      %v4031 = vld [vmem:[%s4017 + $0x34] sm:$0xf]
      %v4032 = vld [vmem:[%s4017 + $0x38] sm:$0xf]
      %v4033 = vld [vmem:[%s4017 + $0x3c] sm:$0xf]
      %v4066 = vunpack.c.l.b16 %v3985
      %v4067 = vunpack.c.l.b16 %v3986
      %v4068 = vunpack.c.l.b16 %v3987
      %v4069 = vunpack.c.l.b16 %v3988
      %v4070 = vunpack.c.l.b16 %v3989
      %v4071 = vunpack.c.l.b16 %v3990
      %v4072 = vunpack.c.l.b16 %v3991
      %v4073 = vunpack.c.l.b16 %v3992
      %v4074 = vunpack.c.l.b16 %v3993
      %v4075 = vunpack.c.l.b16 %v3994
      %v4076 = vunpack.c.l.b16 %v3995
      %v4077 = vunpack.c.l.b16 %v3996
      %v4078 = vunpack.c.l.b16 %v3997
      %v4079 = vunpack.c.l.b16 %v3998
      %v4080 = vunpack.c.l.b16 %v3999
      %v4081 = vunpack.c.l.b16 %v4000
      %v4082 = vunpack.c.l.b16 %v4001
      %v4083 = vunpack.c.l.b16 %v4002
      %v4084 = vunpack.c.l.b16 %v4003
      %v4085 = vunpack.c.l.b16 %v4004
      %v4086 = vunpack.c.l.b16 %v4005
      %v4087 = vunpack.c.l.b16 %v4006
      %v4088 = vunpack.c.l.b16 %v4007
      %v4089 = vunpack.c.l.b16 %v4008
      %v4090 = vunpack.c.l.b16 %v4009
      %v4091 = vunpack.c.l.b16 %v4010
      %v4092 = vunpack.c.l.b16 %v4011
      %v4093 = vunpack.c.l.b16 %v4012
      %v4094 = vunpack.c.l.b16 %v4013
      %v4095 = vunpack.c.l.b16 %v4014
      %v4096 = vunpack.c.l.b16 %v4015
      %v4097 = vunpack.c.l.b16 %v4016
      %v4098 = vpack.c.b16 %v4067, %v4066
      %v4099 = vpack.c.b16 %v4069, %v4068
      %v4100 = vpack.c.b16 %v4071, %v4070
      %v4101 = vpack.c.b16 %v4073, %v4072
      %v4102 = vpack.c.b16 %v4075, %v4074
      %v4103 = vpack.c.b16 %v4077, %v4076
      %v4104 = vpack.c.b16 %v4079, %v4078
      %v4105 = vpack.c.b16 %v4081, %v4080
      %v4106 = vpack.c.b16 %v4083, %v4082
      %v4107 = vpack.c.b16 %v4085, %v4084
      %v4108 = vpack.c.b16 %v4087, %v4086
      %v4109 = vpack.c.b16 %v4089, %v4088
      %v4110 = vpack.c.b16 %v4091, %v4090
      %v4111 = vpack.c.b16 %v4093, %v4092
      %v4112 = vpack.c.b16 %v4095, %v4094
      %v4113 = vpack.c.b16 %v4097, %v4096
      %v4146 = vunpack.c.l.b16 %v4018
      %v4147 = vunpack.c.l.b16 %v4019
      %v4148 = vunpack.c.l.b16 %v4020
      %v4149 = vunpack.c.l.b16 %v4021
      %v4150 = vunpack.c.l.b16 %v4022
      %v4151 = vunpack.c.l.b16 %v4023
      %v4152 = vunpack.c.l.b16 %v4024
      %v4153 = vunpack.c.l.b16 %v4025
      %v4154 = vunpack.c.l.b16 %v4026
      %v4155 = vunpack.c.l.b16 %v4027
      %v4156 = vunpack.c.l.b16 %v4028
      %v4157 = vunpack.c.l.b16 %v4029
      %v4158 = vunpack.c.l.b16 %v4030
      %v4159 = vunpack.c.l.b16 %v4031
      %v4160 = vunpack.c.l.b16 %v4032
      %v4161 = vunpack.c.l.b16 %v4033
      %v4162 = vpack.c.b16 %v4147, %v4146
      %v4163 = vpack.c.b16 %v4149, %v4148
      %v4164 = vpack.c.b16 %v4151, %v4150
      %v4165 = vpack.c.b16 %v4153, %v4152
      %v4166 = vpack.c.b16 %v4155, %v4154
      %v4167 = vpack.c.b16 %v4157, %v4156
      %v4168 = vpack.c.b16 %v4159, %v4158
      %v4169 = vpack.c.b16 %v4161, %v4160
      %4178 = vmatpush.bf16.msra.mxu0 %v4169
      %4179 = vmatpush.bf16.msra.mxu0 %v4168
      %4180 = vmatpush.bf16.msra.mxu0 %v4167
      %4181 = vmatpush.bf16.msra.mxu0 %v4166
      %4182 = vmatpush.bf16.msra.mxu0 %v4165
      %4183 = vmatpush.bf16.msra.mxu0 %v4164
      %4184 = vmatpush.bf16.msra.mxu0 %v4163
      %4185 = vmatpush.bf16.msra.mxu0 %v4162
      %4186 = vmatmul.bf16.gmra.mxu0 %v4098
      %v4187 = vpop.f32.mrf.mxu0
      %v4188 = vadd.f32 0.0, %v4187
      %v4189 = vpop.f32.mrf.mxu0
      %v4190 = vadd.f32 0.0, %v4189
      %4191 = vmatmul.bf16.gmra.mxu0 %v4099
      %v4192 = vpop.f32.mrf.mxu0
      %v4193 = vadd.f32 0.0, %v4192
      %v4194 = vpop.f32.mrf.mxu0
      %v4195 = vadd.f32 0.0, %v4194
      %4196 = vmatmul.bf16.gmra.mxu0 %v4100
      %v4197 = vpop.f32.mrf.mxu0
      %v4198 = vadd.f32 0.0, %v4197
      %v4199 = vpop.f32.mrf.mxu0
      %v4200 = vadd.f32 0.0, %v4199
      %4201 = vmatmul.bf16.gmra.mxu0 %v4101
      %v4202 = vpop.f32.mrf.mxu0
      %v4203 = vadd.f32 0.0, %v4202
      %v4204 = vpop.f32.mrf.mxu0
      %v4205 = vadd.f32 0.0, %v4204
      %4206 = vmatmul.bf16.gmra.mxu0 %v4102
      %v4207 = vpop.f32.mrf.mxu0
      %v4208 = vadd.f32 0.0, %v4207
      %v4209 = vpop.f32.mrf.mxu0
      %v4210 = vadd.f32 0.0, %v4209
      %4211 = vmatmul.bf16.gmra.mxu0 %v4103
      %v4212 = vpop.f32.mrf.mxu0
      %v4213 = vadd.f32 0.0, %v4212
      %v4214 = vpop.f32.mrf.mxu0
      %v4215 = vadd.f32 0.0, %v4214
      %4216 = vmatmul.bf16.gmra.mxu0 %v4104
      %v4217 = vpop.f32.mrf.mxu0
      %v4218 = vadd.f32 0.0, %v4217
      %v4219 = vpop.f32.mrf.mxu0
      %v4220 = vadd.f32 0.0, %v4219
      %4221 = vmatmul.bf16.gmra.mxu0 %v4105
      %v4222 = vpop.f32.mrf.mxu0
      %v4223 = vadd.f32 0.0, %v4222
      %v4224 = vpop.f32.mrf.mxu0
      %v4225 = vadd.f32 0.0, %v4224
      %4226 = vmatmul.bf16.gmra.mxu0 %v4106
      %v4227 = vpop.f32.mrf.mxu0
      %v4228 = vadd.f32 0.0, %v4227
      %v4229 = vpop.f32.mrf.mxu0
      %v4230 = vadd.f32 0.0, %v4229
      %4231 = vmatmul.bf16.gmra.mxu0 %v4107
      %v4232 = vpop.f32.mrf.mxu0
      %v4233 = vadd.f32 0.0, %v4232
      %v4234 = vpop.f32.mrf.mxu0
      %v4235 = vadd.f32 0.0, %v4234
      %4236 = vmatmul.bf16.gmra.mxu0 %v4108
      %v4237 = vpop.f32.mrf.mxu0
      %v4238 = vadd.f32 0.0, %v4237
      %v4239 = vpop.f32.mrf.mxu0
      %v4240 = vadd.f32 0.0, %v4239
      %4241 = vmatmul.bf16.gmra.mxu0 %v4109
      %v4242 = vpop.f32.mrf.mxu0
      %v4243 = vadd.f32 0.0, %v4242
      %v4244 = vpop.f32.mrf.mxu0
      %v4245 = vadd.f32 0.0, %v4244
      %4246 = vmatmul.bf16.gmra.mxu0 %v4110
      %v4247 = vpop.f32.mrf.mxu0
      %v4248 = vadd.f32 0.0, %v4247
      %v4249 = vpop.f32.mrf.mxu0
      %v4250 = vadd.f32 0.0, %v4249
      %4251 = vmatmul.bf16.gmra.mxu0 %v4111
      %v4252 = vpop.f32.mrf.mxu0
      %v4253 = vadd.f32 0.0, %v4252
      %v4254 = vpop.f32.mrf.mxu0
      %v4255 = vadd.f32 0.0, %v4254
      %4256 = vmatmul.bf16.gmra.mxu0 %v4112
      %v4257 = vpop.f32.mrf.mxu0
      %v4258 = vadd.f32 0.0, %v4257
      %v4259 = vpop.f32.mrf.mxu0
      %v4260 = vadd.f32 0.0, %v4259
      %4261 = vmatmul.bf16.gmra.mxu0 %v4113
      %v4262 = vpop.f32.mrf.mxu0
      %v4263 = vadd.f32 0.0, %v4262
      %v4264 = vpop.f32.mrf.mxu0
      %v4265 = vadd.f32 0.0, %v4264
      %4266 = vdwg.mxu0
      %v4267 = vadd.f32 %v3952, %v4188
      %v4268 = vadd.f32 %v3953, %v4190
      %v4269 = vadd.f32 %v3954, %v4193
      %v4270 = vadd.f32 %v3955, %v4195
      %v4271 = vadd.f32 %v3956, %v4198
      %v4272 = vadd.f32 %v3957, %v4200
      %v4273 = vadd.f32 %v3958, %v4203
      %v4274 = vadd.f32 %v3959, %v4205
      %v4275 = vadd.f32 %v3960, %v4208
      %v4276 = vadd.f32 %v3961, %v4210
      %v4277 = vadd.f32 %v3962, %v4213
      %v4278 = vadd.f32 %v3963, %v4215
      %v4279 = vadd.f32 %v3964, %v4218
      %v4280 = vadd.f32 %v3965, %v4220
      %v4281 = vadd.f32 %v3966, %v4223
      %v4282 = vadd.f32 %v3967, %v4225
      %v4283 = vadd.f32 %v3968, %v4228
      %v4284 = vadd.f32 %v3969, %v4230
      %v4285 = vadd.f32 %v3970, %v4233
      %v4286 = vadd.f32 %v3971, %v4235
      %v4287 = vadd.f32 %v3972, %v4238
      %v4288 = vadd.f32 %v3973, %v4240
      %v4289 = vadd.f32 %v3974, %v4243
      %v4290 = vadd.f32 %v3975, %v4245
      %v4291 = vadd.f32 %v3976, %v4248
      %v4292 = vadd.f32 %v3977, %v4250
      %v4293 = vadd.f32 %v3978, %v4253
      %v4294 = vadd.f32 %v3979, %v4255
      %v4295 = vadd.f32 %v3980, %v4258
      %v4296 = vadd.f32 %v3981, %v4260
      %v4297 = vadd.f32 %v3982, %v4263
      %v4298 = vadd.f32 %v3983, %v4265
      %v4299 = vld [vmem:[%s3984] sm:$0xf]
      %v4300 = vld [vmem:[%s3984 + $0x4] sm:$0xf]
      %v4301 = vld [vmem:[%s3984 + $0x8] sm:$0x1]
      %v4302 = vld [vmem:[%s3984 + $0xc] sm:$0xf]
      %v4303 = vld [vmem:[%s3984 + $0x10] sm:$0xf]
      %v4304 = vld [vmem:[%s3984 + $0x14] sm:$0x1]
      %v4305 = vld [vmem:[%s3984 + $0x18] sm:$0xf]
      %v4306 = vld [vmem:[%s3984 + $0x1c] sm:$0xf]
      %v4307 = vld [vmem:[%s3984 + $0x20] sm:$0x1]
      %v4308 = vld [vmem:[%s3984 + $0x24] sm:$0xf]
      %v4309 = vld [vmem:[%s3984 + $0x28] sm:$0xf]
      %v4310 = vld [vmem:[%s3984 + $0x2c] sm:$0x1]
      %v4311 = vld [vmem:[%s3984 + $0x30] sm:$0xf]
      %v4312 = vld [vmem:[%s3984 + $0x34] sm:$0xf]
      %v4313 = vld [vmem:[%s3984 + $0x38] sm:$0x1]
      %v4314 = vld [vmem:[%s3984 + $0x3c] sm:$0xf]
      %v4315 = vld [vmem:[%s3984 + $0x40] sm:$0xf]
      %v4316 = vld [vmem:[%s3984 + $0x44] sm:$0x1]
      %v4317 = vld [vmem:[%s3984 + $0x48] sm:$0xf]
      %v4318 = vld [vmem:[%s3984 + $0x4c] sm:$0xf]
      %v4319 = vld [vmem:[%s3984 + $0x50] sm:$0x1]
      %v4320 = vld [vmem:[%s3984 + $0x54] sm:$0xf]
      %v4321 = vld [vmem:[%s3984 + $0x58] sm:$0xf]
      %v4322 = vld [vmem:[%s3984 + $0x5c] sm:$0x1]
      %v4323 = vld [vmem:[%s3984 + $0x60] sm:$0xf]
      %v4324 = vld [vmem:[%s3984 + $0x64] sm:$0xf]
      %v4325 = vld [vmem:[%s3984 + $0x68] sm:$0x1]
      %v4326 = vld [vmem:[%s3984 + $0x6c] sm:$0xf]
      %v4327 = vld [vmem:[%s3984 + $0x70] sm:$0xf]
      %v4328 = vld [vmem:[%s3984 + $0x74] sm:$0x1]
      %v4329 = vld [vmem:[%s3984 + $0x78] sm:$0xf]
      %v4330 = vld [vmem:[%s3984 + $0x7c] sm:$0xf]
      %v4331 = vld [vmem:[%s3984 + $0x80] sm:$0x1]
      %v4332 = vld [vmem:[%s3984 + $0x84] sm:$0xf]
      %v4333 = vld [vmem:[%s3984 + $0x88] sm:$0xf]
      %v4334 = vld [vmem:[%s3984 + $0x8c] sm:$0x1]
      %v4335 = vld [vmem:[%s3984 + $0x90] sm:$0xf]
      %v4336 = vld [vmem:[%s3984 + $0x94] sm:$0xf]
      %v4337 = vld [vmem:[%s3984 + $0x98] sm:$0x1]
      %v4338 = vld [vmem:[%s3984 + $0x9c] sm:$0xf]
      %v4339 = vld [vmem:[%s3984 + $0xa0] sm:$0xf]
      %v4340 = vld [vmem:[%s3984 + $0xa4] sm:$0x1]
      %v4341 = vld [vmem:[%s3984 + $0xa8] sm:$0xf]
      %v4342 = vld [vmem:[%s3984 + $0xac] sm:$0xf]
      %v4343 = vld [vmem:[%s3984 + $0xb0] sm:$0x1]
      %v4344 = vld [vmem:[%s3984 + $0xb4] sm:$0xf]
      %v4345 = vld [vmem:[%s3984 + $0xb8] sm:$0xf]
      %v4346 = vld [vmem:[%s3984 + $0xbc] sm:$0x1]
      %s4347 = scalar_lea.vmem %s4, 448
      %v4348 = vld [vmem:[%s4347] sm:$0xf]
      %v4349 = vld [vmem:[%s4347 + $0x4] sm:$0xf]
      %v4350 = vld [vmem:[%s4347 + $0x8] sm:$0xf]
      %v4351 = vld [vmem:[%s4347 + $0xc] sm:$0xf]
      %v4352 = vld [vmem:[%s4347 + $0x10] sm:$0xf]
      %v4353 = vld [vmem:[%s4347 + $0x14] sm:$0xf]
      %v4354 = vld [vmem:[%s4347 + $0x18] sm:$0xf]
      %v4355 = vld [vmem:[%s4347 + $0x1c] sm:$0xf]
      %v4356 = vld [vmem:[%s4347 + $0x20] sm:$0xf]
      %v4357 = vld [vmem:[%s4347 + $0x24] sm:$0xf]
      %v4358 = vld [vmem:[%s4347 + $0x28] sm:$0xf]
      %v4359 = vld [vmem:[%s4347 + $0x2c] sm:$0xf]
      %v4360 = vld [vmem:[%s4347 + $0x30] sm:$0xf]
      %v4361 = vld [vmem:[%s4347 + $0x34] sm:$0xf]
      %v4362 = vld [vmem:[%s4347 + $0x38] sm:$0xf]
      %v4363 = vld [vmem:[%s4347 + $0x3c] sm:$0xf]
      %v4365 = vshrl.u32 %v4299, 16
      %v4367 = vrot.slane %v4365, 4
      %v4368 = vshll.u32 %v4299, 16
      %v4370 = vrot.slane %v4368, 5
      %v4371 = vor.u32 %v4367, %v4370
      %v4372 = vrot.slane %v4371, 4
      %v4374 = vshll.u32 %v4300, 16
      %v4376 = vrot.slane %v4374, 5
      %v4377 = vsel %vm1330, %v4372, %v4376
      %v4378 = vshrl.u32 %v4300, 16
      %v4380 = vrot.slane %v4378, 4
      %v4381 = vor.u32 %v4380, %v4376
      %v4382 = vrot.slane %v4381, 4
      %v4384 = vshll.u32 %v4301, 16
      %v4386 = vrot.slane %v4384, 5
      %v4387 = vsel %vm1330, %v4382, %v4386
      %v4389 = vshrl.u32 %v4302, 16
      %v4391 = vrot.slane %v4389, 4
      %v4392 = vshll.u32 %v4302, 16
      %v4394 = vrot.slane %v4392, 5
      %v4395 = vor.u32 %v4391, %v4394
      %v4396 = vrot.slane %v4395, 4
      %v4398 = vshll.u32 %v4303, 16
      %v4400 = vrot.slane %v4398, 5
      %v4401 = vsel %vm1330, %v4396, %v4400
      %v4402 = vshrl.u32 %v4303, 16
      %v4404 = vrot.slane %v4402, 4
      %v4405 = vor.u32 %v4404, %v4400
      %v4406 = vrot.slane %v4405, 4
      %v4408 = vshll.u32 %v4304, 16
      %v4410 = vrot.slane %v4408, 5
      %v4411 = vsel %vm1330, %v4406, %v4410
      %v4413 = vshrl.u32 %v4305, 16
      %v4415 = vrot.slane %v4413, 4
      %v4416 = vshll.u32 %v4305, 16
      %v4418 = vrot.slane %v4416, 5
      %v4419 = vor.u32 %v4415, %v4418
      %v4420 = vrot.slane %v4419, 4
      %v4422 = vshll.u32 %v4306, 16
      %v4424 = vrot.slane %v4422, 5
      %v4425 = vsel %vm1330, %v4420, %v4424
      %v4426 = vshrl.u32 %v4306, 16
      %v4428 = vrot.slane %v4426, 4
      %v4429 = vor.u32 %v4428, %v4424
      %v4430 = vrot.slane %v4429, 4
      %v4432 = vshll.u32 %v4307, 16
      %v4434 = vrot.slane %v4432, 5
      %v4435 = vsel %vm1330, %v4430, %v4434
      %v4437 = vshrl.u32 %v4308, 16
      %v4439 = vrot.slane %v4437, 4
      %v4440 = vshll.u32 %v4308, 16
      %v4442 = vrot.slane %v4440, 5
      %v4443 = vor.u32 %v4439, %v4442
      %v4444 = vrot.slane %v4443, 4
      %v4446 = vshll.u32 %v4309, 16
      %v4448 = vrot.slane %v4446, 5
      %v4449 = vsel %vm1330, %v4444, %v4448
      %v4450 = vshrl.u32 %v4309, 16
      %v4452 = vrot.slane %v4450, 4
      %v4453 = vor.u32 %v4452, %v4448
      %v4454 = vrot.slane %v4453, 4
      %v4456 = vshll.u32 %v4310, 16
      %v4458 = vrot.slane %v4456, 5
      %v4459 = vsel %vm1330, %v4454, %v4458
      %v4461 = vshrl.u32 %v4311, 16
      %v4463 = vrot.slane %v4461, 4
      %v4464 = vshll.u32 %v4311, 16
      %v4466 = vrot.slane %v4464, 5
      %v4467 = vor.u32 %v4463, %v4466
      %v4468 = vrot.slane %v4467, 4
      %v4470 = vshll.u32 %v4312, 16
      %v4472 = vrot.slane %v4470, 5
      %v4473 = vsel %vm1330, %v4468, %v4472
      %v4474 = vshrl.u32 %v4312, 16
      %v4476 = vrot.slane %v4474, 4
      %v4477 = vor.u32 %v4476, %v4472
      %v4478 = vrot.slane %v4477, 4
      %v4480 = vshll.u32 %v4313, 16
      %v4482 = vrot.slane %v4480, 5
      %v4483 = vsel %vm1330, %v4478, %v4482
      %v4485 = vshrl.u32 %v4314, 16
      %v4487 = vrot.slane %v4485, 4
      %v4488 = vshll.u32 %v4314, 16
      %v4490 = vrot.slane %v4488, 5
      %v4491 = vor.u32 %v4487, %v4490
      %v4492 = vrot.slane %v4491, 4
      %v4494 = vshll.u32 %v4315, 16
      %v4496 = vrot.slane %v4494, 5
      %v4497 = vsel %vm1330, %v4492, %v4496
      %v4498 = vshrl.u32 %v4315, 16
      %v4500 = vrot.slane %v4498, 4
      %v4501 = vor.u32 %v4500, %v4496
      %v4502 = vrot.slane %v4501, 4
      %v4504 = vshll.u32 %v4316, 16
      %v4506 = vrot.slane %v4504, 5
      %v4507 = vsel %vm1330, %v4502, %v4506
      %v4509 = vshrl.u32 %v4317, 16
      %v4511 = vrot.slane %v4509, 4
      %v4512 = vshll.u32 %v4317, 16
      %v4514 = vrot.slane %v4512, 5
      %v4515 = vor.u32 %v4511, %v4514
      %v4516 = vrot.slane %v4515, 4
      %v4518 = vshll.u32 %v4318, 16
      %v4520 = vrot.slane %v4518, 5
      %v4521 = vsel %vm1330, %v4516, %v4520
      %v4522 = vshrl.u32 %v4318, 16
      %v4524 = vrot.slane %v4522, 4
      %v4525 = vor.u32 %v4524, %v4520
      %v4526 = vrot.slane %v4525, 4
      %v4528 = vshll.u32 %v4319, 16
      %v4530 = vrot.slane %v4528, 5
      %v4531 = vsel %vm1330, %v4526, %v4530
      %v4533 = vshrl.u32 %v4320, 16
      %v4535 = vrot.slane %v4533, 4
      %v4536 = vshll.u32 %v4320, 16
      %v4538 = vrot.slane %v4536, 5
      %v4539 = vor.u32 %v4535, %v4538
      %v4540 = vrot.slane %v4539, 4
      %v4542 = vshll.u32 %v4321, 16
      %v4544 = vrot.slane %v4542, 5
      %v4545 = vsel %vm1330, %v4540, %v4544
      %v4546 = vshrl.u32 %v4321, 16
      %v4548 = vrot.slane %v4546, 4
      %v4549 = vor.u32 %v4548, %v4544
      %v4550 = vrot.slane %v4549, 4
      %v4552 = vshll.u32 %v4322, 16
      %v4554 = vrot.slane %v4552, 5
      %v4555 = vsel %vm1330, %v4550, %v4554
      %v4557 = vshrl.u32 %v4323, 16
      %v4559 = vrot.slane %v4557, 4
      %v4560 = vshll.u32 %v4323, 16
      %v4562 = vrot.slane %v4560, 5
      %v4563 = vor.u32 %v4559, %v4562
      %v4564 = vrot.slane %v4563, 4
      %v4566 = vshll.u32 %v4324, 16
      %v4568 = vrot.slane %v4566, 5
      %v4569 = vsel %vm1330, %v4564, %v4568
      %v4570 = vshrl.u32 %v4324, 16
      %v4572 = vrot.slane %v4570, 4
      %v4573 = vor.u32 %v4572, %v4568
      %v4574 = vrot.slane %v4573, 4
      %v4576 = vshll.u32 %v4325, 16
      %v4578 = vrot.slane %v4576, 5
      %v4579 = vsel %vm1330, %v4574, %v4578
      %v4581 = vshrl.u32 %v4326, 16
      %v4583 = vrot.slane %v4581, 4
      %v4584 = vshll.u32 %v4326, 16
      %v4586 = vrot.slane %v4584, 5
      %v4587 = vor.u32 %v4583, %v4586
      %v4588 = vrot.slane %v4587, 4
      %v4590 = vshll.u32 %v4327, 16
      %v4592 = vrot.slane %v4590, 5
      %v4593 = vsel %vm1330, %v4588, %v4592
      %v4594 = vshrl.u32 %v4327, 16
      %v4596 = vrot.slane %v4594, 4
      %v4597 = vor.u32 %v4596, %v4592
      %v4598 = vrot.slane %v4597, 4
      %v4600 = vshll.u32 %v4328, 16
      %v4602 = vrot.slane %v4600, 5
      %v4603 = vsel %vm1330, %v4598, %v4602
      %v4605 = vshrl.u32 %v4329, 16
      %v4607 = vrot.slane %v4605, 4
      %v4608 = vshll.u32 %v4329, 16
      %v4610 = vrot.slane %v4608, 5
      %v4611 = vor.u32 %v4607, %v4610
      %v4612 = vrot.slane %v4611, 4
      %v4614 = vshll.u32 %v4330, 16
      %v4616 = vrot.slane %v4614, 5
      %v4617 = vsel %vm1330, %v4612, %v4616
      %v4618 = vshrl.u32 %v4330, 16
      %v4620 = vrot.slane %v4618, 4
      %v4621 = vor.u32 %v4620, %v4616
      %v4622 = vrot.slane %v4621, 4
      %v4624 = vshll.u32 %v4331, 16
      %v4626 = vrot.slane %v4624, 5
      %v4627 = vsel %vm1330, %v4622, %v4626
      %v4629 = vshrl.u32 %v4332, 16
      %v4631 = vrot.slane %v4629, 4
      %v4632 = vshll.u32 %v4332, 16
      %v4634 = vrot.slane %v4632, 5
      %v4635 = vor.u32 %v4631, %v4634
      %v4636 = vrot.slane %v4635, 4
      %v4638 = vshll.u32 %v4333, 16
      %v4640 = vrot.slane %v4638, 5
      %v4641 = vsel %vm1330, %v4636, %v4640
      %v4642 = vshrl.u32 %v4333, 16
      %v4644 = vrot.slane %v4642, 4
      %v4645 = vor.u32 %v4644, %v4640
      %v4646 = vrot.slane %v4645, 4
      %v4648 = vshll.u32 %v4334, 16
      %v4650 = vrot.slane %v4648, 5
      %v4651 = vsel %vm1330, %v4646, %v4650
      %v4653 = vshrl.u32 %v4335, 16
      %v4655 = vrot.slane %v4653, 4
      %v4656 = vshll.u32 %v4335, 16
      %v4658 = vrot.slane %v4656, 5
      %v4659 = vor.u32 %v4655, %v4658
      %v4660 = vrot.slane %v4659, 4
      %v4662 = vshll.u32 %v4336, 16
      %v4664 = vrot.slane %v4662, 5
      %v4665 = vsel %vm1330, %v4660, %v4664
      %v4666 = vshrl.u32 %v4336, 16
      %v4668 = vrot.slane %v4666, 4
      %v4669 = vor.u32 %v4668, %v4664
      %v4670 = vrot.slane %v4669, 4
      %v4672 = vshll.u32 %v4337, 16
      %v4674 = vrot.slane %v4672, 5
      %v4675 = vsel %vm1330, %v4670, %v4674
      %v4677 = vshrl.u32 %v4338, 16
      %v4679 = vrot.slane %v4677, 4
      %v4680 = vshll.u32 %v4338, 16
      %v4682 = vrot.slane %v4680, 5
      %v4683 = vor.u32 %v4679, %v4682
      %v4684 = vrot.slane %v4683, 4
      %v4686 = vshll.u32 %v4339, 16
      %v4688 = vrot.slane %v4686, 5
      %v4689 = vsel %vm1330, %v4684, %v4688
      %v4690 = vshrl.u32 %v4339, 16
      %v4692 = vrot.slane %v4690, 4
      %v4693 = vor.u32 %v4692, %v4688
      %v4694 = vrot.slane %v4693, 4
      %v4696 = vshll.u32 %v4340, 16
      %v4698 = vrot.slane %v4696, 5
      %v4699 = vsel %vm1330, %v4694, %v4698
      %v4701 = vshrl.u32 %v4341, 16
      %v4703 = vrot.slane %v4701, 4
      %v4704 = vshll.u32 %v4341, 16
      %v4706 = vrot.slane %v4704, 5
      %v4707 = vor.u32 %v4703, %v4706
      %v4708 = vrot.slane %v4707, 4
      %v4710 = vshll.u32 %v4342, 16
      %v4712 = vrot.slane %v4710, 5
      %v4713 = vsel %vm1330, %v4708, %v4712
      %v4714 = vshrl.u32 %v4342, 16
      %v4716 = vrot.slane %v4714, 4
      %v4717 = vor.u32 %v4716, %v4712
      %v4718 = vrot.slane %v4717, 4
      %v4720 = vshll.u32 %v4343, 16
      %v4722 = vrot.slane %v4720, 5
      %v4723 = vsel %vm1330, %v4718, %v4722
      %v4725 = vshrl.u32 %v4344, 16
      %v4727 = vrot.slane %v4725, 4
      %v4728 = vshll.u32 %v4344, 16
      %v4730 = vrot.slane %v4728, 5
      %v4731 = vor.u32 %v4727, %v4730
      %v4732 = vrot.slane %v4731, 4
      %v4734 = vshll.u32 %v4345, 16
      %v4736 = vrot.slane %v4734, 5
      %v4737 = vsel %vm1330, %v4732, %v4736
      %v4738 = vshrl.u32 %v4345, 16
      %v4740 = vrot.slane %v4738, 4
      %v4741 = vor.u32 %v4740, %v4736
      %v4742 = vrot.slane %v4741, 4
      %v4744 = vshll.u32 %v4346, 16
      %v4746 = vrot.slane %v4744, 5
      %v4747 = vsel %vm1330, %v4742, %v4746
      %v4748 = vunpack.c.l.b16 %v4377
      %v4749 = vunpack.c.l.b16 %v4387
      %v4750 = vunpack.c.l.b16 %v4401
      %v4751 = vunpack.c.l.b16 %v4411
      %v4752 = vunpack.c.l.b16 %v4425
      %v4753 = vunpack.c.l.b16 %v4435
      %v4754 = vunpack.c.l.b16 %v4449
      %v4755 = vunpack.c.l.b16 %v4459
      %v4756 = vunpack.c.l.b16 %v4473
      %v4757 = vunpack.c.l.b16 %v4483
      %v4758 = vunpack.c.l.b16 %v4497
      %v4759 = vunpack.c.l.b16 %v4507
      %v4760 = vunpack.c.l.b16 %v4521
      %v4761 = vunpack.c.l.b16 %v4531
      %v4762 = vunpack.c.l.b16 %v4545
      %v4763 = vunpack.c.l.b16 %v4555
      %v4764 = vunpack.c.l.b16 %v4569
      %v4765 = vunpack.c.l.b16 %v4579
      %v4766 = vunpack.c.l.b16 %v4593
      %v4767 = vunpack.c.l.b16 %v4603
      %v4768 = vunpack.c.l.b16 %v4617
      %v4769 = vunpack.c.l.b16 %v4627
      %v4770 = vunpack.c.l.b16 %v4641
      %v4771 = vunpack.c.l.b16 %v4651
      %v4772 = vunpack.c.l.b16 %v4665
      %v4773 = vunpack.c.l.b16 %v4675
      %v4774 = vunpack.c.l.b16 %v4689
      %v4775 = vunpack.c.l.b16 %v4699
      %v4776 = vunpack.c.l.b16 %v4713
      %v4777 = vunpack.c.l.b16 %v4723
      %v4778 = vunpack.c.l.b16 %v4737
      %v4779 = vunpack.c.l.b16 %v4747
      %v4780 = vpack.c.b16 %v4749, %v4748
      %v4781 = vpack.c.b16 %v4751, %v4750
      %v4782 = vpack.c.b16 %v4753, %v4752
      %v4783 = vpack.c.b16 %v4755, %v4754
      %v4784 = vpack.c.b16 %v4757, %v4756
      %v4785 = vpack.c.b16 %v4759, %v4758
      %v4786 = vpack.c.b16 %v4761, %v4760
      %v4787 = vpack.c.b16 %v4763, %v4762
      %v4788 = vpack.c.b16 %v4765, %v4764
      %v4789 = vpack.c.b16 %v4767, %v4766
      %v4790 = vpack.c.b16 %v4769, %v4768
      %v4791 = vpack.c.b16 %v4771, %v4770
      %v4792 = vpack.c.b16 %v4773, %v4772
      %v4793 = vpack.c.b16 %v4775, %v4774
      %v4794 = vpack.c.b16 %v4777, %v4776
      %v4795 = vpack.c.b16 %v4779, %v4778
      %v4828 = vunpack.c.l.b16 %v4348
      %v4829 = vunpack.c.l.b16 %v4349
      %v4830 = vunpack.c.l.b16 %v4350
      %v4831 = vunpack.c.l.b16 %v4351
      %v4832 = vunpack.c.l.b16 %v4352
      %v4833 = vunpack.c.l.b16 %v4353
      %v4834 = vunpack.c.l.b16 %v4354
      %v4835 = vunpack.c.l.b16 %v4355
      %v4836 = vunpack.c.l.b16 %v4356
      %v4837 = vunpack.c.l.b16 %v4357
      %v4838 = vunpack.c.l.b16 %v4358
      %v4839 = vunpack.c.l.b16 %v4359
      %v4840 = vunpack.c.l.b16 %v4360
      %v4841 = vunpack.c.l.b16 %v4361
      %v4842 = vunpack.c.l.b16 %v4362
      %v4843 = vunpack.c.l.b16 %v4363
      %v4844 = vpack.c.b16 %v4829, %v4828
      %v4845 = vpack.c.b16 %v4831, %v4830
      %v4846 = vpack.c.b16 %v4833, %v4832
      %v4847 = vpack.c.b16 %v4835, %v4834
      %v4848 = vpack.c.b16 %v4837, %v4836
      %v4849 = vpack.c.b16 %v4839, %v4838
      %v4850 = vpack.c.b16 %v4841, %v4840
      %v4851 = vpack.c.b16 %v4843, %v4842
      %4860 = vmatpush.bf16.msra.mxu0 %v4851
      %4861 = vmatpush.bf16.msra.mxu0 %v4850
      %4862 = vmatpush.bf16.msra.mxu0 %v4849
      %4863 = vmatpush.bf16.msra.mxu0 %v4848
      %4864 = vmatpush.bf16.msra.mxu0 %v4847
      %4865 = vmatpush.bf16.msra.mxu0 %v4846
      %4866 = vmatpush.bf16.msra.mxu0 %v4845
      %4867 = vmatpush.bf16.msra.mxu0 %v4844
      %4868 = vmatmul.bf16.gmra.mxu0 %v4780
      %v4869 = vpop.f32.mrf.mxu0
      %v4870 = vadd.f32 0.0, %v4869
      %v4871 = vpop.f32.mrf.mxu0
      %v4872 = vadd.f32 0.0, %v4871
      %4873 = vmatmul.bf16.gmra.mxu0 %v4781
      %v4874 = vpop.f32.mrf.mxu0
      %v4875 = vadd.f32 0.0, %v4874
      %v4876 = vpop.f32.mrf.mxu0
      %v4877 = vadd.f32 0.0, %v4876
      %4878 = vmatmul.bf16.gmra.mxu0 %v4782
      %v4879 = vpop.f32.mrf.mxu0
      %v4880 = vadd.f32 0.0, %v4879
      %v4881 = vpop.f32.mrf.mxu0
      %v4882 = vadd.f32 0.0, %v4881
      %4883 = vmatmul.bf16.gmra.mxu0 %v4783
      %v4884 = vpop.f32.mrf.mxu0
      %v4885 = vadd.f32 0.0, %v4884
      %v4886 = vpop.f32.mrf.mxu0
      %v4887 = vadd.f32 0.0, %v4886
      %4888 = vmatmul.bf16.gmra.mxu0 %v4784
      %v4889 = vpop.f32.mrf.mxu0
      %v4890 = vadd.f32 0.0, %v4889
      %v4891 = vpop.f32.mrf.mxu0
      %v4892 = vadd.f32 0.0, %v4891
      %4893 = vmatmul.bf16.gmra.mxu0 %v4785
      %v4894 = vpop.f32.mrf.mxu0
      %v4895 = vadd.f32 0.0, %v4894
      %v4896 = vpop.f32.mrf.mxu0
      %v4897 = vadd.f32 0.0, %v4896
      %4898 = vmatmul.bf16.gmra.mxu0 %v4786
      %v4899 = vpop.f32.mrf.mxu0
      %v4900 = vadd.f32 0.0, %v4899
      %v4901 = vpop.f32.mrf.mxu0
      %v4902 = vadd.f32 0.0, %v4901
      %4903 = vmatmul.bf16.gmra.mxu0 %v4787
      %v4904 = vpop.f32.mrf.mxu0
      %v4905 = vadd.f32 0.0, %v4904
      %v4906 = vpop.f32.mrf.mxu0
      %v4907 = vadd.f32 0.0, %v4906
      %4908 = vmatmul.bf16.gmra.mxu0 %v4788
      %v4909 = vpop.f32.mrf.mxu0
      %v4910 = vadd.f32 0.0, %v4909
      %v4911 = vpop.f32.mrf.mxu0
      %v4912 = vadd.f32 0.0, %v4911
      %4913 = vmatmul.bf16.gmra.mxu0 %v4789
      %v4914 = vpop.f32.mrf.mxu0
      %v4915 = vadd.f32 0.0, %v4914
      %v4916 = vpop.f32.mrf.mxu0
      %v4917 = vadd.f32 0.0, %v4916
      %4918 = vmatmul.bf16.gmra.mxu0 %v4790
      %v4919 = vpop.f32.mrf.mxu0
      %v4920 = vadd.f32 0.0, %v4919
      %v4921 = vpop.f32.mrf.mxu0
      %v4922 = vadd.f32 0.0, %v4921
      %4923 = vmatmul.bf16.gmra.mxu0 %v4791
      %v4924 = vpop.f32.mrf.mxu0
      %v4925 = vadd.f32 0.0, %v4924
      %v4926 = vpop.f32.mrf.mxu0
      %v4927 = vadd.f32 0.0, %v4926
      %4928 = vmatmul.bf16.gmra.mxu0 %v4792
      %v4929 = vpop.f32.mrf.mxu0
      %v4930 = vadd.f32 0.0, %v4929
      %v4931 = vpop.f32.mrf.mxu0
      %v4932 = vadd.f32 0.0, %v4931
      %4933 = vmatmul.bf16.gmra.mxu0 %v4793
      %v4934 = vpop.f32.mrf.mxu0
      %v4935 = vadd.f32 0.0, %v4934
      %v4936 = vpop.f32.mrf.mxu0
      %v4937 = vadd.f32 0.0, %v4936
      %4938 = vmatmul.bf16.gmra.mxu0 %v4794
      %v4939 = vpop.f32.mrf.mxu0
      %v4940 = vadd.f32 0.0, %v4939
      %v4941 = vpop.f32.mrf.mxu0
      %v4942 = vadd.f32 0.0, %v4941
      %4943 = vmatmul.bf16.gmra.mxu0 %v4795
      %v4944 = vpop.f32.mrf.mxu0
      %v4945 = vadd.f32 0.0, %v4944
      %v4946 = vpop.f32.mrf.mxu0
      %v4947 = vadd.f32 0.0, %v4946
      %4948 = vdwg.mxu0
      %v4949 = vadd.f32 %v4267, %v4870
      %v4950 = vadd.f32 %v4268, %v4872
      %v4951 = vadd.f32 %v4269, %v4875
      %v4952 = vadd.f32 %v4270, %v4877
      %v4953 = vadd.f32 %v4271, %v4880
      %v4954 = vadd.f32 %v4272, %v4882
      %v4955 = vadd.f32 %v4273, %v4885
      %v4956 = vadd.f32 %v4274, %v4887
      %v4957 = vadd.f32 %v4275, %v4890
      %v4958 = vadd.f32 %v4276, %v4892
      %v4959 = vadd.f32 %v4277, %v4895
      %v4960 = vadd.f32 %v4278, %v4897
      %v4961 = vadd.f32 %v4279, %v4900
      %v4962 = vadd.f32 %v4280, %v4902
      %v4963 = vadd.f32 %v4281, %v4905
      %v4964 = vadd.f32 %v4282, %v4907
      %v4965 = vadd.f32 %v4283, %v4910
      %v4966 = vadd.f32 %v4284, %v4912
      %v4967 = vadd.f32 %v4285, %v4915
      %v4968 = vadd.f32 %v4286, %v4917
      %v4969 = vadd.f32 %v4287, %v4920
      %v4970 = vadd.f32 %v4288, %v4922
      %v4971 = vadd.f32 %v4289, %v4925
      %v4972 = vadd.f32 %v4290, %v4927
      %v4973 = vadd.f32 %v4291, %v4930
      %v4974 = vadd.f32 %v4292, %v4932
      %v4975 = vadd.f32 %v4293, %v4935
      %v4976 = vadd.f32 %v4294, %v4937
      %v4977 = vadd.f32 %v4295, %v4940
      %v4978 = vadd.f32 %v4296, %v4942
      %v4979 = vadd.f32 %v4297, %v4945
      %v4980 = vadd.f32 %v4298, %v4947
      %v4981 = vld [vmem:[%s3984] sm:$0xe]
      %v4982 = vld [vmem:[%s3984 + $0xc] sm:$0xe]
      %v4983 = vld [vmem:[%s3984 + $0x18] sm:$0xe]
      %v4984 = vld [vmem:[%s3984 + $0x24] sm:$0xe]
      %v4985 = vld [vmem:[%s3984 + $0x30] sm:$0xe]
      %v4986 = vld [vmem:[%s3984 + $0x3c] sm:$0xe]
      %v4987 = vld [vmem:[%s3984 + $0x48] sm:$0xe]
      %v4988 = vld [vmem:[%s3984 + $0x54] sm:$0xe]
      %v4989 = vld [vmem:[%s3984 + $0x60] sm:$0xe]
      %v4990 = vld [vmem:[%s3984 + $0x6c] sm:$0xe]
      %v4991 = vld [vmem:[%s3984 + $0x78] sm:$0xe]
      %v4992 = vld [vmem:[%s3984 + $0x84] sm:$0xe]
      %v4993 = vld [vmem:[%s3984 + $0x90] sm:$0xe]
      %v4994 = vld [vmem:[%s3984 + $0x9c] sm:$0xe]
      %v4995 = vld [vmem:[%s3984 + $0xa8] sm:$0xe]
      %v4996 = vld [vmem:[%s3984 + $0xb4] sm:$0xe]
      %s4997 = scalar_lea.vmem %s4, 512
      %v4998 = vld [vmem:[%s4997] sm:$0xf]
      %v4999 = vld [vmem:[%s4997 + $0x4] sm:$0xf]
      %v5000 = vld [vmem:[%s4997 + $0x8] sm:$0xf]
      %v5001 = vld [vmem:[%s4997 + $0xc] sm:$0xf]
      %v5002 = vld [vmem:[%s4997 + $0x10] sm:$0xf]
      %v5003 = vld [vmem:[%s4997 + $0x14] sm:$0xf]
      %v5004 = vld [vmem:[%s4997 + $0x18] sm:$0xf]
      %v5005 = vld [vmem:[%s4997 + $0x1c] sm:$0xf]
      %v5006 = vld [vmem:[%s4997 + $0x20] sm:$0xf]
      %v5007 = vld [vmem:[%s4997 + $0x24] sm:$0xf]
      %v5008 = vld [vmem:[%s4997 + $0x28] sm:$0xf]
      %v5009 = vld [vmem:[%s4997 + $0x2c] sm:$0xf]
      %v5010 = vld [vmem:[%s4997 + $0x30] sm:$0xf]
      %v5011 = vld [vmem:[%s4997 + $0x34] sm:$0xf]
      %v5012 = vld [vmem:[%s4997 + $0x38] sm:$0xf]
      %v5013 = vld [vmem:[%s4997 + $0x3c] sm:$0xf]
      %v5062 = vrot.slane %v4981, 5
      %v5063 = vrot.slane %v5062, 4
      %v5064 = vrot.slane %v4300, 5
      %v5065 = vsel %vm2216, %v5063, %v5064
      %v5066 = vrot.slane %v5064, 4
      %v5067 = vrot.slane %v4301, 5
      %v5068 = vsel %vm2216, %v5066, %v5067
      %v5069 = vrot.slane %v4982, 5
      %v5070 = vrot.slane %v5069, 4
      %v5071 = vrot.slane %v4303, 5
      %v5072 = vsel %vm2216, %v5070, %v5071
      %v5073 = vrot.slane %v5071, 4
      %v5074 = vrot.slane %v4304, 5
      %v5075 = vsel %vm2216, %v5073, %v5074
      %v5076 = vrot.slane %v4983, 5
      %v5077 = vrot.slane %v5076, 4
      %v5078 = vrot.slane %v4306, 5
      %v5079 = vsel %vm2216, %v5077, %v5078
      %v5080 = vrot.slane %v5078, 4
      %v5081 = vrot.slane %v4307, 5
      %v5082 = vsel %vm2216, %v5080, %v5081
      %v5083 = vrot.slane %v4984, 5
      %v5084 = vrot.slane %v5083, 4
      %v5085 = vrot.slane %v4309, 5
      %v5086 = vsel %vm2216, %v5084, %v5085
      %v5087 = vrot.slane %v5085, 4
      %v5088 = vrot.slane %v4310, 5
      %v5089 = vsel %vm2216, %v5087, %v5088
      %v5090 = vrot.slane %v4985, 5
      %v5091 = vrot.slane %v5090, 4
      %v5092 = vrot.slane %v4312, 5
      %v5093 = vsel %vm2216, %v5091, %v5092
      %v5094 = vrot.slane %v5092, 4
      %v5095 = vrot.slane %v4313, 5
      %v5096 = vsel %vm2216, %v5094, %v5095
      %v5097 = vrot.slane %v4986, 5
      %v5098 = vrot.slane %v5097, 4
      %v5099 = vrot.slane %v4315, 5
      %v5100 = vsel %vm2216, %v5098, %v5099
      %v5101 = vrot.slane %v5099, 4
      %v5102 = vrot.slane %v4316, 5
      %v5103 = vsel %vm2216, %v5101, %v5102
      %v5104 = vrot.slane %v4987, 5
      %v5105 = vrot.slane %v5104, 4
      %v5106 = vrot.slane %v4318, 5
      %v5107 = vsel %vm2216, %v5105, %v5106
      %v5108 = vrot.slane %v5106, 4
      %v5109 = vrot.slane %v4319, 5
      %v5110 = vsel %vm2216, %v5108, %v5109
      %v5111 = vrot.slane %v4988, 5
      %v5112 = vrot.slane %v5111, 4
      %v5113 = vrot.slane %v4321, 5
      %v5114 = vsel %vm2216, %v5112, %v5113
      %v5115 = vrot.slane %v5113, 4
      %v5116 = vrot.slane %v4322, 5
      %v5117 = vsel %vm2216, %v5115, %v5116
      %v5118 = vrot.slane %v4989, 5
      %v5119 = vrot.slane %v5118, 4
      %v5120 = vrot.slane %v4324, 5
      %v5121 = vsel %vm2216, %v5119, %v5120
      %v5122 = vrot.slane %v5120, 4
      %v5123 = vrot.slane %v4325, 5
      %v5124 = vsel %vm2216, %v5122, %v5123
      %v5125 = vrot.slane %v4990, 5
      %v5126 = vrot.slane %v5125, 4
      %v5127 = vrot.slane %v4327, 5
      %v5128 = vsel %vm2216, %v5126, %v5127
      %v5129 = vrot.slane %v5127, 4
      %v5130 = vrot.slane %v4328, 5
      %v5131 = vsel %vm2216, %v5129, %v5130
      %v5132 = vrot.slane %v4991, 5
      %v5133 = vrot.slane %v5132, 4
      %v5134 = vrot.slane %v4330, 5
      %v5135 = vsel %vm2216, %v5133, %v5134
      %v5136 = vrot.slane %v5134, 4
      %v5137 = vrot.slane %v4331, 5
      %v5138 = vsel %vm2216, %v5136, %v5137
      %v5139 = vrot.slane %v4992, 5
      %v5140 = vrot.slane %v5139, 4
      %v5141 = vrot.slane %v4333, 5
      %v5142 = vsel %vm2216, %v5140, %v5141
      %v5143 = vrot.slane %v5141, 4
      %v5144 = vrot.slane %v4334, 5
      %v5145 = vsel %vm2216, %v5143, %v5144
      %v5146 = vrot.slane %v4993, 5
      %v5147 = vrot.slane %v5146, 4
      %v5148 = vrot.slane %v4336, 5
      %v5149 = vsel %vm2216, %v5147, %v5148
      %v5150 = vrot.slane %v5148, 4
      %v5151 = vrot.slane %v4337, 5
      %v5152 = vsel %vm2216, %v5150, %v5151
      %v5153 = vrot.slane %v4994, 5
      %v5154 = vrot.slane %v5153, 4
      %v5155 = vrot.slane %v4339, 5
      %v5156 = vsel %vm2216, %v5154, %v5155
      %v5157 = vrot.slane %v5155, 4
      %v5158 = vrot.slane %v4340, 5
      %v5159 = vsel %vm2216, %v5157, %v5158
      %v5160 = vrot.slane %v4995, 5
      %v5161 = vrot.slane %v5160, 4
      %v5162 = vrot.slane %v4342, 5
      %v5163 = vsel %vm2216, %v5161, %v5162
      %v5164 = vrot.slane %v5162, 4
      %v5165 = vrot.slane %v4343, 5
      %v5166 = vsel %vm2216, %v5164, %v5165
      %v5167 = vrot.slane %v4996, 5
      %v5168 = vrot.slane %v5167, 4
      %v5169 = vrot.slane %v4345, 5
      %v5170 = vsel %vm2216, %v5168, %v5169
      %v5171 = vrot.slane %v5169, 4
      %v5172 = vrot.slane %v4346, 5
      %v5173 = vsel %vm2216, %v5171, %v5172
      %v5174 = vunpack.c.l.b16 %v5065
      %v5175 = vunpack.c.l.b16 %v5068
      %v5176 = vunpack.c.l.b16 %v5072
      %v5177 = vunpack.c.l.b16 %v5075
      %v5178 = vunpack.c.l.b16 %v5079
      %v5179 = vunpack.c.l.b16 %v5082
      %v5180 = vunpack.c.l.b16 %v5086
      %v5181 = vunpack.c.l.b16 %v5089
      %v5182 = vunpack.c.l.b16 %v5093
      %v5183 = vunpack.c.l.b16 %v5096
      %v5184 = vunpack.c.l.b16 %v5100
      %v5185 = vunpack.c.l.b16 %v5103
      %v5186 = vunpack.c.l.b16 %v5107
      %v5187 = vunpack.c.l.b16 %v5110
      %v5188 = vunpack.c.l.b16 %v5114
      %v5189 = vunpack.c.l.b16 %v5117
      %v5190 = vunpack.c.l.b16 %v5121
      %v5191 = vunpack.c.l.b16 %v5124
      %v5192 = vunpack.c.l.b16 %v5128
      %v5193 = vunpack.c.l.b16 %v5131
      %v5194 = vunpack.c.l.b16 %v5135
      %v5195 = vunpack.c.l.b16 %v5138
      %v5196 = vunpack.c.l.b16 %v5142
      %v5197 = vunpack.c.l.b16 %v5145
      %v5198 = vunpack.c.l.b16 %v5149
      %v5199 = vunpack.c.l.b16 %v5152
      %v5200 = vunpack.c.l.b16 %v5156
      %v5201 = vunpack.c.l.b16 %v5159
      %v5202 = vunpack.c.l.b16 %v5163
      %v5203 = vunpack.c.l.b16 %v5166
      %v5204 = vunpack.c.l.b16 %v5170
      %v5205 = vunpack.c.l.b16 %v5173
      %v5206 = vpack.c.b16 %v5175, %v5174
      %v5207 = vpack.c.b16 %v5177, %v5176
      %v5208 = vpack.c.b16 %v5179, %v5178
      %v5209 = vpack.c.b16 %v5181, %v5180
      %v5210 = vpack.c.b16 %v5183, %v5182
      %v5211 = vpack.c.b16 %v5185, %v5184
      %v5212 = vpack.c.b16 %v5187, %v5186
      %v5213 = vpack.c.b16 %v5189, %v5188
      %v5214 = vpack.c.b16 %v5191, %v5190
      %v5215 = vpack.c.b16 %v5193, %v5192
      %v5216 = vpack.c.b16 %v5195, %v5194
      %v5217 = vpack.c.b16 %v5197, %v5196
      %v5218 = vpack.c.b16 %v5199, %v5198
      %v5219 = vpack.c.b16 %v5201, %v5200
      %v5220 = vpack.c.b16 %v5203, %v5202
      %v5221 = vpack.c.b16 %v5205, %v5204
      %v5254 = vunpack.c.l.b16 %v4998
      %v5255 = vunpack.c.l.b16 %v4999
      %v5256 = vunpack.c.l.b16 %v5000
      %v5257 = vunpack.c.l.b16 %v5001
      %v5258 = vunpack.c.l.b16 %v5002
      %v5259 = vunpack.c.l.b16 %v5003
      %v5260 = vunpack.c.l.b16 %v5004
      %v5261 = vunpack.c.l.b16 %v5005
      %v5262 = vunpack.c.l.b16 %v5006
      %v5263 = vunpack.c.l.b16 %v5007
      %v5264 = vunpack.c.l.b16 %v5008
      %v5265 = vunpack.c.l.b16 %v5009
      %v5266 = vunpack.c.l.b16 %v5010
      %v5267 = vunpack.c.l.b16 %v5011
      %v5268 = vunpack.c.l.b16 %v5012
      %v5269 = vunpack.c.l.b16 %v5013
      %v5270 = vpack.c.b16 %v5255, %v5254
      %v5271 = vpack.c.b16 %v5257, %v5256
      %v5272 = vpack.c.b16 %v5259, %v5258
      %v5273 = vpack.c.b16 %v5261, %v5260
      %v5274 = vpack.c.b16 %v5263, %v5262
      %v5275 = vpack.c.b16 %v5265, %v5264
      %v5276 = vpack.c.b16 %v5267, %v5266
      %v5277 = vpack.c.b16 %v5269, %v5268
      %5286 = vmatpush.bf16.msra.mxu0 %v5277
      %5287 = vmatpush.bf16.msra.mxu0 %v5276
      %5288 = vmatpush.bf16.msra.mxu0 %v5275
      %5289 = vmatpush.bf16.msra.mxu0 %v5274
      %5290 = vmatpush.bf16.msra.mxu0 %v5273
      %5291 = vmatpush.bf16.msra.mxu0 %v5272
      %5292 = vmatpush.bf16.msra.mxu0 %v5271
      %5293 = vmatpush.bf16.msra.mxu0 %v5270
      %5294 = vmatmul.bf16.gmra.mxu0 %v5206
      %v5295 = vpop.f32.mrf.mxu0
      %v5296 = vadd.f32 0.0, %v5295
      %v5297 = vpop.f32.mrf.mxu0
      %v5298 = vadd.f32 0.0, %v5297
      %5299 = vmatmul.bf16.gmra.mxu0 %v5207
      %v5300 = vpop.f32.mrf.mxu0
      %v5301 = vadd.f32 0.0, %v5300
      %v5302 = vpop.f32.mrf.mxu0
      %v5303 = vadd.f32 0.0, %v5302
      %5304 = vmatmul.bf16.gmra.mxu0 %v5208
      %v5305 = vpop.f32.mrf.mxu0
      %v5306 = vadd.f32 0.0, %v5305
      %v5307 = vpop.f32.mrf.mxu0
      %v5308 = vadd.f32 0.0, %v5307
      %5309 = vmatmul.bf16.gmra.mxu0 %v5209
      %v5310 = vpop.f32.mrf.mxu0
      %v5311 = vadd.f32 0.0, %v5310
      %v5312 = vpop.f32.mrf.mxu0
      %v5313 = vadd.f32 0.0, %v5312
      %5314 = vmatmul.bf16.gmra.mxu0 %v5210
      %v5315 = vpop.f32.mrf.mxu0
      %v5316 = vadd.f32 0.0, %v5315
      %v5317 = vpop.f32.mrf.mxu0
      %v5318 = vadd.f32 0.0, %v5317
      %5319 = vmatmul.bf16.gmra.mxu0 %v5211
      %v5320 = vpop.f32.mrf.mxu0
      %v5321 = vadd.f32 0.0, %v5320
      %v5322 = vpop.f32.mrf.mxu0
      %v5323 = vadd.f32 0.0, %v5322
      %5324 = vmatmul.bf16.gmra.mxu0 %v5212
      %v5325 = vpop.f32.mrf.mxu0
      %v5326 = vadd.f32 0.0, %v5325
      %v5327 = vpop.f32.mrf.mxu0
      %v5328 = vadd.f32 0.0, %v5327
      %5329 = vmatmul.bf16.gmra.mxu0 %v5213
      %v5330 = vpop.f32.mrf.mxu0
      %v5331 = vadd.f32 0.0, %v5330
      %v5332 = vpop.f32.mrf.mxu0
      %v5333 = vadd.f32 0.0, %v5332
      %5334 = vmatmul.bf16.gmra.mxu0 %v5214
      %v5335 = vpop.f32.mrf.mxu0
      %v5336 = vadd.f32 0.0, %v5335
      %v5337 = vpop.f32.mrf.mxu0
      %v5338 = vadd.f32 0.0, %v5337
      %5339 = vmatmul.bf16.gmra.mxu0 %v5215
      %v5340 = vpop.f32.mrf.mxu0
      %v5341 = vadd.f32 0.0, %v5340
      %v5342 = vpop.f32.mrf.mxu0
      %v5343 = vadd.f32 0.0, %v5342
      %5344 = vmatmul.bf16.gmra.mxu0 %v5216
      %v5345 = vpop.f32.mrf.mxu0
      %v5346 = vadd.f32 0.0, %v5345
      %v5347 = vpop.f32.mrf.mxu0
      %v5348 = vadd.f32 0.0, %v5347
      %5349 = vmatmul.bf16.gmra.mxu0 %v5217
      %v5350 = vpop.f32.mrf.mxu0
      %v5351 = vadd.f32 0.0, %v5350
      %v5352 = vpop.f32.mrf.mxu0
      %v5353 = vadd.f32 0.0, %v5352
      %5354 = vmatmul.bf16.gmra.mxu0 %v5218
      %v5355 = vpop.f32.mrf.mxu0
      %v5356 = vadd.f32 0.0, %v5355
      %v5357 = vpop.f32.mrf.mxu0
      %v5358 = vadd.f32 0.0, %v5357
      %5359 = vmatmul.bf16.gmra.mxu0 %v5219
      %v5360 = vpop.f32.mrf.mxu0
      %v5361 = vadd.f32 0.0, %v5360
      %v5362 = vpop.f32.mrf.mxu0
      %v5363 = vadd.f32 0.0, %v5362
      %5364 = vmatmul.bf16.gmra.mxu0 %v5220
      %v5365 = vpop.f32.mrf.mxu0
      %v5366 = vadd.f32 0.0, %v5365
      %v5367 = vpop.f32.mrf.mxu0
      %v5368 = vadd.f32 0.0, %v5367
      %5369 = vmatmul.bf16.gmra.mxu0 %v5221
      %v5370 = vpop.f32.mrf.mxu0
      %v5371 = vadd.f32 0.0, %v5370
      %v5372 = vpop.f32.mrf.mxu0
      %v5373 = vadd.f32 0.0, %v5372
      %5374 = vdwg.mxu0
      %v5375 = vadd.f32 %v4949, %v5296
      %v5376 = vadd.f32 %v4950, %v5298
      %v5377 = vadd.f32 %v4951, %v5301
      %v5378 = vadd.f32 %v4952, %v5303
      %v5379 = vadd.f32 %v4953, %v5306
      %v5380 = vadd.f32 %v4954, %v5308
      %v5381 = vadd.f32 %v4955, %v5311
      %v5382 = vadd.f32 %v4956, %v5313
      %v5383 = vadd.f32 %v4957, %v5316
      %v5384 = vadd.f32 %v4958, %v5318
      %v5385 = vadd.f32 %v4959, %v5321
      %v5386 = vadd.f32 %v4960, %v5323
      %v5387 = vadd.f32 %v4961, %v5326
      %v5388 = vadd.f32 %v4962, %v5328
      %v5389 = vadd.f32 %v4963, %v5331
      %v5390 = vadd.f32 %v4964, %v5333
      %v5391 = vadd.f32 %v4965, %v5336
      %v5392 = vadd.f32 %v4966, %v5338
      %v5393 = vadd.f32 %v4967, %v5341
      %v5394 = vadd.f32 %v4968, %v5343
      %v5395 = vadd.f32 %v4969, %v5346
      %v5396 = vadd.f32 %v4970, %v5348
      %v5397 = vadd.f32 %v4971, %v5351
      %v5398 = vadd.f32 %v4972, %v5353
      %v5399 = vadd.f32 %v4973, %v5356
      %v5400 = vadd.f32 %v4974, %v5358
      %v5401 = vadd.f32 %v4975, %v5361
      %v5402 = vadd.f32 %v4976, %v5363
      %v5403 = vadd.f32 %v4977, %v5366
      %v5404 = vadd.f32 %v4978, %v5368
      %v5405 = vadd.f32 %v4979, %v5371
      %v5406 = vadd.f32 %v4980, %v5373
      %v5407 = vld [vmem:[%s5] sm:$0x1]
      %v5409 = vperm.slane %v5407, 0
      %v5411 = vmul.f32 %v5375, %v5409
      %v5412 = vmul.f32 %v5376, %v5409
      %v5413 = vmul.f32 %v5377, %v5409
      %v5414 = vmul.f32 %v5378, %v5409
      %v5415 = vmul.f32 %v5379, %v5409
      %v5416 = vmul.f32 %v5380, %v5409
      %v5417 = vmul.f32 %v5381, %v5409
      %v5418 = vmul.f32 %v5382, %v5409
      %v5419 = vmul.f32 %v5383, %v5409
      %v5420 = vmul.f32 %v5384, %v5409
      %v5421 = vmul.f32 %v5385, %v5409
      %v5422 = vmul.f32 %v5386, %v5409
      %v5423 = vmul.f32 %v5387, %v5409
      %v5424 = vmul.f32 %v5388, %v5409
      %v5425 = vmul.f32 %v5389, %v5409
      %v5426 = vmul.f32 %v5390, %v5409
      %v5427 = vmul.f32 %v5391, %v5409
      %v5428 = vmul.f32 %v5392, %v5409
      %v5429 = vmul.f32 %v5393, %v5409
      %v5430 = vmul.f32 %v5394, %v5409
      %v5431 = vmul.f32 %v5395, %v5409
      %v5432 = vmul.f32 %v5396, %v5409
      %v5433 = vmul.f32 %v5397, %v5409
      %v5434 = vmul.f32 %v5398, %v5409
      %v5435 = vmul.f32 %v5399, %v5409
      %v5436 = vmul.f32 %v5400, %v5409
      %v5437 = vmul.f32 %v5401, %v5409
      %v5438 = vmul.f32 %v5402, %v5409
      %v5439 = vmul.f32 %v5403, %v5409
      %v5440 = vmul.f32 %v5404, %v5409
      %v5441 = vmul.f32 %v5405, %v5409
      %v5442 = vmul.f32 %v5406, %v5409
      %v5443 = vld [vmem:[%s6] sm:$0x1]
      %v5445 = vperm.slane %v5443, 0
      %v5447 = vadd.f32 %v5411, %v5445
      %v5448 = vadd.f32 %v5412, %v5445
      %v5449 = vadd.f32 %v5413, %v5445
      %v5450 = vadd.f32 %v5414, %v5445
      %v5451 = vadd.f32 %v5415, %v5445
      %v5452 = vadd.f32 %v5416, %v5445
      %v5453 = vadd.f32 %v5417, %v5445
      %v5454 = vadd.f32 %v5418, %v5445
      %v5455 = vadd.f32 %v5419, %v5445
      %v5456 = vadd.f32 %v5420, %v5445
      %v5457 = vadd.f32 %v5421, %v5445
      %v5458 = vadd.f32 %v5422, %v5445
      %v5459 = vadd.f32 %v5423, %v5445
      %v5460 = vadd.f32 %v5424, %v5445
      %v5461 = vadd.f32 %v5425, %v5445
      %v5462 = vadd.f32 %v5426, %v5445
      %v5463 = vadd.f32 %v5427, %v5445
      %v5464 = vadd.f32 %v5428, %v5445
      %v5465 = vadd.f32 %v5429, %v5445
      %v5466 = vadd.f32 %v5430, %v5445
      %v5467 = vadd.f32 %v5431, %v5445
      %v5468 = vadd.f32 %v5432, %v5445
      %v5469 = vadd.f32 %v5433, %v5445
      %v5470 = vadd.f32 %v5434, %v5445
      %v5471 = vadd.f32 %v5435, %v5445
      %v5472 = vadd.f32 %v5436, %v5445
      %v5473 = vadd.f32 %v5437, %v5445
      %v5474 = vadd.f32 %v5438, %v5445
      %v5475 = vadd.f32 %v5439, %v5445
      %v5476 = vadd.f32 %v5440, %v5445
      %v5477 = vadd.f32 %v5441, %v5445
      %v5478 = vadd.f32 %v5442, %v5445
      %v5479 = vmax.f32 %v5447, 0.0
      %v5480 = vmax.f32 %v5448, 0.0
      %v5481 = vmax.f32 %v5449, 0.0
      %v5482 = vmax.f32 %v5450, 0.0
      %v5483 = vmax.f32 %v5451, 0.0
      %v5484 = vmax.f32 %v5452, 0.0
      %v5485 = vmax.f32 %v5453, 0.0
      %v5486 = vmax.f32 %v5454, 0.0
      %v5487 = vmax.f32 %v5455, 0.0
      %v5488 = vmax.f32 %v5456, 0.0
      %v5489 = vmax.f32 %v5457, 0.0
      %v5490 = vmax.f32 %v5458, 0.0
      %v5491 = vmax.f32 %v5459, 0.0
      %v5492 = vmax.f32 %v5460, 0.0
      %v5493 = vmax.f32 %v5461, 0.0
      %v5494 = vmax.f32 %v5462, 0.0
      %v5495 = vmax.f32 %v5463, 0.0
      %v5496 = vmax.f32 %v5464, 0.0
      %v5497 = vmax.f32 %v5465, 0.0
      %v5498 = vmax.f32 %v5466, 0.0
      %v5499 = vmax.f32 %v5467, 0.0
      %v5500 = vmax.f32 %v5468, 0.0
      %v5501 = vmax.f32 %v5469, 0.0
      %v5502 = vmax.f32 %v5470, 0.0
      %v5503 = vmax.f32 %v5471, 0.0
      %v5504 = vmax.f32 %v5472, 0.0
      %v5505 = vmax.f32 %v5473, 0.0
      %v5506 = vmax.f32 %v5474, 0.0
      %v5507 = vmax.f32 %v5475, 0.0
      %v5508 = vmax.f32 %v5476, 0.0
      %v5509 = vmax.f32 %v5477, 0.0
      %v5510 = vmax.f32 %v5478, 0.0
      %vm5511 = vcmask 64512
      %5512 = vst.msk [vmem:[%s278] sm:$0xff] %vm5511, %v5479
      %5513 = vst.msk [vmem:[%s278 + $0x8] sm:$0xff] %vm5511, %v5480
      %5514 = vst.msk [vmem:[%s278 + $0x10] sm:$0xff] %vm5511, %v5481
      %5515 = vst.msk [vmem:[%s278 + $0x18] sm:$0xff] %vm5511, %v5482
      %5516 = vst.msk [vmem:[%s278 + $0x20] sm:$0xff] %vm5511, %v5483
      %5517 = vst.msk [vmem:[%s278 + $0x28] sm:$0xff] %vm5511, %v5484
      %5518 = vst.msk [vmem:[%s278 + $0x30] sm:$0xff] %vm5511, %v5485
      %5519 = vst.msk [vmem:[%s278 + $0x38] sm:$0xff] %vm5511, %v5486
      %5520 = vst.msk [vmem:[%s278 + $0x40] sm:$0xff] %vm5511, %v5487
      %5521 = vst.msk [vmem:[%s278 + $0x48] sm:$0xff] %vm5511, %v5488
      %5522 = vst.msk [vmem:[%s278 + $0x50] sm:$0xff] %vm5511, %v5489
      %5523 = vst.msk [vmem:[%s278 + $0x58] sm:$0xff] %vm5511, %v5490
      %5524 = vst.msk [vmem:[%s278 + $0x60] sm:$0xff] %vm5511, %v5491
      %5525 = vst.msk [vmem:[%s278 + $0x68] sm:$0xff] %vm5511, %v5492
      %5526 = vst.msk [vmem:[%s278 + $0x70] sm:$0xff] %vm5511, %v5493
      %5527 = vst.msk [vmem:[%s278 + $0x78] sm:$0xff] %vm5511, %v5494
      %5528 = vst.msk [vmem:[%s278 + $0x80] sm:$0xff] %vm5511, %v5495
      %5529 = vst.msk [vmem:[%s278 + $0x88] sm:$0xff] %vm5511, %v5496
      %5530 = vst.msk [vmem:[%s278 + $0x90] sm:$0xff] %vm5511, %v5497
      %5531 = vst.msk [vmem:[%s278 + $0x98] sm:$0xff] %vm5511, %v5498
      %5532 = vst.msk [vmem:[%s278 + $0xa0] sm:$0xff] %vm5511, %v5499
      %5533 = vst.msk [vmem:[%s278 + $0xa8] sm:$0xff] %vm5511, %v5500
      %5534 = vst.msk [vmem:[%s278 + $0xb0] sm:$0xff] %vm5511, %v5501
      %5535 = vst.msk [vmem:[%s278 + $0xb8] sm:$0xff] %vm5511, %v5502
      %5536 = vst.msk [vmem:[%s278 + $0xc0] sm:$0xff] %vm5511, %v5503
      %5537 = vst.msk [vmem:[%s278 + $0xc8] sm:$0xff] %vm5511, %v5504
      %5538 = vst.msk [vmem:[%s278 + $0xd0] sm:$0xff] %vm5511, %v5505
      %5539 = vst.msk [vmem:[%s278 + $0xd8] sm:$0xff] %vm5511, %v5506
      %5540 = vst.msk [vmem:[%s278 + $0xe0] sm:$0xff] %vm5511, %v5507
      %5541 = vst.msk [vmem:[%s278 + $0xe8] sm:$0xff] %vm5511, %v5508
      %5542 = vst.msk [vmem:[%s278 + $0xf0] sm:$0xff] %vm5511, %v5509
      %5543 = vst.msk [vmem:[%s278 + $0xf8] sm:$0xff] %vm5511, %v5510
      %p5544 = scmp.lt.s32.totalorder %s18, 1
      %s5545 = scalar_select %p5544, %s18, 1
      %s5546 = smul.addr %s5545, 32
      %s5547 = smul.addr %s5546, 8
      %s5548 = scalar_lea.vmem %s7, %s5547
      // Predicated region
      $region49: #{double_conv_forward.1} parent=47 // pred_check
        %p5549 = pneg %p188
      $region50: #{double_conv_forward.1} parent=47 // pred_check_branch
        %5551 = sbr.rel (%p5549) target = $region52
      $region51: #{double_conv_forward.1} parent=47 // pred_region
        _
      $region52: #{double_conv_forward.1} parent=47 // pred_fallthru
        _
    $region48: #{double_conv_forward.1} parent=5 // pred_fallthru
      _
    %p5552 = scmp.le.s32.totalorder 2, %s13
    // Predicated region
    $region53: #{double_conv_forward.1} parent=5 // pred_check
      %p5553 = pneg %p5552
    $region54: #{double_conv_forward.1} parent=5 // pred_check_branch
      %5555 = sbr.rel (%p5553) target = $region56
    $region55: #{double_conv_forward.1} parent=5 // pred_region
      %s5556 = ssub.s32 %s13, 2
      // Predicated region
      $region57: #{double_conv_forward.1} parent=55 // pred_check
        %p5557 = pneg %p194
      $region58: #{double_conv_forward.1} parent=55 // pred_check_branch
        %5559 = sbr.rel (%p5557) target = $region60
      $region59: #{double_conv_forward.1} parent=55 // pred_region
        %p5560 = scmp.lt.s32.totalorder %s19, 1
        %s5561 = scalar_select %p5560, %s19, 1
        %s5562 = smul.addr %s5561, 32
        %s5563 = smul.addr %s5562, 8
        %s5564 = scalar_lea.vmem %s7, %s5563
      $region60: #{double_conv_forward.1} parent=55 // pred_fallthru
        _
    $region56: #{double_conv_forward.1} parent=5 // pred_fallthru
      _
  $region6: #{double_conv_forward.1} parent=0 // loop_footer
    %s17 = sadd.s32 1, %s13
  $region7: #{double_conv_forward.1} parent=0 // loop_footer_branch
    %12 = sbr.rel target = $region3
  $region8: #{double_conv_forward.1} parent=0 // loop_exit
    _

</llo_original>
